<compile_context>
chip_gen: v5e
topology: v5e:2x2
jax: 0.10.0
libtpu: 0.0.40
codegen_flags: <defaults>
</compile_context>

<pallas_src>
import math

import jax
import jax.numpy as jnp
from jax import lax
from jax.experimental import pallas as pl
from jax.experimental.pallas import tpu as pltpu

_LN_EPS = 1e-5                       # torch LayerNorm default eps
_MM_DTYPE = jnp.bfloat16             # MXU matmul input dtype (f32 accumulate)
_ACT_DTYPE = jnp.bfloat16            # activation I/O dtype between kernels
_ROW_ALIGN = 16                      # bf16-native sublane granularity for row tiles
_MAX_ROW_TILE = 1024


def _detect_vmem_capacity():
    try:
        return int(pltpu.get_tpu_info().vmem_capacity_bytes)
    except Exception:
        return 64 * 1024 * 1024      # conservative fallback (v7x-sized), safe on all gens


_VMEM_CAP = _detect_vmem_capacity()
# ~85% of physical (>=8 MiB headroom): ~108 MiB on v5e/v6e (128 MiB), ~54 MiB on v7x (64 MiB)
_VMEM_LIMIT_BYTES = min(int(_VMEM_CAP * 0.85), _VMEM_CAP - (8 << 20))
_TILE_VMEM_BUDGET = _VMEM_LIMIT_BYTES // 2


def _gelu(x):
    # tanh approximation -> EUP path (small deviation from torch's exact erf GELU).
    return jax.nn.gelu(x, approximate=True)


def _round_up(n, m):
    return ((n + m - 1) // m) * m


def _pad2(x, r, c):
    return jnp.pad(x, ((0, r - x.shape[0]), (0, c - x.shape[1])))


def _pad_rows(x, rows_p):
    if x.shape[0] == rows_p:
        return x
    return jnp.pad(x, ((0, rows_p - x.shape[0]),) + ((0, 0),) * (x.ndim - 1))


def _pad_axis(x, axis, new_size):
    if x.shape[axis] == new_size:
        return x
    pad = [(0, 0)] * x.ndim
    pad[axis] = (0, new_size - x.shape[axis])
    return jnp.pad(x, pad)


def _choose_tile(n_rows, per_row_bytes, reserved_bytes=0):
    """Largest row tile (<= _MAX_ROW_TILE, multiple of 16) fitting the VMEM tile budget
    (inputs/outputs double-buffered + f32 intermediates; weights counted via reserved)."""
    rows_a = _round_up(max(n_rows, 1), _ROW_ALIGN)
    budget = max(_TILE_VMEM_BUDGET - reserved_bytes, 1 << 20)
    t = _MAX_ROW_TILE
    while t > _ROW_ALIGN and t * per_row_bytes > budget:
        t //= 2
    t = min(t, rows_a)
    # v7x has 2 TensorCores sharded over "parallel" grid axes: keep >= 2 row steps
    # whenever there is enough work to split (harmless on 1-TC v5e/v6e).
    if rows_a > _ROW_ALIGN and t >= rows_a:
        t = _round_up((rows_a + 1) // 2, _ROW_ALIGN)
    return max(_ROW_ALIGN, t)


# ----------------------- fused MLP kernel -----------------------

def _make_mlp_kernel(n_parts, norm, nout_real, resid_part, m_reduce):
    """Fused 3-layer MLP [+LayerNorm] [+M-mean over grid axis 1] [+residual].

    Ref order: x_0..x_{P-1}, w1, b1, w2, b2, w3, b3, [gamma, beta], out, [acc_scratch]
    """
    def kernel(*refs):
        P = n_parts
        xs = refs[:P]
        idx = P
        w1, b1, w2, b2, w3, b3 = refs[idx:idx + 6]
        idx += 6
        gamma = beta = None
        if norm:
            gamma, beta = refs[idx], refs[idx + 1]
            idx += 2
        o_ref = refs[idx]
        idx += 1
        acc_ref = refs[idx] if m_reduce is not None else None

        # ---- layer 1: fused concat -> single wide-K matmul ----
        if P == 1:
            x = xs[0][...].astype(_MM_DTYPE)
        else:
            x = jnp.concatenate([xs[p][...].astype(_MM_DTYPE) for p in range(P)], axis=-1)
        h = _gelu(jnp.dot(x, w1[...], preferred_element_type=jnp.float32) + b1[...])
        h = _gelu(jnp.dot(h.astype(_MM_DTYPE), w2[...],
                          preferred_element_type=jnp.float32) + b2[...])
        y = jnp.dot(h.astype(_MM_DTYPE), w3[...],
                    preferred_element_type=jnp.float32) + b3[...]

        if norm:
            # Padded columns of y are exactly 0 (zero-padded W3 cols / b3), so unmasked
            # sums over the padded width equal sums over the real width.
            inv_n = 1.0 / nout_real
            mu = jnp.sum(y, axis=-1, keepdims=True) * inv_n
            var = jnp.sum(y * y, axis=-1, keepdims=True) * inv_n - mu * mu
            y = (y - mu) * lax.rsqrt(var + _LN_EPS)
            y = y * gamma[...] + beta[...]      # padded cols of gamma/beta are 0

        if m_reduce is None:
            if resid_part is not None:
                y = y + xs[resid_part][...].astype(jnp.float32)
            o_ref[...] = y.astype(o_ref.dtype)
        else:
            m = pl.program_id(1)

            @pl.when(m == 0)
            def _():
                acc_ref[...] = y

            @pl.when(m > 0)
            def _():
                acc_ref[...] = acc_ref[...] + y

            @pl.when(m == m_reduce - 1)
            def _():
                out = acc_ref[...] * (1.0 / m_reduce)
                if resid_part is not None:
                    out = out + xs[resid_part][...].astype(jnp.float32)
                o_ref[...] = out.astype(o_ref.dtype)

    return kernel


# ----------------------- weight prep (pad to 128, stack W1, bf16 cast) -----------------------

def _prep_weights(p, split_sizes, norm):
    """split_sizes: list of (real_width, padded_width) per input part, in concat order.
    Returns an arrays-only dict (safe to pass through jit without re-prep)."""
    w1, b1 = p["l1"]
    w2, b2 = p["l2"]
    w3, b3 = p["l3"]
    hidden = w1.shape[1]
    nout = w3.shape[1]
    hid_p = _round_up(hidden, 128)
    nout_p = _round_up(nout, 128)
    assert sum(k for k, _ in split_sizes) == w1.shape[0]

    k_tot = sum(kp for _, kp in split_sizes)
    w1s = jnp.zeros((k_tot, hid_p), jnp.float32)
    off_r = off_p = 0
    for k_real, k_pad in split_sizes:
        w1s = w1s.at[off_p:off_p + k_real, :hidden].set(w1[off_r:off_r + k_real])
        off_r += k_real
        off_p += k_pad

    prep = {
        "w1": w1s.astype(_MM_DTYPE),
        "b1": _pad2(b1.reshape(1, -1), 1, hid_p),
        "w2": _pad2(w2, hid_p, hid_p).astype(_MM_DTYPE),
        "b2": _pad2(b2.reshape(1, -1), 1, hid_p),
        "w3": _pad2(w3, hid_p, nout_p).astype(_MM_DTYPE),
        "b3": _pad2(b3.reshape(1, -1), 1, nout_p),
    }
    if norm:
        prep["gamma"] = _pad2(p["gamma"].reshape(1, -1), 1, nout_p)
        prep["beta"] = _pad2(p["beta"].reshape(1, -1), 1, nout_p)
    return prep


def _weight_args(prep, norm):
    names = ["w1", "b1", "w2", "b2", "w3", "b3"] + (["gamma", "beta"] if norm else [])
    args = [prep[n] for n in names]
    # TODO(synk): pipeline_mode=pl.Buffered(1) on these constant-index blocks would halve
    # the resident-weight VMEM; left off to guarantee clean lowering across jax versions.
    specs = [pl.BlockSpec(a.shape, lambda *_: (0, 0)) for a in args]
    return args, specs


def _weight_bytes(args):
    return sum(int(a.size) * a.dtype.itemsize for a in args)


# ----------------------- pallas_call wrappers -----------------------

def mlp_rows(parts, prep, nout_real, *, norm, resid_part=None, out_dtype=None):
    """Row-tiled fused MLP over 2D parts [(rows, k_p)]; returns (rows, nout_p)."""
    rows = parts[0].shape[0]
    out_dtype = out_dtype or _ACT_DTYPE
    nout_p = prep["w3"].shape[1]
    hid_p = prep["w2"].shape[0]

    w_args, w_specs = _weight_args(prep, norm)
    in_bytes = sum(x.shape[1] * x.dtype.itemsize for x in parts)
    per_row = 2 * (in_bytes + jnp.dtype(out_dtype).itemsize * nout_p) + 4 * (hid_p + nout_p)
    tm = _choose_tile(rows, per_row, 2 * _weight_bytes(w_args))
    rows_p = _round_up(rows, tm)
    parts = [_pad_rows(x, rows_p) for x in parts]

    x_specs = [pl.BlockSpec((tm, x.shape[1]), lambda i: (i, 0)) for x in parts]
    kernel = _make_mlp_kernel(len(parts), norm, nout_real, resid_part, None)

    out = pl.pallas_call(
        kernel,
        out_shape=jax.ShapeDtypeStruct((rows_p, nout_p), out_dtype),
        grid=(rows_p // tm,),
        in_specs=x_specs + w_specs,
        out_specs=pl.BlockSpec((tm, nout_p), lambda i: (i, 0)),
        compiler_params=pltpu.CompilerParams(
            dimension_semantics=("parallel",),
            vmem_limit_bytes=_VMEM_LIMIT_BYTES),
    )(*parts, *w_args)
    return out[:rows]


def elem_block(gathered_m, elemnodes_m, elems2d, prep, nout_real, M):
    """elems2d + mean_m MLPnorm(concat([gathered, elemNodes, elems])).

    gathered_m / elemnodes_m: (M, BE, H_pad) bf16 in (m, b*Nelem+e) order.
    elems2d: (BE, H_pad) bf16.  Returns (BE, nout_p) bf16."""
    BE, H_pad = elems2d.shape
    nout_p = prep["w3"].shape[1]
    hid_p = prep["w2"].shape[0]

    gathered_m = gathered_m.astype(_ACT_DTYPE)
    elemnodes_m = elemnodes_m.astype(_ACT_DTYPE)
    elems2d = elems2d.astype(_ACT_DTYPE)

    w_args, w_specs = _weight_args(prep, True)
    per_row = 2 * (2 * 3 * H_pad + 2 * nout_p) + 4 * (hid_p + 2 * nout_p)
    te = _choose_tile(BE, per_row, 2 * _weight_bytes(w_args))
    BEp = _round_up(BE, te)
    gathered_m = _pad_axis(gathered_m, 1, BEp)
    elemnodes_m = _pad_axis(elemnodes_m, 1, BEp)
    elems_p = _pad_axis(elems2d, 0, BEp)

    x_specs = [
        pl.BlockSpec((None, te, H_pad), lambda i, m: (m, i, 0)),
        pl.BlockSpec((None, te, H_pad), lambda i, m: (m, i, 0)),
        pl.BlockSpec((te, H_pad), lambda i, m: (i, 0)),     # elems: resident across m
    ]
    kernel = _make_mlp_kernel(3, True, nout_real, resid_part=2, m_reduce=M)

    out = pl.pallas_call(
        kernel,
        out_shape=jax.ShapeDtypeStruct((BEp, nout_p), _ACT_DTYPE),
        grid=(BEp // te, M),                                  # M is the reduction axis (last)
        in_specs=x_specs + w_specs,
        out_specs=pl.BlockSpec((te, nout_p), lambda i, m: (i, 0)),
        scratch_shapes=[pltpu.VMEM((te, nout_p), jnp.float32)],   # f32 mean accumulator
        compiler_params=pltpu.CompilerParams(
            dimension_semantics=("parallel", "arbitrary"),
            vmem_limit_bytes=_VMEM_LIMIT_BYTES),
    )(gathered_m, elemnodes_m, elems_p, *w_args)
    return out[:BE]


# ----------------------- parameter initialization & prep -----------------------

def _init_linear(key, nin, nout):
    kw, kb = jax.random.split(key)
    s = 1.0 / math.sqrt(nin)
    w = jax.random.uniform(kw, (nin, nout), jnp.float32, -s, s)
    b = jax.random.uniform(kb, (nout,), jnp.float32, -s, s)
    return (w, b)


def _init_mlp(key, nin, nout, hidden, norm):
    k1, k2, k3 = jax.random.split(key, 3)
    p = {
        "l1": _init_linear(k1, nin, hidden),
        "l2": _init_linear(k2, hidden, hidden),
        "l3": _init_linear(k3, hidden, nout),
    }
    if norm:
        p["gamma"] = jnp.ones((nout,), jnp.float32)
        p["beta"] = jnp.zeros((nout,), jnp.float32)
    return p


def init_graphnet_params(key, node_dim, elementNode_dim, element_dim,
                         out_dim, hidden_dim, nLayers):
    keys = jax.random.split(key, 4 + 2 * nLayers)
    params = {
        "nodeEnc": _init_mlp(keys[0], node_dim, hidden_dim, hidden_dim, True),
        "elemNodeEnc": _init_mlp(keys[1], elementNode_dim, hidden_dim, hidden_dim, True),
        "elemEnc": _init_mlp(keys[2], element_dim, hidden_dim, hidden_dim, True),
        "decoder": _init_mlp(keys[3], hidden_dim, out_dim, hidden_dim, False),
        "elemBlks": [],
        "nodeBlks": [],
    }
    for i in range(nLayers):
        params["elemBlks"].append(
            _init_mlp(keys[4 + 2 * i], 3 * hidden_dim, hidden_dim, hidden_dim, True))
        params["nodeBlks"].append(
            _init_mlp(keys[5 + 2 * i], 2 * hidden_dim, hidden_dim, hidden_dim, True))
    return params


def prep_graphnet_params(params):
    """Pad / stack / bf16-cast all weights ONCE (outside the jitted forward)."""
    H = params["nodeEnc"]["l3"][0].shape[1]
    H_pad = _round_up(H, 128)
    node_dim = params["nodeEnc"]["l1"][0].shape[0]
    en_dim = params["elemNodeEnc"]["l1"][0].shape[0]
    e_dim = params["elemEnc"]["l1"][0].shape[0]
    return {
        "nodeEnc": _prep_weights(params["nodeEnc"], [(node_dim, node_dim)], True),
        "elemNodeEnc": _prep_weights(params["elemNodeEnc"], [(en_dim, en_dim)], True),
        "elemEnc": _prep_weights(params["elemEnc"], [(e_dim, e_dim)], True),
        "decoder": _prep_weights(params["decoder"], [(H, H_pad)], False),
        "elemBlks": [_prep_weights(p, [(H, H_pad)] * 3, True) for p in params["elemBlks"]],
        "nodeBlks": [_prep_weights(p, [(H, H_pad)] * 2, True) for p in params["nodeBlks"]],
    }


# ----------------------- graphNetV1 forward -----------------------

def graphnet_forward(prepped, nodes, elemNodes, elems, elemConn,
                     nLayers, hidden_dim, out_dim):
    B, Nnode, node_dim = nodes.shape
    _, Nelem, M, en_dim = elemNodes.shape
    e_dim = elems.shape[-1]
    H_pad = prepped["nodeEnc"]["w3"].shape[1]

    # ---- encoders (raw inputs stay f32: tiny widths; latents come out bf16) ----
    # TODO(synk): the three encoders could be row-concatenated into a single pallas_call
    # (common padded nin) to amortize launch / weight-DMA overhead.
    nodes_h = mlp_rows([nodes.reshape(-1, node_dim)], prepped["nodeEnc"],
                       hidden_dim, norm=True)
    # encode elemNodes in (m, b, e) row order so elemBlock can tile the element axis
    # contiguously for each m sub-row.
    en_in = jnp.transpose(elemNodes, (2, 0, 1, 3)).reshape(-1, en_dim)
    elemNodes_h = mlp_rows([en_in], prepped["elemNodeEnc"],
                           hidden_dim, norm=True).reshape(M, B * Nelem, H_pad)
    elems_h = mlp_rows([elems.reshape(-1, e_dim)], prepped["elemEnc"],
                       hidden_dim, norm=True)

    nodes_h = nodes_h.reshape(B, Nnode, H_pad)
    elems_h = elems_h.reshape(B, Nelem, H_pad)

    # gather index in (m, b, e) order: gidx[m, b, e] = elemConn[b, e, m]
    gather_idx = jnp.transpose(elemConn, (2, 0, 1))
    # torch scatter pairing: flat j = m*Nelem + e targets elemConn[b, e, m] while the
    # source row is elems[b, j // M]; reshape the flat index to (k = j//M, r = j%M) so
    # each r-slice pairs directly with elems_h (no M-times repeat materialized).
    scat_kr = jnp.transpose(elemConn, (0, 2, 1)).reshape(B, Nelem, M)

    seg_sum = jax.vmap(lambda d, i: jax.ops.segment_sum(d, i, num_segments=Nnode))

    for i in range(nLayers):
        pe = prepped["elemBlks"][i]
        pn = prepped["nodeBlks"][i]

        # ------- elemBlock: elems += mean_m MLPnorm([gather(nodes), elemNodes, elems]) -------
        # TODO(synk): data-dependent node-row gather stays in plain JAX glue (bf16 source).
        gathered = jax.vmap(
            lambda idx_m: jnp.take_along_axis(
                nodes_h,
                jnp.broadcast_to(idx_m[:, :, None], (B, Nelem, H_pad)),
                axis=1)
        )(gather_idx).reshape(M, B * Nelem, H_pad)
        elems_h = elem_block(gathered, elemNodes_h, elems_h.reshape(-1, H_pad),
                             pe, hidden_dim, M).reshape(B, Nelem, H_pad)

        # ------- nodeBlock: nodes += MLPnorm([scatter_add(elems), nodes]) -------
        # TODO(synk): scatter-add (torch_scatter reduce='sum') stays in plain JAX glue.
        elems_f32 = elems_h.astype(jnp.float32)       # accumulate the scatter in f32
        agg = jnp.zeros((B, Nnode, H_pad), jnp.float32)
        for r in range(M):
            agg = agg + seg_sum(elems_f32, scat_kr[:, :, r])
        nodes_h = mlp_rows([agg.astype(_ACT_DTYPE).reshape(-1, H_pad),
                            nodes_h.reshape(-1, H_pad)],
                           pn, hidden_dim, norm=True,
                           resid_part=1).reshape(B, Nnode, H_pad)

    # ---- decoder (no norm); final output kept in f32 ----
    out = mlp_rows([nodes_h.reshape(-1, H_pad)], prepped["decoder"], out_dim,
                   norm=False, out_dtype=jnp.float32)
    return out[:, :out_dim].reshape(B, Nnode, out_dim)


if __name__ == "__main__":
    # small shapes consistent with the module
    B, Nnode, Nelem, M = 2, 16, 8, 4
    node_dim, elementNode_dim, element_dim = 4, 3, 5
    hidden_dim, out_dim, nLayers = 32, 2, 2

    root = jax.random.PRNGKey(0)
    kp, kn, ken, ke, kc = jax.random.split(root, 5)

    params = init_graphnet_params(kp, node_dim, elementNode_dim, element_dim,
                                  out_dim, hidden_dim, nLayers)
    prepped = prep_graphnet_params(params)       # pad / stack / bf16-cast once, outside jit

    nodes = jax.random.normal(kn, (B, Nnode, node_dim), jnp.float32)
    elemNodes = jax.random.normal(ken, (B, Nelem, M, elementNode_dim), jnp.float32)
    elems = jax.random.normal(ke, (B, Nelem, element_dim), jnp.float32)
    elemConn = jax.random.randint(kc, (B, Nelem, M), 0, Nnode, jnp.int32)

    fwd = jax.jit(graphnet_forward, static_argnums=(5, 6, 7))
    out = jax.block_until_ready(
        fwd(prepped, nodes, elemNodes, elems, elemConn, nLayers, hidden_dim, out_dim))
    assert out.shape == (B, Nnode, out_dim)
    assert bool(jnp.all(jnp.isfinite(out)))
    print("KERNEL_OK")
</pallas_src>

<mosaic_0001>
module attributes {stable_mosaic.version = 11 : i64} {
  func.func @kernel(%arg0: i32, %arg1: memref<16x4xf32, #tpu.memory_space<vmem>>, %arg2: memref<4x128xbf16, #tpu.memory_space<vmem>>, %arg3: memref<1x128xf32, #tpu.memory_space<vmem>>, %arg4: memref<128x128xbf16, #tpu.memory_space<vmem>>, %arg5: memref<1x128xf32, #tpu.memory_space<vmem>>, %arg6: memref<128x128xbf16, #tpu.memory_space<vmem>>, %arg7: memref<1x128xf32, #tpu.memory_space<vmem>>, %arg8: memref<1x128xf32, #tpu.memory_space<vmem>>, %arg9: memref<1x128xf32, #tpu.memory_space<vmem>>, %arg10: memref<16x128xbf16, #tpu.memory_space<vmem>>) attributes {dimension_semantics = [#tpu.dimension_semantics<parallel>], iteration_bounds = array<i64: 2>, scalar_prefetch = 0 : i64, scratch_operands = 0 : i64, tpu.core_type = #tpu.core_type<tc>, window_params = [{transform_indices = @transform_0, window_bounds = array<i64: 16, 4>}, {pipeline_mode = #tpu.pipeline_mode<synchronous>, transform_indices = @transform_1, window_bounds = array<i64: 4, 128>}, {pipeline_mode = #tpu.pipeline_mode<synchronous>, transform_indices = @transform_2, window_bounds = array<i64: 1, 128>}, {pipeline_mode = #tpu.pipeline_mode<synchronous>, transform_indices = @transform_3, window_bounds = array<i64: 128, 128>}, {pipeline_mode = #tpu.pipeline_mode<synchronous>, transform_indices = @transform_4, window_bounds = array<i64: 1, 128>}, {pipeline_mode = #tpu.pipeline_mode<synchronous>, transform_indices = @transform_5, window_bounds = array<i64: 128, 128>}, {pipeline_mode = #tpu.pipeline_mode<synchronous>, transform_indices = @transform_6, window_bounds = array<i64: 1, 128>}, {pipeline_mode = #tpu.pipeline_mode<synchronous>, transform_indices = @transform_7, window_bounds = array<i64: 1, 128>}, {pipeline_mode = #tpu.pipeline_mode<synchronous>, transform_indices = @transform_8, window_bounds = array<i64: 1, 128>}, {transform_indices = @transform_9, window_bounds = array<i64: 16, 128>}]} {
    %c0 = arith.constant 0 : index
    %c0_0 = arith.constant 0 : index
    %0 = vector.load %arg1[%c0, %c0_0] : memref<16x4xf32, #tpu.memory_space<vmem>>, vector<16x4xf32>
    %1 = arith.truncf %0 : vector<16x4xf32> to vector<16x4xbf16>
    %c0_1 = arith.constant 0 : index
    %c0_2 = arith.constant 0 : index
    %2 = vector.load %arg2[%c0_1, %c0_2] : memref<4x128xbf16, #tpu.memory_space<vmem>>, vector<4x128xbf16>
    %cst = arith.constant dense<0.000000e+00> : vector<16x128xf32>
    %3 = tpu.matmul %1, %2, %cst {dimension_numbers = #tpu.dot_dimension_numbers<[1], [0], [0], [1], [0, 0, 1, 1], [], []>} : vector<16x4xbf16>, vector<4x128xbf16>, vector<16x128xf32> -> vector<16x128xf32>
    %c0_3 = arith.constant 0 : index
    %c0_4 = arith.constant 0 : index
    %4 = vector.load %arg3[%c0_3, %c0_4] : memref<1x128xf32, #tpu.memory_space<vmem>>, vector<1x128xf32>
    %5 = vector.broadcast %4 : vector<1x128xf32> to vector<16x128xf32>
    %6 = arith.addf %3, %5 : vector<16x128xf32>
    %7 = arith.mulf %6, %6 : vector<16x128xf32>
    %8 = arith.mulf %6, %7 : vector<16x128xf32>
    %cst_5 = arith.constant 4.471500e-02 : f32
    %9 = vector.broadcast %cst_5 : f32 to vector<16x128xf32>
    %10 = arith.mulf %9, %8 : vector<16x128xf32>
    %11 = arith.addf %6, %10 : vector<16x128xf32>
    %cst_6 = arith.constant 0.797884583 : f32
    %12 = vector.broadcast %cst_6 : f32 to vector<16x128xf32>
    %13 = arith.mulf %12, %11 : vector<16x128xf32>
    %14 = math.tanh %13 : vector<16x128xf32>
    %cst_7 = arith.constant 1.000000e+00 : f32
    %15 = vector.broadcast %cst_7 : f32 to vector<16x128xf32>
    %16 = arith.addf %15, %14 : vector<16x128xf32>
    %cst_8 = arith.constant 5.000000e-01 : f32
    %17 = vector.broadcast %cst_8 : f32 to vector<16x128xf32>
    %18 = arith.mulf %17, %16 : vector<16x128xf32>
    %19 = arith.mulf %6, %18 : vector<16x128xf32>
    %20 = arith.truncf %19 : vector<16x128xf32> to vector<16x128xbf16>
    %c0_9 = arith.constant 0 : index
    %c0_10 = arith.constant 0 : index
    %21 = vector.load %arg4[%c0_9, %c0_10] : memref<128x128xbf16, #tpu.memory_space<vmem>>, vector<128x128xbf16>
    %cst_11 = arith.constant dense<0.000000e+00> : vector<16x128xf32>
    %22 = tpu.matmul %20, %21, %cst_11 {dimension_numbers = #tpu.dot_dimension_numbers<[1], [0], [0], [1], [0, 0, 1, 1], [], []>} : vector<16x128xbf16>, vector<128x128xbf16>, vector<16x128xf32> -> vector<16x128xf32>
    %c0_12 = arith.constant 0 : index
    %c0_13 = arith.constant 0 : index
    %23 = vector.load %arg5[%c0_12, %c0_13] : memref<1x128xf32, #tpu.memory_space<vmem>>, vector<1x128xf32>
    %24 = vector.broadcast %23 : vector<1x128xf32> to vector<16x128xf32>
    %25 = arith.addf %22, %24 : vector<16x128xf32>
    %26 = arith.mulf %25, %25 : vector<16x128xf32>
    %27 = arith.mulf %25, %26 : vector<16x128xf32>
    %cst_14 = arith.constant 4.471500e-02 : f32
    %28 = vector.broadcast %cst_14 : f32 to vector<16x128xf32>
    %29 = arith.mulf %28, %27 : vector<16x128xf32>
    %30 = arith.addf %25, %29 : vector<16x128xf32>
    %cst_15 = arith.constant 0.797884583 : f32
    %31 = vector.broadcast %cst_15 : f32 to vector<16x128xf32>
    %32 = arith.mulf %31, %30 : vector<16x128xf32>
    %33 = math.tanh %32 : vector<16x128xf32>
    %cst_16 = arith.constant 1.000000e+00 : f32
    %34 = vector.broadcast %cst_16 : f32 to vector<16x128xf32>
    %35 = arith.addf %34, %33 : vector<16x128xf32>
    %cst_17 = arith.constant 5.000000e-01 : f32
    %36 = vector.broadcast %cst_17 : f32 to vector<16x128xf32>
    %37 = arith.mulf %36, %35 : vector<16x128xf32>
    %38 = arith.mulf %25, %37 : vector<16x128xf32>
    %39 = arith.truncf %38 : vector<16x128xf32> to vector<16x128xbf16>
    %c0_18 = arith.constant 0 : index
    %c0_19 = arith.constant 0 : index
    %40 = vector.load %arg6[%c0_18, %c0_19] : memref<128x128xbf16, #tpu.memory_space<vmem>>, vector<128x128xbf16>
    %cst_20 = arith.constant dense<0.000000e+00> : vector<16x128xf32>
    %41 = tpu.matmul %39, %40, %cst_20 {dimension_numbers = #tpu.dot_dimension_numbers<[1], [0], [0], [1], [0, 0, 1, 1], [], []>} : vector<16x128xbf16>, vector<128x128xbf16>, vector<16x128xf32> -> vector<16x128xf32>
    %c0_21 = arith.constant 0 : index
    %c0_22 = arith.constant 0 : index
    %42 = vector.load %arg7[%c0_21, %c0_22] : memref<1x128xf32, #tpu.memory_space<vmem>>, vector<1x128xf32>
    %43 = vector.broadcast %42 : vector<1x128xf32> to vector<16x128xf32>
    %44 = arith.addf %41, %43 : vector<16x128xf32>
    %cst_23 = arith.constant dense<0.000000e+00> : vector<16xf32>
    %45 = vector.multi_reduction <add>, %44, %cst_23 [1] : vector<16x128xf32> to vector<16xf32>
    %46 = vector.shape_cast %45 : vector<16xf32> to vector<16x1xf32>
    %cst_24 = arith.constant 3.125000e-02 : f32
    %47 = vector.broadcast %cst_24 : f32 to vector<16x1xf32>
    %48 = arith.mulf %46, %47 : vector<16x1xf32>
    %49 = arith.mulf %44, %44 : vector<16x128xf32>
    %cst_25 = arith.constant dense<0.000000e+00> : vector<16xf32>
    %50 = vector.multi_reduction <add>, %49, %cst_25 [1] : vector<16x128xf32> to vector<16xf32>
    %51 = vector.shape_cast %50 : vector<16xf32> to vector<16x1xf32>
    %cst_26 = arith.constant 3.125000e-02 : f32
    %52 = vector.broadcast %cst_26 : f32 to vector<16x1xf32>
    %53 = arith.mulf %51, %52 : vector<16x1xf32>
    %54 = arith.mulf %48, %48 : vector<16x1xf32>
    %55 = arith.subf %53, %54 : vector<16x1xf32>
    %56 = vector.broadcast %48 : vector<16x1xf32> to vector<16x128xf32>
    %57 = arith.subf %44, %56 : vector<16x128xf32>
    %cst_27 = arith.constant 9.99999974E-6 : f32
    %58 = vector.broadcast %cst_27 : f32 to vector<16x1xf32>
    %59 = arith.addf %55, %58 : vector<16x1xf32>
    %60 = math.rsqrt %59 : vector<16x1xf32>
    %61 = vector.broadcast %60 : vector<16x1xf32> to vector<16x128xf32>
    %62 = arith.mulf %57, %61 : vector<16x128xf32>
    %c0_28 = arith.constant 0 : index
    %c0_29 = arith.constant 0 : index
    %63 = vector.load %arg8[%c0_28, %c0_29] : memref<1x128xf32, #tpu.memory_space<vmem>>, vector<1x128xf32>
    %64 = vector.broadcast %63 : vector<1x128xf32> to vector<16x128xf32>
    %65 = arith.mulf %62, %64 : vector<16x128xf32>
    %c0_30 = arith.constant 0 : index
    %c0_31 = arith.constant 0 : index
    %66 = vector.load %arg9[%c0_30, %c0_31] : memref<1x128xf32, #tpu.memory_space<vmem>>, vector<1x128xf32>
    %67 = vector.broadcast %66 : vector<1x128xf32> to vector<16x128xf32>
    %68 = arith.addf %65, %67 : vector<16x128xf32>
    %69 = arith.truncf %68 : vector<16x128xf32> to vector<16x128xbf16>
    %c0_32 = arith.constant 0 : index
    %c0_33 = arith.constant 0 : index
    %70 = vector.load %arg10[%c0_32, %c0_33] : memref<16x128xbf16, #tpu.memory_space<vmem>>, vector<16x128xbf16>
    tpu.vector_store %arg10[%c0_32, %c0_33], %69 {strides = array<i32>} : memref<16x128xbf16, #tpu.memory_space<vmem>>, vector<16x128xbf16>,
    return
  }
  func.func @transform_0(%arg0: i32) -> (i32, i32) {
    %c0_i32 = arith.constant 0 : i32
    %c0_i32_0 = arith.constant 0 : i32
    return %arg0, %c0_i32 : i32, i32
  }
  func.func @transform_1(%arg0: i32) -> (i32, i32) {
    %c0_i32 = arith.constant 0 : i32
    %c0_i32_0 = arith.constant 0 : i32
    %c0_i32_1 = arith.constant 0 : i32
    return %c0_i32, %c0_i32_0 : i32, i32
  }
  func.func @transform_2(%arg0: i32) -> (i32, i32) {
    %c0_i32 = arith.constant 0 : i32
    %c0_i32_0 = arith.constant 0 : i32
    %c0_i32_1 = arith.constant 0 : i32
    return %c0_i32, %c0_i32_0 : i32, i32
  }
  func.func @transform_3(%arg0: i32) -> (i32, i32) {
    %c0_i32 = arith.constant 0 : i32
    %c0_i32_0 = arith.constant 0 : i32
    %c0_i32_1 = arith.constant 0 : i32
    return %c0_i32, %c0_i32_0 : i32, i32
  }
  func.func @transform_4(%arg0: i32) -> (i32, i32) {
    %c0_i32 = arith.constant 0 : i32
    %c0_i32_0 = arith.constant 0 : i32
    %c0_i32_1 = arith.constant 0 : i32
    return %c0_i32, %c0_i32_0 : i32, i32
  }
  func.func @transform_5(%arg0: i32) -> (i32, i32) {
    %c0_i32 = arith.constant 0 : i32
    %c0_i32_0 = arith.constant 0 : i32
    %c0_i32_1 = arith.constant 0 : i32
    return %c0_i32, %c0_i32_0 : i32, i32
  }
  func.func @transform_6(%arg0: i32) -> (i32, i32) {
    %c0_i32 = arith.constant 0 : i32
    %c0_i32_0 = arith.constant 0 : i32
    %c0_i32_1 = arith.constant 0 : i32
    return %c0_i32, %c0_i32_0 : i32, i32
  }
  func.func @transform_7(%arg0: i32) -> (i32, i32) {
    %c0_i32 = arith.constant 0 : i32
    %c0_i32_0 = arith.constant 0 : i32
    %c0_i32_1 = arith.constant 0 : i32
    return %c0_i32, %c0_i32_0 : i32, i32
  }
  func.func @transform_8(%arg0: i32) -> (i32, i32) {
    %c0_i32 = arith.constant 0 : i32
    %c0_i32_0 = arith.constant 0 : i32
    %c0_i32_1 = arith.constant 0 : i32
    return %c0_i32, %c0_i32_0 : i32, i32
  }
  func.func @transform_9(%arg0: i32) -> (i32, i32) {
    %c0_i32 = arith.constant 0 : i32
    %c0_i32_0 = arith.constant 0 : i32
    return %arg0, %c0_i32 : i32, i32
  }
}

module attributes {stable_mosaic.version = 11 : i64} {
  func.func @kernel(%arg0: i32, %arg1: memref<32x3xf32, #tpu.memory_space<vmem>>, %arg2: memref<3x128xbf16, #tpu.memory_space<vmem>>, %arg3: memref<1x128xf32, #tpu.memory_space<vmem>>, %arg4: memref<128x128xbf16, #tpu.memory_space<vmem>>, %arg5: memref<1x128xf32, #tpu.memory_space<vmem>>, %arg6: memref<128x128xbf16, #tpu.memory_space<vmem>>, %arg7: memref<1x128xf32, #tpu.memory_space<vmem>>, %arg8: memref<1x128xf32, #tpu.memory_space<vmem>>, %arg9: memref<1x128xf32, #tpu.memory_space<vmem>>, %arg10: memref<32x128xbf16, #tpu.memory_space<vmem>>) attributes {dimension_semantics = [#tpu.dimension_semantics<parallel>], iteration_bounds = array<i64: 2>, scalar_prefetch = 0 : i64, scratch_operands = 0 : i64, tpu.core_type = #tpu.core_type<tc>, window_params = [{transform_indices = @transform_0, window_bounds = array<i64: 32, 3>}, {pipeline_mode = #tpu.pipeline_mode<synchronous>, transform_indices = @transform_1, window_bounds = array<i64: 3, 128>}, {pipeline_mode = #tpu.pipeline_mode<synchronous>, transform_indices = @transform_2, window_bounds = array<i64: 1, 128>}, {pipeline_mode = #tpu.pipeline_mode<synchronous>, transform_indices = @transform_3, window_bounds = array<i64: 128, 128>}, {pipeline_mode = #tpu.pipeline_mode<synchronous>, transform_indices = @transform_4, window_bounds = array<i64: 1, 128>}, {pipeline_mode = #tpu.pipeline_mode<synchronous>, transform_indices = @transform_5, window_bounds = array<i64: 128, 128>}, {pipeline_mode = #tpu.pipeline_mode<synchronous>, transform_indices = @transform_6, window_bounds = array<i64: 1, 128>}, {pipeline_mode = #tpu.pipeline_mode<synchronous>, transform_indices = @transform_7, window_bounds = array<i64: 1, 128>}, {pipeline_mode = #tpu.pipeline_mode<synchronous>, transform_indices = @transform_8, window_bounds = array<i64: 1, 128>}, {transform_indices = @transform_9, window_bounds = array<i64: 32, 128>}]} {
    %c0 = arith.constant 0 : index
    %c0_0 = arith.constant 0 : index
    %0 = vector.load %arg1[%c0, %c0_0] : memref<32x3xf32, #tpu.memory_space<vmem>>, vector<32x3xf32>
    %1 = arith.truncf %0 : vector<32x3xf32> to vector<32x3xbf16>
    %c0_1 = arith.constant 0 : index
    %c0_2 = arith.constant 0 : index
    %2 = vector.load %arg2[%c0_1, %c0_2] : memref<3x128xbf16, #tpu.memory_space<vmem>>, vector<3x128xbf16>
    %cst = arith.constant dense<0.000000e+00> : vector<32x128xf32>
    %3 = tpu.matmul %1, %2, %cst {dimension_numbers = #tpu.dot_dimension_numbers<[1], [0], [0], [1], [0, 0, 1, 1], [], []>} : vector<32x3xbf16>, vector<3x128xbf16>, vector<32x128xf32> -> vector<32x128xf32>
    %c0_3 = arith.constant 0 : index
    %c0_4 = arith.constant 0 : index
    %4 = vector.load %arg3[%c0_3, %c0_4] : memref<1x128xf32, #tpu.memory_space<vmem>>, vector<1x128xf32>
    %5 = vector.broadcast %4 : vector<1x128xf32> to vector<32x128xf32>
    %6 = arith.addf %3, %5 : vector<32x128xf32>
    %7 = arith.mulf %6, %6 : vector<32x128xf32>
    %8 = arith.mulf %6, %7 : vector<32x128xf32>
    %cst_5 = arith.constant 4.471500e-02 : f32
    %9 = vector.broadcast %cst_5 : f32 to vector<32x128xf32>
    %10 = arith.mulf %9, %8 : vector<32x128xf32>
    %11 = arith.addf %6, %10 : vector<32x128xf32>
    %cst_6 = arith.constant 0.797884583 : f32
    %12 = vector.broadcast %cst_6 : f32 to vector<32x128xf32>
    %13 = arith.mulf %12, %11 : vector<32x128xf32>
    %14 = math.tanh %13 : vector<32x128xf32>
    %cst_7 = arith.constant 1.000000e+00 : f32
    %15 = vector.broadcast %cst_7 : f32 to vector<32x128xf32>
    %16 = arith.addf %15, %14 : vector<32x128xf32>
    %cst_8 = arith.constant 5.000000e-01 : f32
    %17 = vector.broadcast %cst_8 : f32 to vector<32x128xf32>
    %18 = arith.mulf %17, %16 : vector<32x128xf32>
    %19 = arith.mulf %6, %18 : vector<32x128xf32>
    %20 = arith.truncf %19 : vector<32x128xf32> to vector<32x128xbf16>
    %c0_9 = arith.constant 0 : index
    %c0_10 = arith.constant 0 : index
    %21 = vector.load %arg4[%c0_9, %c0_10] : memref<128x128xbf16, #tpu.memory_space<vmem>>, vector<128x128xbf16>
    %cst_11 = arith.constant dense<0.000000e+00> : vector<32x128xf32>
    %22 = tpu.matmul %20, %21, %cst_11 {dimension_numbers = #tpu.dot_dimension_numbers<[1], [0], [0], [1], [0, 0, 1, 1], [], []>} : vector<32x128xbf16>, vector<128x128xbf16>, vector<32x128xf32> -> vector<32x128xf32>
    %c0_12 = arith.constant 0 : index
    %c0_13 = arith.constant 0 : index
    %23 = vector.load %arg5[%c0_12, %c0_13] : memref<1x128xf32, #tpu.memory_space<vmem>>, vector<1x128xf32>
    %24 = vector.broadcast %23 : vector<1x128xf32> to vector<32x128xf32>
    %25 = arith.addf %22, %24 : vector<32x128xf32>
    %26 = arith.mulf %25, %25 : vector<32x128xf32>
    %27 = arith.mulf %25, %26 : vector<32x128xf32>
    %cst_14 = arith.constant 4.471500e-02 : f32
    %28 = vector.broadcast %cst_14 : f32 to vector<32x128xf32>
    %29 = arith.mulf %28, %27 : vector<32x128xf32>
    %30 = arith.addf %25, %29 : vector<32x128xf32>
    %cst_15 = arith.constant 0.797884583 : f32
    %31 = vector.broadcast %cst_15 : f32 to vector<32x128xf32>
    %32 = arith.mulf %31, %30 : vector<32x128xf32>
    %33 = math.tanh %32 : vector<32x128xf32>
    %cst_16 = arith.constant 1.000000e+00 : f32
    %34 = vector.broadcast %cst_16 : f32 to vector<32x128xf32>
    %35 = arith.addf %34, %33 : vector<32x128xf32>
    %cst_17 = arith.constant 5.000000e-01 : f32
    %36 = vector.broadcast %cst_17 : f32 to vector<32x128xf32>
    %37 = arith.mulf %36, %35 : vector<32x128xf32>
    %38 = arith.mulf %25, %37 : vector<32x128xf32>
    %39 = arith.truncf %38 : vector<32x128xf32> to vector<32x128xbf16>
    %c0_18 = arith.constant 0 : index
    %c0_19 = arith.constant 0 : index
    %40 = vector.load %arg6[%c0_18, %c0_19] : memref<128x128xbf16, #tpu.memory_space<vmem>>, vector<128x128xbf16>
    %cst_20 = arith.constant dense<0.000000e+00> : vector<32x128xf32>
    %41 = tpu.matmul %39, %40, %cst_20 {dimension_numbers = #tpu.dot_dimension_numbers<[1], [0], [0], [1], [0, 0, 1, 1], [], []>} : vector<32x128xbf16>, vector<128x128xbf16>, vector<32x128xf32> -> vector<32x128xf32>
    %c0_21 = arith.constant 0 : index
    %c0_22 = arith.constant 0 : index
    %42 = vector.load %arg7[%c0_21, %c0_22] : memref<1x128xf32, #tpu.memory_space<vmem>>, vector<1x128xf32>
    %43 = vector.broadcast %42 : vector<1x128xf32> to vector<32x128xf32>
    %44 = arith.addf %41, %43 : vector<32x128xf32>
    %cst_23 = arith.constant dense<0.000000e+00> : vector<32xf32>
    %45 = vector.multi_reduction <add>, %44, %cst_23 [1] : vector<32x128xf32> to vector<32xf32>
    %46 = vector.shape_cast %45 : vector<32xf32> to vector<32x1xf32>
    %cst_24 = arith.constant 3.125000e-02 : f32
    %47 = vector.broadcast %cst_24 : f32 to vector<32x1xf32>
    %48 = arith.mulf %46, %47 : vector<32x1xf32>
    %49 = arith.mulf %44, %44 : vector<32x128xf32>
    %cst_25 = arith.constant dense<0.000000e+00> : vector<32xf32>
    %50 = vector.multi_reduction <add>, %49, %cst_25 [1] : vector<32x128xf32> to vector<32xf32>
    %51 = vector.shape_cast %50 : vector<32xf32> to vector<32x1xf32>
    %cst_26 = arith.constant 3.125000e-02 : f32
    %52 = vector.broadcast %cst_26 : f32 to vector<32x1xf32>
    %53 = arith.mulf %51, %52 : vector<32x1xf32>
    %54 = arith.mulf %48, %48 : vector<32x1xf32>
    %55 = arith.subf %53, %54 : vector<32x1xf32>
    %56 = vector.broadcast %48 : vector<32x1xf32> to vector<32x128xf32>
    %57 = arith.subf %44, %56 : vector<32x128xf32>
    %cst_27 = arith.constant 9.99999974E-6 : f32
    %58 = vector.broadcast %cst_27 : f32 to vector<32x1xf32>
    %59 = arith.addf %55, %58 : vector<32x1xf32>
    %60 = math.rsqrt %59 : vector<32x1xf32>
    %61 = vector.broadcast %60 : vector<32x1xf32> to vector<32x128xf32>
    %62 = arith.mulf %57, %61 : vector<32x128xf32>
    %c0_28 = arith.constant 0 : index
    %c0_29 = arith.constant 0 : index
    %63 = vector.load %arg8[%c0_28, %c0_29] : memref<1x128xf32, #tpu.memory_space<vmem>>, vector<1x128xf32>
    %64 = vector.broadcast %63 : vector<1x128xf32> to vector<32x128xf32>
    %65 = arith.mulf %62, %64 : vector<32x128xf32>
    %c0_30 = arith.constant 0 : index
    %c0_31 = arith.constant 0 : index
    %66 = vector.load %arg9[%c0_30, %c0_31] : memref<1x128xf32, #tpu.memory_space<vmem>>, vector<1x128xf32>
    %67 = vector.broadcast %66 : vector<1x128xf32> to vector<32x128xf32>
    %68 = arith.addf %65, %67 : vector<32x128xf32>
    %69 = arith.truncf %68 : vector<32x128xf32> to vector<32x128xbf16>
    %c0_32 = arith.constant 0 : index
    %c0_33 = arith.constant 0 : index
    %70 = vector.load %arg10[%c0_32, %c0_33] : memref<32x128xbf16, #tpu.memory_space<vmem>>, vector<32x128xbf16>
    tpu.vector_store %arg10[%c0_32, %c0_33], %69 {strides = array<i32>} : memref<32x128xbf16, #tpu.memory_space<vmem>>, vector<32x128xbf16>,
    return
  }
  func.func @transform_0(%arg0: i32) -> (i32, i32) {
    %c0_i32 = arith.constant 0 : i32
    %c0_i32_0 = arith.constant 0 : i32
    return %arg0, %c0_i32 : i32, i32
  }
  func.func @transform_1(%arg0: i32) -> (i32, i32) {
    %c0_i32 = arith.constant 0 : i32
    %c0_i32_0 = arith.constant 0 : i32
    %c0_i32_1 = arith.constant 0 : i32
    return %c0_i32, %c0_i32_0 : i32, i32
  }
  func.func @transform_2(%arg0: i32) -> (i32, i32) {
    %c0_i32 = arith.constant 0 : i32
    %c0_i32_0 = arith.constant 0 : i32
    %c0_i32_1 = arith.constant 0 : i32
    return %c0_i32, %c0_i32_0 : i32, i32
  }
  func.func @transform_3(%arg0: i32) -> (i32, i32) {
    %c0_i32 = arith.constant 0 : i32
    %c0_i32_0 = arith.constant 0 : i32
    %c0_i32_1 = arith.constant 0 : i32
    return %c0_i32, %c0_i32_0 : i32, i32
  }
  func.func @transform_4(%arg0: i32) -> (i32, i32) {
    %c0_i32 = arith.constant 0 : i32
    %c0_i32_0 = arith.constant 0 : i32
    %c0_i32_1 = arith.constant 0 : i32
    return %c0_i32, %c0_i32_0 : i32, i32
  }
  func.func @transform_5(%arg0: i32) -> (i32, i32) {
    %c0_i32 = arith.constant 0 : i32
    %c0_i32_0 = arith.constant 0 : i32
    %c0_i32_1 = arith.constant 0 : i32
    return %c0_i32, %c0_i32_0 : i32, i32
  }
  func.func @transform_6(%arg0: i32) -> (i32, i32) {
    %c0_i32 = arith.constant 0 : i32
    %c0_i32_0 = arith.constant 0 : i32
    %c0_i32_1 = arith.constant 0 : i32
    return %c0_i32, %c0_i32_0 : i32, i32
  }
  func.func @transform_7(%arg0: i32) -> (i32, i32) {
    %c0_i32 = arith.constant 0 : i32
    %c0_i32_0 = arith.constant 0 : i32
    %c0_i32_1 = arith.constant 0 : i32
    return %c0_i32, %c0_i32_0 : i32, i32
  }
  func.func @transform_8(%arg0: i32) -> (i32, i32) {
    %c0_i32 = arith.constant 0 : i32
    %c0_i32_0 = arith.constant 0 : i32
    %c0_i32_1 = arith.constant 0 : i32
    return %c0_i32, %c0_i32_0 : i32, i32
  }
  func.func @transform_9(%arg0: i32) -> (i32, i32) {
    %c0_i32 = arith.constant 0 : i32
    %c0_i32_0 = arith.constant 0 : i32
    return %arg0, %c0_i32 : i32, i32
  }
}

module attributes {stable_mosaic.version = 11 : i64} {
  func.func @kernel(%arg0: i32, %arg1: memref<16x5xf32, #tpu.memory_space<vmem>>, %arg2: memref<5x128xbf16, #tpu.memory_space<vmem>>, %arg3: memref<1x128xf32, #tpu.memory_space<vmem>>, %arg4: memref<128x128xbf16, #tpu.memory_space<vmem>>, %arg5: memref<1x128xf32, #tpu.memory_space<vmem>>, %arg6: memref<128x128xbf16, #tpu.memory_space<vmem>>, %arg7: memref<1x128xf32, #tpu.memory_space<vmem>>, %arg8: memref<1x128xf32, #tpu.memory_space<vmem>>, %arg9: memref<1x128xf32, #tpu.memory_space<vmem>>, %arg10: memref<16x128xbf16, #tpu.memory_space<vmem>>) attributes {dimension_semantics = [#tpu.dimension_semantics<parallel>], iteration_bounds = array<i64: 1>, scalar_prefetch = 0 : i64, scratch_operands = 0 : i64, tpu.core_type = #tpu.core_type<tc>, window_params = [{transform_indices = @transform_0, window_bounds = array<i64: 16, 5>}, {pipeline_mode = #tpu.pipeline_mode<synchronous>, transform_indices = @transform_1, window_bounds = array<i64: 5, 128>}, {pipeline_mode = #tpu.pipeline_mode<synchronous>, transform_indices = @transform_2, window_bounds = array<i64: 1, 128>}, {pipeline_mode = #tpu.pipeline_mode<synchronous>, transform_indices = @transform_3, window_bounds = array<i64: 128, 128>}, {pipeline_mode = #tpu.pipeline_mode<synchronous>, transform_indices = @transform_4, window_bounds = array<i64: 1, 128>}, {pipeline_mode = #tpu.pipeline_mode<synchronous>, transform_indices = @transform_5, window_bounds = array<i64: 128, 128>}, {pipeline_mode = #tpu.pipeline_mode<synchronous>, transform_indices = @transform_6, window_bounds = array<i64: 1, 128>}, {pipeline_mode = #tpu.pipeline_mode<synchronous>, transform_indices = @transform_7, window_bounds = array<i64: 1, 128>}, {pipeline_mode = #tpu.pipeline_mode<synchronous>, transform_indices = @transform_8, window_bounds = array<i64: 1, 128>}, {transform_indices = @transform_9, window_bounds = array<i64: 16, 128>}]} {
    %c0 = arith.constant 0 : index
    %c0_0 = arith.constant 0 : index
    %0 = vector.load %arg1[%c0, %c0_0] : memref<16x5xf32, #tpu.memory_space<vmem>>, vector<16x5xf32>
    %1 = arith.truncf %0 : vector<16x5xf32> to vector<16x5xbf16>
    %c0_1 = arith.constant 0 : index
    %c0_2 = arith.constant 0 : index
    %2 = vector.load %arg2[%c0_1, %c0_2] : memref<5x128xbf16, #tpu.memory_space<vmem>>, vector<5x128xbf16>
    %cst = arith.constant dense<0.000000e+00> : vector<16x128xf32>
    %3 = tpu.matmul %1, %2, %cst {dimension_numbers = #tpu.dot_dimension_numbers<[1], [0], [0], [1], [0, 0, 1, 1], [], []>} : vector<16x5xbf16>, vector<5x128xbf16>, vector<16x128xf32> -> vector<16x128xf32>
    %c0_3 = arith.constant 0 : index
    %c0_4 = arith.constant 0 : index
    %4 = vector.load %arg3[%c0_3, %c0_4] : memref<1x128xf32, #tpu.memory_space<vmem>>, vector<1x128xf32>
    %5 = vector.broadcast %4 : vector<1x128xf32> to vector<16x128xf32>
    %6 = arith.addf %3, %5 : vector<16x128xf32>
    %7 = arith.mulf %6, %6 : vector<16x128xf32>
    %8 = arith.mulf %6, %7 : vector<16x128xf32>
    %cst_5 = arith.constant 4.471500e-02 : f32
    %9 = vector.broadcast %cst_5 : f32 to vector<16x128xf32>
    %10 = arith.mulf %9, %8 : vector<16x128xf32>
    %11 = arith.addf %6, %10 : vector<16x128xf32>
    %cst_6 = arith.constant 0.797884583 : f32
    %12 = vector.broadcast %cst_6 : f32 to vector<16x128xf32>
    %13 = arith.mulf %12, %11 : vector<16x128xf32>
    %14 = math.tanh %13 : vector<16x128xf32>
    %cst_7 = arith.constant 1.000000e+00 : f32
    %15 = vector.broadcast %cst_7 : f32 to vector<16x128xf32>
    %16 = arith.addf %15, %14 : vector<16x128xf32>
    %cst_8 = arith.constant 5.000000e-01 : f32
    %17 = vector.broadcast %cst_8 : f32 to vector<16x128xf32>
    %18 = arith.mulf %17, %16 : vector<16x128xf32>
    %19 = arith.mulf %6, %18 : vector<16x128xf32>
    %20 = arith.truncf %19 : vector<16x128xf32> to vector<16x128xbf16>
    %c0_9 = arith.constant 0 : index
    %c0_10 = arith.constant 0 : index
    %21 = vector.load %arg4[%c0_9, %c0_10] : memref<128x128xbf16, #tpu.memory_space<vmem>>, vector<128x128xbf16>
    %cst_11 = arith.constant dense<0.000000e+00> : vector<16x128xf32>
    %22 = tpu.matmul %20, %21, %cst_11 {dimension_numbers = #tpu.dot_dimension_numbers<[1], [0], [0], [1], [0, 0, 1, 1], [], []>} : vector<16x128xbf16>, vector<128x128xbf16>, vector<16x128xf32> -> vector<16x128xf32>
    %c0_12 = arith.constant 0 : index
    %c0_13 = arith.constant 0 : index
    %23 = vector.load %arg5[%c0_12, %c0_13] : memref<1x128xf32, #tpu.memory_space<vmem>>, vector<1x128xf32>
    %24 = vector.broadcast %23 : vector<1x128xf32> to vector<16x128xf32>
    %25 = arith.addf %22, %24 : vector<16x128xf32>
    %26 = arith.mulf %25, %25 : vector<16x128xf32>
    %27 = arith.mulf %25, %26 : vector<16x128xf32>
    %cst_14 = arith.constant 4.471500e-02 : f32
    %28 = vector.broadcast %cst_14 : f32 to vector<16x128xf32>
    %29 = arith.mulf %28, %27 : vector<16x128xf32>
    %30 = arith.addf %25, %29 : vector<16x128xf32>
    %cst_15 = arith.constant 0.797884583 : f32
    %31 = vector.broadcast %cst_15 : f32 to vector<16x128xf32>
    %32 = arith.mulf %31, %30 : vector<16x128xf32>
    %33 = math.tanh %32 : vector<16x128xf32>
    %cst_16 = arith.constant 1.000000e+00 : f32
    %34 = vector.broadcast %cst_16 : f32 to vector<16x128xf32>
    %35 = arith.addf %34, %33 : vector<16x128xf32>
    %cst_17 = arith.constant 5.000000e-01 : f32
    %36 = vector.broadcast %cst_17 : f32 to vector<16x128xf32>
    %37 = arith.mulf %36, %35 : vector<16x128xf32>
    %38 = arith.mulf %25, %37 : vector<16x128xf32>
    %39 = arith.truncf %38 : vector<16x128xf32> to vector<16x128xbf16>
    %c0_18 = arith.constant 0 : index
    %c0_19 = arith.constant 0 : index
    %40 = vector.load %arg6[%c0_18, %c0_19] : memref<128x128xbf16, #tpu.memory_space<vmem>>, vector<128x128xbf16>
    %cst_20 = arith.constant dense<0.000000e+00> : vector<16x128xf32>
    %41 = tpu.matmul %39, %40, %cst_20 {dimension_numbers = #tpu.dot_dimension_numbers<[1], [0], [0], [1], [0, 0, 1, 1], [], []>} : vector<16x128xbf16>, vector<128x128xbf16>, vector<16x128xf32> -> vector<16x128xf32>
    %c0_21 = arith.constant 0 : index
    %c0_22 = arith.constant 0 : index
    %42 = vector.load %arg7[%c0_21, %c0_22] : memref<1x128xf32, #tpu.memory_space<vmem>>, vector<1x128xf32>
    %43 = vector.broadcast %42 : vector<1x128xf32> to vector<16x128xf32>
    %44 = arith.addf %41, %43 : vector<16x128xf32>
    %cst_23 = arith.constant dense<0.000000e+00> : vector<16xf32>
    %45 = vector.multi_reduction <add>, %44, %cst_23 [1] : vector<16x128xf32> to vector<16xf32>
    %46 = vector.shape_cast %45 : vector<16xf32> to vector<16x1xf32>
    %cst_24 = arith.constant 3.125000e-02 : f32
    %47 = vector.broadcast %cst_24 : f32 to vector<16x1xf32>
    %48 = arith.mulf %46, %47 : vector<16x1xf32>
    %49 = arith.mulf %44, %44 : vector<16x128xf32>
    %cst_25 = arith.constant dense<0.000000e+00> : vector<16xf32>
    %50 = vector.multi_reduction <add>, %49, %cst_25 [1] : vector<16x128xf32> to vector<16xf32>
    %51 = vector.shape_cast %50 : vector<16xf32> to vector<16x1xf32>
    %cst_26 = arith.constant 3.125000e-02 : f32
    %52 = vector.broadcast %cst_26 : f32 to vector<16x1xf32>
    %53 = arith.mulf %51, %52 : vector<16x1xf32>
    %54 = arith.mulf %48, %48 : vector<16x1xf32>
    %55 = arith.subf %53, %54 : vector<16x1xf32>
    %56 = vector.broadcast %48 : vector<16x1xf32> to vector<16x128xf32>
    %57 = arith.subf %44, %56 : vector<16x128xf32>
    %cst_27 = arith.constant 9.99999974E-6 : f32
    %58 = vector.broadcast %cst_27 : f32 to vector<16x1xf32>
    %59 = arith.addf %55, %58 : vector<16x1xf32>
    %60 = math.rsqrt %59 : vector<16x1xf32>
    %61 = vector.broadcast %60 : vector<16x1xf32> to vector<16x128xf32>
    %62 = arith.mulf %57, %61 : vector<16x128xf32>
    %c0_28 = arith.constant 0 : index
    %c0_29 = arith.constant 0 : index
    %63 = vector.load %arg8[%c0_28, %c0_29] : memref<1x128xf32, #tpu.memory_space<vmem>>, vector<1x128xf32>
    %64 = vector.broadcast %63 : vector<1x128xf32> to vector<16x128xf32>
    %65 = arith.mulf %62, %64 : vector<16x128xf32>
    %c0_30 = arith.constant 0 : index
    %c0_31 = arith.constant 0 : index
    %66 = vector.load %arg9[%c0_30, %c0_31] : memref<1x128xf32, #tpu.memory_space<vmem>>, vector<1x128xf32>
    %67 = vector.broadcast %66 : vector<1x128xf32> to vector<16x128xf32>
    %68 = arith.addf %65, %67 : vector<16x128xf32>
    %69 = arith.truncf %68 : vector<16x128xf32> to vector<16x128xbf16>
    %c0_32 = arith.constant 0 : index
    %c0_33 = arith.constant 0 : index
    %70 = vector.load %arg10[%c0_32, %c0_33] : memref<16x128xbf16, #tpu.memory_space<vmem>>, vector<16x128xbf16>
    tpu.vector_store %arg10[%c0_32, %c0_33], %69 {strides = array<i32>} : memref<16x128xbf16, #tpu.memory_space<vmem>>, vector<16x128xbf16>,
    return
  }
  func.func @transform_0(%arg0: i32) -> (i32, i32) {
    %c0_i32 = arith.constant 0 : i32
    %c0_i32_0 = arith.constant 0 : i32
    return %arg0, %c0_i32 : i32, i32
  }
  func.func @transform_1(%arg0: i32) -> (i32, i32) {
    %c0_i32 = arith.constant 0 : i32
    %c0_i32_0 = arith.constant 0 : i32
    %c0_i32_1 = arith.constant 0 : i32
    return %c0_i32, %c0_i32_0 : i32, i32
  }
  func.func @transform_2(%arg0: i32) -> (i32, i32) {
    %c0_i32 = arith.constant 0 : i32
    %c0_i32_0 = arith.constant 0 : i32
    %c0_i32_1 = arith.constant 0 : i32
    return %c0_i32, %c0_i32_0 : i32, i32
  }
  func.func @transform_3(%arg0: i32) -> (i32, i32) {
    %c0_i32 = arith.constant 0 : i32
    %c0_i32_0 = arith.constant 0 : i32
    %c0_i32_1 = arith.constant 0 : i32
    return %c0_i32, %c0_i32_0 : i32, i32
  }
  func.func @transform_4(%arg0: i32) -> (i32, i32) {
    %c0_i32 = arith.constant 0 : i32
    %c0_i32_0 = arith.constant 0 : i32
    %c0_i32_1 = arith.constant 0 : i32
    return %c0_i32, %c0_i32_0 : i32, i32
  }
  func.func @transform_5(%arg0: i32) -> (i32, i32) {
    %c0_i32 = arith.constant 0 : i32
    %c0_i32_0 = arith.constant 0 : i32
    %c0_i32_1 = arith.constant 0 : i32
    return %c0_i32, %c0_i32_0 : i32, i32
  }
  func.func @transform_6(%arg0: i32) -> (i32, i32) {
    %c0_i32 = arith.constant 0 : i32
    %c0_i32_0 = arith.constant 0 : i32
    %c0_i32_1 = arith.constant 0 : i32
    return %c0_i32, %c0_i32_0 : i32, i32
  }
  func.func @transform_7(%arg0: i32) -> (i32, i32) {
    %c0_i32 = arith.constant 0 : i32
    %c0_i32_0 = arith.constant 0 : i32
    %c0_i32_1 = arith.constant 0 : i32
    return %c0_i32, %c0_i32_0 : i32, i32
  }
  func.func @transform_8(%arg0: i32) -> (i32, i32) {
    %c0_i32 = arith.constant 0 : i32
    %c0_i32_0 = arith.constant 0 : i32
    %c0_i32_1 = arith.constant 0 : i32
    return %c0_i32, %c0_i32_0 : i32, i32
  }
  func.func @transform_9(%arg0: i32) -> (i32, i32) {
    %c0_i32 = arith.constant 0 : i32
    %c0_i32_0 = arith.constant 0 : i32
    return %arg0, %c0_i32 : i32, i32
  }
}

module attributes {stable_mosaic.version = 11 : i64} {
  func.func @kernel(%arg0: i32, %arg1: i32, %arg2: memref<1x16x128xbf16, #tpu.memory_space<vmem>>, %arg3: memref<1x16x128xbf16, #tpu.memory_space<vmem>>, %arg4: memref<16x128xbf16, #tpu.memory_space<vmem>>, %arg5: memref<384x128xbf16, #tpu.memory_space<vmem>>, %arg6: memref<1x128xf32, #tpu.memory_space<vmem>>, %arg7: memref<128x128xbf16, #tpu.memory_space<vmem>>, %arg8: memref<1x128xf32, #tpu.memory_space<vmem>>, %arg9: memref<128x128xbf16, #tpu.memory_space<vmem>>, %arg10: memref<1x128xf32, #tpu.memory_space<vmem>>, %arg11: memref<1x128xf32, #tpu.memory_space<vmem>>, %arg12: memref<1x128xf32, #tpu.memory_space<vmem>>, %arg13: memref<16x128xbf16, #tpu.memory_space<vmem>>, %arg14: memref<16x128xf32, #tpu.memory_space<vmem>>) attributes {dimension_semantics = [#tpu.dimension_semantics<parallel>, #tpu.dimension_semantics<arbitrary>], iteration_bounds = array<i64: 1, 4>, scalar_prefetch = 0 : i64, scratch_operands = 1 : i64, tpu.core_type = #tpu.core_type<tc>, window_params = [{transform_indices = @transform_0, window_bounds = array<i64: 1, 16, 128>}, {transform_indices = @transform_1, window_bounds = array<i64: 1, 16, 128>}, {transform_indices = @transform_2, window_bounds = array<i64: 16, 128>}, {pipeline_mode = #tpu.pipeline_mode<synchronous>, transform_indices = @transform_3, window_bounds = array<i64: 384, 128>}, {pipeline_mode = #tpu.pipeline_mode<synchronous>, transform_indices = @transform_4, window_bounds = array<i64: 1, 128>}, {pipeline_mode = #tpu.pipeline_mode<synchronous>, transform_indices = @transform_5, window_bounds = array<i64: 128, 128>}, {pipeline_mode = #tpu.pipeline_mode<synchronous>, transform_indices = @transform_6, window_bounds = array<i64: 1, 128>}, {pipeline_mode = #tpu.pipeline_mode<synchronous>, transform_indices = @transform_7, window_bounds = array<i64: 128, 128>}, {pipeline_mode = #tpu.pipeline_mode<synchronous>, transform_indices = @transform_8, window_bounds = array<i64: 1, 128>}, {pipeline_mode = #tpu.pipeline_mode<synchronous>, transform_indices = @transform_9, window_bounds = array<i64: 1, 128>}, {pipeline_mode = #tpu.pipeline_mode<synchronous>, transform_indices = @transform_10, window_bounds = array<i64: 1, 128>}, {transform_indices = @transform_11, window_bounds = array<i64: 16, 128>}]} {
    %c0 = arith.constant 0 : index
    %c0_0 = arith.constant 0 : index
    %c0_1 = arith.constant 0 : index
    %0 = vector.load %arg2[%c0, %c0_0, %c0_1] : memref<1x16x128xbf16, #tpu.memory_space<vmem>>, vector<1x16x128xbf16>
    %1 = vector.shape_cast %0 : vector<1x16x128xbf16> to vector<16x128xbf16>
    %c0_2 = arith.constant 0 : index
    %c0_3 = arith.constant 0 : index
    %c0_4 = arith.constant 0 : index
    %2 = vector.load %arg3[%c0_2, %c0_3, %c0_4] : memref<1x16x128xbf16, #tpu.memory_space<vmem>>, vector<1x16x128xbf16>
    %3 = vector.shape_cast %2 : vector<1x16x128xbf16> to vector<16x128xbf16>
    %c0_5 = arith.constant 0 : index
    %c0_6 = arith.constant 0 : index
    %4 = vector.load %arg4[%c0_5, %c0_6] : memref<16x128xbf16, #tpu.memory_space<vmem>>, vector<16x128xbf16>
    %5 = tpu.concatenate %1, %3, %4 in 1 : vector<16x128xbf16>, vector<16x128xbf16>, vector<16x128xbf16> -> vector<16x384xbf16>
    %c0_7 = arith.constant 0 : index
    %c0_8 = arith.constant 0 : index
    %6 = vector.load %arg5[%c0_7, %c0_8] : memref<384x128xbf16, #tpu.memory_space<vmem>>, vector<384x128xbf16>
    %cst = arith.constant dense<0.000000e+00> : vector<16x128xf32>
    %7 = tpu.matmul %5, %6, %cst {dimension_numbers = #tpu.dot_dimension_numbers<[1], [0], [0], [1], [0, 0, 1, 1], [], []>} : vector<16x384xbf16>, vector<384x128xbf16>, vector<16x128xf32> -> vector<16x128xf32>
    %c0_9 = arith.constant 0 : index
    %c0_10 = arith.constant 0 : index
    %8 = vector.load %arg6[%c0_9, %c0_10] : memref<1x128xf32, #tpu.memory_space<vmem>>, vector<1x128xf32>
    %9 = vector.broadcast %8 : vector<1x128xf32> to vector<16x128xf32>
    %10 = arith.addf %7, %9 : vector<16x128xf32>
    %11 = arith.mulf %10, %10 : vector<16x128xf32>
    %12 = arith.mulf %10, %11 : vector<16x128xf32>
    %cst_11 = arith.constant 4.471500e-02 : f32
    %13 = vector.broadcast %cst_11 : f32 to vector<16x128xf32>
    %14 = arith.mulf %13, %12 : vector<16x128xf32>
    %15 = arith.addf %10, %14 : vector<16x128xf32>
    %cst_12 = arith.constant 0.797884583 : f32
    %16 = vector.broadcast %cst_12 : f32 to vector<16x128xf32>
    %17 = arith.mulf %16, %15 : vector<16x128xf32>
    %18 = math.tanh %17 : vector<16x128xf32>
    %cst_13 = arith.constant 1.000000e+00 : f32
    %19 = vector.broadcast %cst_13 : f32 to vector<16x128xf32>
    %20 = arith.addf %19, %18 : vector<16x128xf32>
    %cst_14 = arith.constant 5.000000e-01 : f32
    %21 = vector.broadcast %cst_14 : f32 to vector<16x128xf32>
    %22 = arith.mulf %21, %20 : vector<16x128xf32>
    %23 = arith.mulf %10, %22 : vector<16x128xf32>
    %24 = arith.truncf %23 : vector<16x128xf32> to vector<16x128xbf16>
    %c0_15 = arith.constant 0 : index
    %c0_16 = arith.constant 0 : index
    %25 = vector.load %arg7[%c0_15, %c0_16] : memref<128x128xbf16, #tpu.memory_space<vmem>>, vector<128x128xbf16>
    %cst_17 = arith.constant dense<0.000000e+00> : vector<16x128xf32>
    %26 = tpu.matmul %24, %25, %cst_17 {dimension_numbers = #tpu.dot_dimension_numbers<[1], [0], [0], [1], [0, 0, 1, 1], [], []>} : vector<16x128xbf16>, vector<128x128xbf16>, vector<16x128xf32> -> vector<16x128xf32>
    %c0_18 = arith.constant 0 : index
    %c0_19 = arith.constant 0 : index
    %27 = vector.load %arg8[%c0_18, %c0_19] : memref<1x128xf32, #tpu.memory_space<vmem>>, vector<1x128xf32>
    %28 = vector.broadcast %27 : vector<1x128xf32> to vector<16x128xf32>
    %29 = arith.addf %26, %28 : vector<16x128xf32>
    %30 = arith.mulf %29, %29 : vector<16x128xf32>
    %31 = arith.mulf %29, %30 : vector<16x128xf32>
    %cst_20 = arith.constant 4.471500e-02 : f32
    %32 = vector.broadcast %cst_20 : f32 to vector<16x128xf32>
    %33 = arith.mulf %32, %31 : vector<16x128xf32>
    %34 = arith.addf %29, %33 : vector<16x128xf32>
    %cst_21 = arith.constant 0.797884583 : f32
    %35 = vector.broadcast %cst_21 : f32 to vector<16x128xf32>
    %36 = arith.mulf %35, %34 : vector<16x128xf32>
    %37 = math.tanh %36 : vector<16x128xf32>
    %cst_22 = arith.constant 1.000000e+00 : f32
    %38 = vector.broadcast %cst_22 : f32 to vector<16x128xf32>
    %39 = arith.addf %38, %37 : vector<16x128xf32>
    %cst_23 = arith.constant 5.000000e-01 : f32
    %40 = vector.broadcast %cst_23 : f32 to vector<16x128xf32>
    %41 = arith.mulf %40, %39 : vector<16x128xf32>
    %42 = arith.mulf %29, %41 : vector<16x128xf32>
    %43 = arith.truncf %42 : vector<16x128xf32> to vector<16x128xbf16>
    %c0_24 = arith.constant 0 : index
    %c0_25 = arith.constant 0 : index
    %44 = vector.load %arg9[%c0_24, %c0_25] : memref<128x128xbf16, #tpu.memory_space<vmem>>, vector<128x128xbf16>
    %cst_26 = arith.constant dense<0.000000e+00> : vector<16x128xf32>
    %45 = tpu.matmul %43, %44, %cst_26 {dimension_numbers = #tpu.dot_dimension_numbers<[1], [0], [0], [1], [0, 0, 1, 1], [], []>} : vector<16x128xbf16>, vector<128x128xbf16>, vector<16x128xf32> -> vector<16x128xf32>
    %c0_27 = arith.constant 0 : index
    %c0_28 = arith.constant 0 : index
    %46 = vector.load %arg10[%c0_27, %c0_28] : memref<1x128xf32, #tpu.memory_space<vmem>>, vector<1x128xf32>
    %47 = vector.broadcast %46 : vector<1x128xf32> to vector<16x128xf32>
    %48 = arith.addf %45, %47 : vector<16x128xf32>
    %cst_29 = arith.constant dense<0.000000e+00> : vector<16xf32>
    %49 = vector.multi_reduction <add>, %48, %cst_29 [1] : vector<16x128xf32> to vector<16xf32>
    %50 = vector.shape_cast %49 : vector<16xf32> to vector<16x1xf32>
    %cst_30 = arith.constant 3.125000e-02 : f32
    %51 = vector.broadcast %cst_30 : f32 to vector<16x1xf32>
    %52 = arith.mulf %50, %51 : vector<16x1xf32>
    %53 = arith.mulf %48, %48 : vector<16x128xf32>
    %cst_31 = arith.constant dense<0.000000e+00> : vector<16xf32>
    %54 = vector.multi_reduction <add>, %53, %cst_31 [1] : vector<16x128xf32> to vector<16xf32>
    %55 = vector.shape_cast %54 : vector<16xf32> to vector<16x1xf32>
    %cst_32 = arith.constant 3.125000e-02 : f32
    %56 = vector.broadcast %cst_32 : f32 to vector<16x1xf32>
    %57 = arith.mulf %55, %56 : vector<16x1xf32>
    %58 = arith.mulf %52, %52 : vector<16x1xf32>
    %59 = arith.subf %57, %58 : vector<16x1xf32>
    %60 = vector.broadcast %52 : vector<16x1xf32> to vector<16x128xf32>
    %61 = arith.subf %48, %60 : vector<16x128xf32>
    %cst_33 = arith.constant 9.99999974E-6 : f32
    %62 = vector.broadcast %cst_33 : f32 to vector<16x1xf32>
    %63 = arith.addf %59, %62 : vector<16x1xf32>
    %64 = math.rsqrt %63 : vector<16x1xf32>
    %65 = vector.broadcast %64 : vector<16x1xf32> to vector<16x128xf32>
    %66 = arith.mulf %61, %65 : vector<16x128xf32>
    %c0_34 = arith.constant 0 : index
    %c0_35 = arith.constant 0 : index
    %67 = vector.load %arg11[%c0_34, %c0_35] : memref<1x128xf32, #tpu.memory_space<vmem>>, vector<1x128xf32>
    %68 = vector.broadcast %67 : vector<1x128xf32> to vector<16x128xf32>
    %69 = arith.mulf %66, %68 : vector<16x128xf32>
    %c0_36 = arith.constant 0 : index
    %c0_37 = arith.constant 0 : index
    %70 = vector.load %arg12[%c0_36, %c0_37] : memref<1x128xf32, #tpu.memory_space<vmem>>, vector<1x128xf32>
    %71 = vector.broadcast %70 : vector<1x128xf32> to vector<16x128xf32>
    %72 = arith.addf %69, %71 : vector<16x128xf32>
    %c0_i32 = arith.constant 0 : i32
    %73 = arith.cmpi eq, %arg1, %c0_i32 : i32
    %74 = arith.extui %73 : i1 to i32
    %c0_i32_38 = arith.constant 0 : i32
    %75 = arith.cmpi ne, %74, %c0_i32_38 : i32
    scf.if %75 {
      %c0_42 = arith.constant 0 : index
      %c0_43 = arith.constant 0 : index
      %82 = vector.load %arg14[%c0_42, %c0_43] : memref<16x128xf32, #tpu.memory_space<vmem>>, vector<16x128xf32>
      tpu.vector_store %arg14[%c0_42, %c0_43], %72 {strides = array<i32>} : memref<16x128xf32, #tpu.memory_space<vmem>>, vector<16x128xf32>,
    } else {
    }
    %c0_i32_39 = arith.constant 0 : i32
    %76 = arith.cmpi sgt, %arg1, %c0_i32_39 : i32
    %77 = arith.extui %76 : i1 to i32
    %c0_i32_40 = arith.constant 0 : i32
    %78 = arith.cmpi ne, %77, %c0_i32_40 : i32
    scf.if %78 {
      %c0_42 = arith.constant 0 : index
      %c0_43 = arith.constant 0 : index
      %82 = vector.load %arg14[%c0_42, %c0_43] : memref<16x128xf32, #tpu.memory_space<vmem>>, vector<16x128xf32>
      %83 = arith.addf %82, %72 : vector<16x128xf32>
      %c0_44 = arith.constant 0 : index
      %c0_45 = arith.constant 0 : index
      %84 = vector.load %arg14[%c0_44, %c0_45] : memref<16x128xf32, #tpu.memory_space<vmem>>, vector<16x128xf32>
      tpu.vector_store %arg14[%c0_44, %c0_45], %83 {strides = array<i32>} : memref<16x128xf32, #tpu.memory_space<vmem>>, vector<16x128xf32>,
    } else {
    }
    %c3_i32 = arith.constant 3 : i32
    %79 = arith.cmpi eq, %arg1, %c3_i32 : i32
    %80 = arith.extui %79 : i1 to i32
    %c0_i32_41 = arith.constant 0 : i32
    %81 = arith.cmpi ne, %80, %c0_i32_41 : i32
    scf.if %81 {
      %c0_42 = arith.constant 0 : index
      %c0_43 = arith.constant 0 : index
      %82 = vector.load %arg14[%c0_42, %c0_43] : memref<16x128xf32, #tpu.memory_space<vmem>>, vector<16x128xf32>
      %cst_44 = arith.constant 2.500000e-01 : f32
      %83 = vector.broadcast %cst_44 : f32 to vector<16x128xf32>
      %84 = arith.mulf %82, %83 : vector<16x128xf32>
      %c0_45 = arith.constant 0 : index
      %c0_46 = arith.constant 0 : index
      %85 = vector.load %arg4[%c0_45, %c0_46] : memref<16x128xbf16, #tpu.memory_space<vmem>>, vector<16x128xbf16>
      %86 = arith.extf %85 : vector<16x128xbf16> to vector<16x128xf32>
      %87 = arith.addf %84, %86 : vector<16x128xf32>
      %88 = arith.truncf %87 : vector<16x128xf32> to vector<16x128xbf16>
      %c0_47 = arith.constant 0 : index
      %c0_48 = arith.constant 0 : index
      %89 = vector.load %arg13[%c0_47, %c0_48] : memref<16x128xbf16, #tpu.memory_space<vmem>>, vector<16x128xbf16>
      tpu.vector_store %arg13[%c0_47, %c0_48], %88 {strides = array<i32>} : memref<16x128xbf16, #tpu.memory_space<vmem>>, vector<16x128xbf16>,
    } else {
    }
    return
  }
  func.func @transform_0(%arg0: i32, %arg1: i32) -> (i32, i32, i32) {
    %c0_i32 = arith.constant 0 : i32
    %c0_i32_0 = arith.constant 0 : i32
    return %arg1, %arg0, %c0_i32 : i32, i32, i32
  }
  func.func @transform_1(%arg0: i32, %arg1: i32) -> (i32, i32, i32) {
    %c0_i32 = arith.constant 0 : i32
    %c0_i32_0 = arith.constant 0 : i32
    return %arg1, %arg0, %c0_i32 : i32, i32, i32
  }
  func.func @transform_2(%arg0: i32, %arg1: i32) -> (i32, i32) {
    %c0_i32 = arith.constant 0 : i32
    %c0_i32_0 = arith.constant 0 : i32
    return %arg0, %c0_i32 : i32, i32
  }
  func.func @transform_3(%arg0: i32, %arg1: i32) -> (i32, i32) {
    %c0_i32 = arith.constant 0 : i32
    %c0_i32_0 = arith.constant 0 : i32
    %c0_i32_1 = arith.constant 0 : i32
    return %c0_i32, %c0_i32_0 : i32, i32
  }
  func.func @transform_4(%arg0: i32, %arg1: i32) -> (i32, i32) {
    %c0_i32 = arith.constant 0 : i32
    %c0_i32_0 = arith.constant 0 : i32
    %c0_i32_1 = arith.constant 0 : i32
    return %c0_i32, %c0_i32_0 : i32, i32
  }
  func.func @transform_5(%arg0: i32, %arg1: i32) -> (i32, i32) {
    %c0_i32 = arith.constant 0 : i32
    %c0_i32_0 = arith.constant 0 : i32
    %c0_i32_1 = arith.constant 0 : i32
    return %c0_i32, %c0_i32_0 : i32, i32
  }
  func.func @transform_6(%arg0: i32, %arg1: i32) -> (i32, i32) {
    %c0_i32 = arith.constant 0 : i32
    %c0_i32_0 = arith.constant 0 : i32
    %c0_i32_1 = arith.constant 0 : i32
    return %c0_i32, %c0_i32_0 : i32, i32
  }
  func.func @transform_7(%arg0: i32, %arg1: i32) -> (i32, i32) {
    %c0_i32 = arith.constant 0 : i32
    %c0_i32_0 = arith.constant 0 : i32
    %c0_i32_1 = arith.constant 0 : i32
    return %c0_i32, %c0_i32_0 : i32, i32
  }
  func.func @transform_8(%arg0: i32, %arg1: i32) -> (i32, i32) {
    %c0_i32 = arith.constant 0 : i32
    %c0_i32_0 = arith.constant 0 : i32
    %c0_i32_1 = arith.constant 0 : i32
    return %c0_i32, %c0_i32_0 : i32, i32
  }
  func.func @transform_9(%arg0: i32, %arg1: i32) -> (i32, i32) {
    %c0_i32 = arith.constant 0 : i32
    %c0_i32_0 = arith.constant 0 : i32
    %c0_i32_1 = arith.constant 0 : i32
    return %c0_i32, %c0_i32_0 : i32, i32
  }
  func.func @transform_10(%arg0: i32, %arg1: i32) -> (i32, i32) {
    %c0_i32 = arith.constant 0 : i32
    %c0_i32_0 = arith.constant 0 : i32
    %c0_i32_1 = arith.constant 0 : i32
    return %c0_i32, %c0_i32_0 : i32, i32
  }
  func.func @transform_11(%arg0: i32, %arg1: i32) -> (i32, i32) {
    %c0_i32 = arith.constant 0 : i32
    %c0_i32_0 = arith.constant 0 : i32
    return %arg0, %c0_i32 : i32, i32
  }
}

module attributes {stable_mosaic.version = 11 : i64} {
  func.func @kernel(%arg0: i32, %arg1: memref<16x128xbf16, #tpu.memory_space<vmem>>, %arg2: memref<128x128xbf16, #tpu.memory_space<vmem>>, %arg3: memref<1x128xf32, #tpu.memory_space<vmem>>, %arg4: memref<128x128xbf16, #tpu.memory_space<vmem>>, %arg5: memref<1x128xf32, #tpu.memory_space<vmem>>, %arg6: memref<128x128xbf16, #tpu.memory_space<vmem>>, %arg7: memref<1x128xf32, #tpu.memory_space<vmem>>, %arg8: memref<16x128xf32, #tpu.memory_space<vmem>>) attributes {dimension_semantics = [#tpu.dimension_semantics<parallel>], iteration_bounds = array<i64: 2>, scalar_prefetch = 0 : i64, scratch_operands = 0 : i64, tpu.core_type = #tpu.core_type<tc>, window_params = [{transform_indices = @transform_0, window_bounds = array<i64: 16, 128>}, {pipeline_mode = #tpu.pipeline_mode<synchronous>, transform_indices = @transform_1, window_bounds = array<i64: 128, 128>}, {pipeline_mode = #tpu.pipeline_mode<synchronous>, transform_indices = @transform_2, window_bounds = array<i64: 1, 128>}, {pipeline_mode = #tpu.pipeline_mode<synchronous>, transform_indices = @transform_3, window_bounds = array<i64: 128, 128>}, {pipeline_mode = #tpu.pipeline_mode<synchronous>, transform_indices = @transform_4, window_bounds = array<i64: 1, 128>}, {pipeline_mode = #tpu.pipeline_mode<synchronous>, transform_indices = @transform_5, window_bounds = array<i64: 128, 128>}, {pipeline_mode = #tpu.pipeline_mode<synchronous>, transform_indices = @transform_6, window_bounds = array<i64: 1, 128>}, {transform_indices = @transform_7, window_bounds = array<i64: 16, 128>}]} {
    %c0 = arith.constant 0 : index
    %c0_0 = arith.constant 0 : index
    %0 = vector.load %arg1[%c0, %c0_0] : memref<16x128xbf16, #tpu.memory_space<vmem>>, vector<16x128xbf16>
    %c0_1 = arith.constant 0 : index
    %c0_2 = arith.constant 0 : index
    %1 = vector.load %arg2[%c0_1, %c0_2] : memref<128x128xbf16, #tpu.memory_space<vmem>>, vector<128x128xbf16>
    %cst = arith.constant dense<0.000000e+00> : vector<16x128xf32>
    %2 = tpu.matmul %0, %1, %cst {dimension_numbers = #tpu.dot_dimension_numbers<[1], [0], [0], [1], [0, 0, 1, 1], [], []>} : vector<16x128xbf16>, vector<128x128xbf16>, vector<16x128xf32> -> vector<16x128xf32>
    %c0_3 = arith.constant 0 : index
    %c0_4 = arith.constant 0 : index
    %3 = vector.load %arg3[%c0_3, %c0_4] : memref<1x128xf32, #tpu.memory_space<vmem>>, vector<1x128xf32>
    %4 = vector.broadcast %3 : vector<1x128xf32> to vector<16x128xf32>
    %5 = arith.addf %2, %4 : vector<16x128xf32>
    %6 = arith.mulf %5, %5 : vector<16x128xf32>
    %7 = arith.mulf %5, %6 : vector<16x128xf32>
    %cst_5 = arith.constant 4.471500e-02 : f32
    %8 = vector.broadcast %cst_5 : f32 to vector<16x128xf32>
    %9 = arith.mulf %8, %7 : vector<16x128xf32>
    %10 = arith.addf %5, %9 : vector<16x128xf32>
    %cst_6 = arith.constant 0.797884583 : f32
    %11 = vector.broadcast %cst_6 : f32 to vector<16x128xf32>
    %12 = arith.mulf %11, %10 : vector<16x128xf32>
    %13 = math.tanh %12 : vector<16x128xf32>
    %cst_7 = arith.constant 1.000000e+00 : f32
    %14 = vector.broadcast %cst_7 : f32 to vector<16x128xf32>
    %15 = arith.addf %14, %13 : vector<16x128xf32>
    %cst_8 = arith.constant 5.000000e-01 : f32
    %16 = vector.broadcast %cst_8 : f32 to vector<16x128xf32>
    %17 = arith.mulf %16, %15 : vector<16x128xf32>
    %18 = arith.mulf %5, %17 : vector<16x128xf32>
    %19 = arith.truncf %18 : vector<16x128xf32> to vector<16x128xbf16>
    %c0_9 = arith.constant 0 : index
    %c0_10 = arith.constant 0 : index
    %20 = vector.load %arg4[%c0_9, %c0_10] : memref<128x128xbf16, #tpu.memory_space<vmem>>, vector<128x128xbf16>
    %cst_11 = arith.constant dense<0.000000e+00> : vector<16x128xf32>
    %21 = tpu.matmul %19, %20, %cst_11 {dimension_numbers = #tpu.dot_dimension_numbers<[1], [0], [0], [1], [0, 0, 1, 1], [], []>} : vector<16x128xbf16>, vector<128x128xbf16>, vector<16x128xf32> -> vector<16x128xf32>
    %c0_12 = arith.constant 0 : index
    %c0_13 = arith.constant 0 : index
    %22 = vector.load %arg5[%c0_12, %c0_13] : memref<1x128xf32, #tpu.memory_space<vmem>>, vector<1x128xf32>
    %23 = vector.broadcast %22 : vector<1x128xf32> to vector<16x128xf32>
    %24 = arith.addf %21, %23 : vector<16x128xf32>
    %25 = arith.mulf %24, %24 : vector<16x128xf32>
    %26 = arith.mulf %24, %25 : vector<16x128xf32>
    %cst_14 = arith.constant 4.471500e-02 : f32
    %27 = vector.broadcast %cst_14 : f32 to vector<16x128xf32>
    %28 = arith.mulf %27, %26 : vector<16x128xf32>
    %29 = arith.addf %24, %28 : vector<16x128xf32>
    %cst_15 = arith.constant 0.797884583 : f32
    %30 = vector.broadcast %cst_15 : f32 to vector<16x128xf32>
    %31 = arith.mulf %30, %29 : vector<16x128xf32>
    %32 = math.tanh %31 : vector<16x128xf32>
    %cst_16 = arith.constant 1.000000e+00 : f32
    %33 = vector.broadcast %cst_16 : f32 to vector<16x128xf32>
    %34 = arith.addf %33, %32 : vector<16x128xf32>
    %cst_17 = arith.constant 5.000000e-01 : f32
    %35 = vector.broadcast %cst_17 : f32 to vector<16x128xf32>
    %36 = arith.mulf %35, %34 : vector<16x128xf32>
    %37 = arith.mulf %24, %36 : vector<16x128xf32>
    %38 = arith.truncf %37 : vector<16x128xf32> to vector<16x128xbf16>
    %c0_18 = arith.constant 0 : index
    %c0_19 = arith.constant 0 : index
    %39 = vector.load %arg6[%c0_18, %c0_19] : memref<128x128xbf16, #tpu.memory_space<vmem>>, vector<128x128xbf16>
    %cst_20 = arith.constant dense<0.000000e+00> : vector<16x128xf32>
    %40 = tpu.matmul %38, %39, %cst_20 {dimension_numbers = #tpu.dot_dimension_numbers<[1], [0], [0], [1], [0, 0, 1, 1], [], []>} : vector<16x128xbf16>, vector<128x128xbf16>, vector<16x128xf32> -> vector<16x128xf32>
    %c0_21 = arith.constant 0 : index
    %c0_22 = arith.constant 0 : index
    %41 = vector.load %arg7[%c0_21, %c0_22] : memref<1x128xf32, #tpu.memory_space<vmem>>, vector<1x128xf32>
    %42 = vector.broadcast %41 : vector<1x128xf32> to vector<16x128xf32>
    %43 = arith.addf %40, %42 : vector<16x128xf32>
    %c0_23 = arith.constant 0 : index
    %c0_24 = arith.constant 0 : index
    %44 = vector.load %arg8[%c0_23, %c0_24] : memref<16x128xf32, #tpu.memory_space<vmem>>, vector<16x128xf32>
    tpu.vector_store %arg8[%c0_23, %c0_24], %43 {strides = array<i32>} : memref<16x128xf32, #tpu.memory_space<vmem>>, vector<16x128xf32>,
    return
  }
  func.func @transform_0(%arg0: i32) -> (i32, i32) {
    %c0_i32 = arith.constant 0 : i32
    %c0_i32_0 = arith.constant 0 : i32
    return %arg0, %c0_i32 : i32, i32
  }
  func.func @transform_1(%arg0: i32) -> (i32, i32) {
    %c0_i32 = arith.constant 0 : i32
    %c0_i32_0 = arith.constant 0 : i32
    %c0_i32_1 = arith.constant 0 : i32
    return %c0_i32, %c0_i32_0 : i32, i32
  }
  func.func @transform_2(%arg0: i32) -> (i32, i32) {
    %c0_i32 = arith.constant 0 : i32
    %c0_i32_0 = arith.constant 0 : i32
    %c0_i32_1 = arith.constant 0 : i32
    return %c0_i32, %c0_i32_0 : i32, i32
  }
  func.func @transform_3(%arg0: i32) -> (i32, i32) {
    %c0_i32 = arith.constant 0 : i32
    %c0_i32_0 = arith.constant 0 : i32
    %c0_i32_1 = arith.constant 0 : i32
    return %c0_i32, %c0_i32_0 : i32, i32
  }
  func.func @transform_4(%arg0: i32) -> (i32, i32) {
    %c0_i32 = arith.constant 0 : i32
    %c0_i32_0 = arith.constant 0 : i32
    %c0_i32_1 = arith.constant 0 : i32
    return %c0_i32, %c0_i32_0 : i32, i32
  }
  func.func @transform_5(%arg0: i32) -> (i32, i32) {
    %c0_i32 = arith.constant 0 : i32
    %c0_i32_0 = arith.constant 0 : i32
    %c0_i32_1 = arith.constant 0 : i32
    return %c0_i32, %c0_i32_0 : i32, i32
  }
  func.func @transform_6(%arg0: i32) -> (i32, i32) {
    %c0_i32 = arith.constant 0 : i32
    %c0_i32_0 = arith.constant 0 : i32
    %c0_i32_1 = arith.constant 0 : i32
    return %c0_i32, %c0_i32_0 : i32, i32
  }
  func.func @transform_7(%arg0: i32) -> (i32, i32) {
    %c0_i32 = arith.constant 0 : i32
    %c0_i32_0 = arith.constant 0 : i32
    return %arg0, %c0_i32 : i32, i32
  }
}

module attributes {stable_mosaic.version = 11 : i64} {
  func.func @kernel(%arg0: i32, %arg1: memref<16x128xbf16, #tpu.memory_space<vmem>>, %arg2: memref<16x128xbf16, #tpu.memory_space<vmem>>, %arg3: memref<256x128xbf16, #tpu.memory_space<vmem>>, %arg4: memref<1x128xf32, #tpu.memory_space<vmem>>, %arg5: memref<128x128xbf16, #tpu.memory_space<vmem>>, %arg6: memref<1x128xf32, #tpu.memory_space<vmem>>, %arg7: memref<128x128xbf16, #tpu.memory_space<vmem>>, %arg8: memref<1x128xf32, #tpu.memory_space<vmem>>, %arg9: memref<1x128xf32, #tpu.memory_space<vmem>>, %arg10: memref<1x128xf32, #tpu.memory_space<vmem>>, %arg11: memref<16x128xbf16, #tpu.memory_space<vmem>>) attributes {dimension_semantics = [#tpu.dimension_semantics<parallel>], iteration_bounds = array<i64: 2>, scalar_prefetch = 0 : i64, scratch_operands = 0 : i64, tpu.core_type = #tpu.core_type<tc>, window_params = [{transform_indices = @transform_0, window_bounds = array<i64: 16, 128>}, {transform_indices = @transform_1, window_bounds = array<i64: 16, 128>}, {pipeline_mode = #tpu.pipeline_mode<synchronous>, transform_indices = @transform_2, window_bounds = array<i64: 256, 128>}, {pipeline_mode = #tpu.pipeline_mode<synchronous>, transform_indices = @transform_3, window_bounds = array<i64: 1, 128>}, {pipeline_mode = #tpu.pipeline_mode<synchronous>, transform_indices = @transform_4, window_bounds = array<i64: 128, 128>}, {pipeline_mode = #tpu.pipeline_mode<synchronous>, transform_indices = @transform_5, window_bounds = array<i64: 1, 128>}, {pipeline_mode = #tpu.pipeline_mode<synchronous>, transform_indices = @transform_6, window_bounds = array<i64: 128, 128>}, {pipeline_mode = #tpu.pipeline_mode<synchronous>, transform_indices = @transform_7, window_bounds = array<i64: 1, 128>}, {pipeline_mode = #tpu.pipeline_mode<synchronous>, transform_indices = @transform_8, window_bounds = array<i64: 1, 128>}, {pipeline_mode = #tpu.pipeline_mode<synchronous>, transform_indices = @transform_9, window_bounds = array<i64: 1, 128>}, {transform_indices = @transform_10, window_bounds = array<i64: 16, 128>}]} {
    %c0 = arith.constant 0 : index
    %c0_0 = arith.constant 0 : index
    %0 = vector.load %arg1[%c0, %c0_0] : memref<16x128xbf16, #tpu.memory_space<vmem>>, vector<16x128xbf16>
    %c0_1 = arith.constant 0 : index
    %c0_2 = arith.constant 0 : index
    %1 = vector.load %arg2[%c0_1, %c0_2] : memref<16x128xbf16, #tpu.memory_space<vmem>>, vector<16x128xbf16>
    %2 = tpu.concatenate %0, %1 in 1 : vector<16x128xbf16>, vector<16x128xbf16> -> vector<16x256xbf16>
    %c0_3 = arith.constant 0 : index
    %c0_4 = arith.constant 0 : index
    %3 = vector.load %arg3[%c0_3, %c0_4] : memref<256x128xbf16, #tpu.memory_space<vmem>>, vector<256x128xbf16>
    %cst = arith.constant dense<0.000000e+00> : vector<16x128xf32>
    %4 = tpu.matmul %2, %3, %cst {dimension_numbers = #tpu.dot_dimension_numbers<[1], [0], [0], [1], [0, 0, 1, 1], [], []>} : vector<16x256xbf16>, vector<256x128xbf16>, vector<16x128xf32> -> vector<16x128xf32>
    %c0_5 = arith.constant 0 : index
    %c0_6 = arith.constant 0 : index
    %5 = vector.load %arg4[%c0_5, %c0_6] : memref<1x128xf32, #tpu.memory_space<vmem>>, vector<1x128xf32>
    %6 = vector.broadcast %5 : vector<1x128xf32> to vector<16x128xf32>
    %7 = arith.addf %4, %6 : vector<16x128xf32>
    %8 = arith.mulf %7, %7 : vector<16x128xf32>
    %9 = arith.mulf %7, %8 : vector<16x128xf32>
    %cst_7 = arith.constant 4.471500e-02 : f32
    %10 = vector.broadcast %cst_7 : f32 to vector<16x128xf32>
    %11 = arith.mulf %10, %9 : vector<16x128xf32>
    %12 = arith.addf %7, %11 : vector<16x128xf32>
    %cst_8 = arith.constant 0.797884583 : f32
    %13 = vector.broadcast %cst_8 : f32 to vector<16x128xf32>
    %14 = arith.mulf %13, %12 : vector<16x128xf32>
    %15 = math.tanh %14 : vector<16x128xf32>
    %cst_9 = arith.constant 1.000000e+00 : f32
    %16 = vector.broadcast %cst_9 : f32 to vector<16x128xf32>
    %17 = arith.addf %16, %15 : vector<16x128xf32>
    %cst_10 = arith.constant 5.000000e-01 : f32
    %18 = vector.broadcast %cst_10 : f32 to vector<16x128xf32>
    %19 = arith.mulf %18, %17 : vector<16x128xf32>
    %20 = arith.mulf %7, %19 : vector<16x128xf32>
    %21 = arith.truncf %20 : vector<16x128xf32> to vector<16x128xbf16>
    %c0_11 = arith.constant 0 : index
    %c0_12 = arith.constant 0 : index
    %22 = vector.load %arg5[%c0_11, %c0_12] : memref<128x128xbf16, #tpu.memory_space<vmem>>, vector<128x128xbf16>
    %cst_13 = arith.constant dense<0.000000e+00> : vector<16x128xf32>
    %23 = tpu.matmul %21, %22, %cst_13 {dimension_numbers = #tpu.dot_dimension_numbers<[1], [0], [0], [1], [0, 0, 1, 1], [], []>} : vector<16x128xbf16>, vector<128x128xbf16>, vector<16x128xf32> -> vector<16x128xf32>
    %c0_14 = arith.constant 0 : index
    %c0_15 = arith.constant 0 : index
    %24 = vector.load %arg6[%c0_14, %c0_15] : memref<1x128xf32, #tpu.memory_space<vmem>>, vector<1x128xf32>
    %25 = vector.broadcast %24 : vector<1x128xf32> to vector<16x128xf32>
    %26 = arith.addf %23, %25 : vector<16x128xf32>
    %27 = arith.mulf %26, %26 : vector<16x128xf32>
    %28 = arith.mulf %26, %27 : vector<16x128xf32>
    %cst_16 = arith.constant 4.471500e-02 : f32
    %29 = vector.broadcast %cst_16 : f32 to vector<16x128xf32>
    %30 = arith.mulf %29, %28 : vector<16x128xf32>
    %31 = arith.addf %26, %30 : vector<16x128xf32>
    %cst_17 = arith.constant 0.797884583 : f32
    %32 = vector.broadcast %cst_17 : f32 to vector<16x128xf32>
    %33 = arith.mulf %32, %31 : vector<16x128xf32>
    %34 = math.tanh %33 : vector<16x128xf32>
    %cst_18 = arith.constant 1.000000e+00 : f32
    %35 = vector.broadcast %cst_18 : f32 to vector<16x128xf32>
    %36 = arith.addf %35, %34 : vector<16x128xf32>
    %cst_19 = arith.constant 5.000000e-01 : f32
    %37 = vector.broadcast %cst_19 : f32 to vector<16x128xf32>
    %38 = arith.mulf %37, %36 : vector<16x128xf32>
    %39 = arith.mulf %26, %38 : vector<16x128xf32>
    %40 = arith.truncf %39 : vector<16x128xf32> to vector<16x128xbf16>
    %c0_20 = arith.constant 0 : index
    %c0_21 = arith.constant 0 : index
    %41 = vector.load %arg7[%c0_20, %c0_21] : memref<128x128xbf16, #tpu.memory_space<vmem>>, vector<128x128xbf16>
    %cst_22 = arith.constant dense<0.000000e+00> : vector<16x128xf32>
    %42 = tpu.matmul %40, %41, %cst_22 {dimension_numbers = #tpu.dot_dimension_numbers<[1], [0], [0], [1], [0, 0, 1, 1], [], []>} : vector<16x128xbf16>, vector<128x128xbf16>, vector<16x128xf32> -> vector<16x128xf32>
    %c0_23 = arith.constant 0 : index
    %c0_24 = arith.constant 0 : index
    %43 = vector.load %arg8[%c0_23, %c0_24] : memref<1x128xf32, #tpu.memory_space<vmem>>, vector<1x128xf32>
    %44 = vector.broadcast %43 : vector<1x128xf32> to vector<16x128xf32>
    %45 = arith.addf %42, %44 : vector<16x128xf32>
    %cst_25 = arith.constant dense<0.000000e+00> : vector<16xf32>
    %46 = vector.multi_reduction <add>, %45, %cst_25 [1] : vector<16x128xf32> to vector<16xf32>
    %47 = vector.shape_cast %46 : vector<16xf32> to vector<16x1xf32>
    %cst_26 = arith.constant 3.125000e-02 : f32
    %48 = vector.broadcast %cst_26 : f32 to vector<16x1xf32>
    %49 = arith.mulf %47, %48 : vector<16x1xf32>
    %50 = arith.mulf %45, %45 : vector<16x128xf32>
    %cst_27 = arith.constant dense<0.000000e+00> : vector<16xf32>
    %51 = vector.multi_reduction <add>, %50, %cst_27 [1] : vector<16x128xf32> to vector<16xf32>
    %52 = vector.shape_cast %51 : vector<16xf32> to vector<16x1xf32>
    %cst_28 = arith.constant 3.125000e-02 : f32
    %53 = vector.broadcast %cst_28 : f32 to vector<16x1xf32>
    %54 = arith.mulf %52, %53 : vector<16x1xf32>
    %55 = arith.mulf %49, %49 : vector<16x1xf32>
    %56 = arith.subf %54, %55 : vector<16x1xf32>
    %57 = vector.broadcast %49 : vector<16x1xf32> to vector<16x128xf32>
    %58 = arith.subf %45, %57 : vector<16x128xf32>
    %cst_29 = arith.constant 9.99999974E-6 : f32
    %59 = vector.broadcast %cst_29 : f32 to vector<16x1xf32>
    %60 = arith.addf %56, %59 : vector<16x1xf32>
    %61 = math.rsqrt %60 : vector<16x1xf32>
    %62 = vector.broadcast %61 : vector<16x1xf32> to vector<16x128xf32>
    %63 = arith.mulf %58, %62 : vector<16x128xf32>
    %c0_30 = arith.constant 0 : index
    %c0_31 = arith.constant 0 : index
    %64 = vector.load %arg9[%c0_30, %c0_31] : memref<1x128xf32, #tpu.memory_space<vmem>>, vector<1x128xf32>
    %65 = vector.broadcast %64 : vector<1x128xf32> to vector<16x128xf32>
    %66 = arith.mulf %63, %65 : vector<16x128xf32>
    %c0_32 = arith.constant 0 : index
    %c0_33 = arith.constant 0 : index
    %67 = vector.load %arg10[%c0_32, %c0_33] : memref<1x128xf32, #tpu.memory_space<vmem>>, vector<1x128xf32>
    %68 = vector.broadcast %67 : vector<1x128xf32> to vector<16x128xf32>
    %69 = arith.addf %66, %68 : vector<16x128xf32>
    %c0_34 = arith.constant 0 : index
    %c0_35 = arith.constant 0 : index
    %70 = vector.load %arg2[%c0_34, %c0_35] : memref<16x128xbf16, #tpu.memory_space<vmem>>, vector<16x128xbf16>
    %71 = arith.extf %70 : vector<16x128xbf16> to vector<16x128xf32>
    %72 = arith.addf %69, %71 : vector<16x128xf32>
    %73 = arith.truncf %72 : vector<16x128xf32> to vector<16x128xbf16>
    %c0_36 = arith.constant 0 : index
    %c0_37 = arith.constant 0 : index
    %74 = vector.load %arg11[%c0_36, %c0_37] : memref<16x128xbf16, #tpu.memory_space<vmem>>, vector<16x128xbf16>
    tpu.vector_store %arg11[%c0_36, %c0_37], %73 {strides = array<i32>} : memref<16x128xbf16, #tpu.memory_space<vmem>>, vector<16x128xbf16>,
    return
  }
  func.func @transform_0(%arg0: i32) -> (i32, i32) {
    %c0_i32 = arith.constant 0 : i32
    %c0_i32_0 = arith.constant 0 : i32
    return %arg0, %c0_i32 : i32, i32
  }
  func.func @transform_1(%arg0: i32) -> (i32, i32) {
    %c0_i32 = arith.constant 0 : i32
    %c0_i32_0 = arith.constant 0 : i32
    return %arg0, %c0_i32 : i32, i32
  }
  func.func @transform_2(%arg0: i32) -> (i32, i32) {
    %c0_i32 = arith.constant 0 : i32
    %c0_i32_0 = arith.constant 0 : i32
    %c0_i32_1 = arith.constant 0 : i32
    return %c0_i32, %c0_i32_0 : i32, i32
  }
  func.func @transform_3(%arg0: i32) -> (i32, i32) {
    %c0_i32 = arith.constant 0 : i32
    %c0_i32_0 = arith.constant 0 : i32
    %c0_i32_1 = arith.constant 0 : i32
    return %c0_i32, %c0_i32_0 : i32, i32
  }
  func.func @transform_4(%arg0: i32) -> (i32, i32) {
    %c0_i32 = arith.constant 0 : i32
    %c0_i32_0 = arith.constant 0 : i32
    %c0_i32_1 = arith.constant 0 : i32
    return %c0_i32, %c0_i32_0 : i32, i32
  }
  func.func @transform_5(%arg0: i32) -> (i32, i32) {
    %c0_i32 = arith.constant 0 : i32
    %c0_i32_0 = arith.constant 0 : i32
    %c0_i32_1 = arith.constant 0 : i32
    return %c0_i32, %c0_i32_0 : i32, i32
  }
  func.func @transform_6(%arg0: i32) -> (i32, i32) {
    %c0_i32 = arith.constant 0 : i32
    %c0_i32_0 = arith.constant 0 : i32
    %c0_i32_1 = arith.constant 0 : i32
    return %c0_i32, %c0_i32_0 : i32, i32
  }
  func.func @transform_7(%arg0: i32) -> (i32, i32) {
    %c0_i32 = arith.constant 0 : i32
    %c0_i32_0 = arith.constant 0 : i32
    %c0_i32_1 = arith.constant 0 : i32
    return %c0_i32, %c0_i32_0 : i32, i32
  }
  func.func @transform_8(%arg0: i32) -> (i32, i32) {
    %c0_i32 = arith.constant 0 : i32
    %c0_i32_0 = arith.constant 0 : i32
    %c0_i32_1 = arith.constant 0 : i32
    return %c0_i32, %c0_i32_0 : i32, i32
  }
  func.func @transform_9(%arg0: i32) -> (i32, i32) {
    %c0_i32 = arith.constant 0 : i32
    %c0_i32_0 = arith.constant 0 : i32
    %c0_i32_1 = arith.constant 0 : i32
    return %c0_i32, %c0_i32_0 : i32, i32
  }
  func.func @transform_10(%arg0: i32) -> (i32, i32) {
    %c0_i32 = arith.constant 0 : i32
    %c0_i32_0 = arith.constant 0 : i32
    return %arg0, %c0_i32 : i32, i32
  }
}

</mosaic_0001>

<llo_original>
// kernel: graphnet_forward.8
$region0: #{graphnet_forward.8}
  #allocation0 [shape = 'u32[]', space=smem, size = 0x4, offset = 0x4, fixed_abs, tag = 'smem constant byte address 0x4 - core index']
  #allocation1 [shape = 'u32[72,128]{1,0:T(1,128)}', space=vmem, size = 0x9000, scoped, tag = 'internal scratch']
  %s0 = inlined_call_operand.vmem [shape: f32[32,4], index: 0, kind: input, shape index: {}]
  %s1 = inlined_call_operand.vmem [shape: bf16[4,128], index: 1, kind: input, shape index: {}]
  %s2 = inlined_call_operand.vmem [shape: f32[1,128], index: 2, kind: input, shape index: {}]
  %s3 = inlined_call_operand.vmem [shape: bf16[128,128], index: 3, kind: input, shape index: {}]
  %s4 = inlined_call_operand.vmem [shape: f32[1,128], index: 4, kind: input, shape index: {}]
  %s5 = inlined_call_operand.vmem [shape: bf16[128,128], index: 5, kind: input, shape index: {}]
  %s6 = inlined_call_operand.vmem [shape: f32[1,128], index: 6, kind: input, shape index: {}]
  %s7 = inlined_call_operand.vmem [shape: f32[1,128], index: 7, kind: input, shape index: {}]
  %s8 = inlined_call_operand.vmem [shape: f32[1,128], index: 8, kind: input, shape index: {}]
  %s9 = inlined_call_operand.vmem [shape: bf16[32,128], index: 9, kind: output, shape index: {}]
  %s10 = sld [smem:[#allocation0]]
  $region69: #{graphnet_forward.8} parent=0
    _
  %s12 = ssub.s32 1, %s10
  %s13 = scalar_select 0, %s12, %s10
  loop: start=0, step=1, limit=4
  $region2: #{graphnet_forward.8} parent=0 // loop_pre_header
    _
  $region3: #{graphnet_forward.8} parent=0 // loop_header
    %s15 = sphi 0, %s19
    %p16 = scmp.ge.s32.totalorder %s15, 4
    %s25 = sphi 0, %s27
    %s28 = sphi 0, %s25
    %s29 = sphi 0, %s28
    %s45 = sphi 0, %s29
    %s49 = sphi 0, %s49
    %s51 = sphi 0, %s49
    %s52 = sphi 0, %s51
    %s66 = sphi 0, %s52
    %s70 = sphi 0, %s70
    %s72 = sphi 0, %s70
    %s73 = sphi 0, %s72
    %s87 = sphi 0, %s73
    %s91 = sphi 0, %s91
    %s93 = sphi 0, %s91
    %s94 = sphi 0, %s93
    %s108 = sphi 0, %s94
    %s112 = sphi 0, %s112
    %s114 = sphi 0, %s112
    %s115 = sphi 0, %s114
    %s129 = sphi 0, %s115
    %s133 = sphi 0, %s133
    %s135 = sphi 0, %s133
    %s136 = sphi 0, %s135
    %s150 = sphi 0, %s136
    %s154 = sphi 0, %s154
    %s156 = sphi 0, %s154
    %s157 = sphi 0, %s156
    %s171 = sphi 0, %s157
    %s175 = sphi 0, %s175
    %s177 = sphi 0, %s175
    %s178 = sphi 0, %s177
    %s192 = sphi 0, %s178
    %s196 = sphi 0, %s196
    %s198 = sphi 0, %s196
    %s199 = sphi 0, %s198
    %s213 = sphi 0, %s199
    %s219 = sphi 0, %s221
    %s222 = sphi 0, %s219
    %s223 = sphi 0, %s222
    %s239 = sphi 0, %s223
  $region4: #{graphnet_forward.8} parent=0 // loop_header_branch
    %18 = sbr.rel (%p16) target = $region8
  $region5: #{graphnet_forward.8} parent=0 // loop_body
    %s20 = ssub.s32 %s15, 1
    %s21 = ssub.s32 %s15, 2
    %s22 = sadd.s32 %s15, 1
    %s23 = ssub.s32 %s15, %s22
    %p24 = scmp.eq.s32.totalorder %s23, 0
    %s26 = sadd.s32 %s25, 1
    %s27 = scalar_select %p24, %s25, %s26
    %p30 = pneg %p24
    %p31 = scmp.eq.s32.totalorder %s15, 1
    %p32 = por %p30, %p31
    %p33 = scmp.ne.s32.totalorder %s25, %s28
    %p34 = scmp.eq.s32.totalorder %s15, 0
    %p35 = por %p33, %p34
    %p36 = scmp.ne.s32.totalorder %s25, %s28
    %p37 = scmp.eq.s32.totalorder %s20, 1
    %p38 = por %p36, %p37
    %p39 = scmp.ne.s32.totalorder %s28, %s29
    %p40 = scmp.eq.s32.totalorder %s20, 0
    %p41 = por %p39, %p40
    %p42 = scmp.ne.s32.totalorder %s28, %s29
    %p43 = scmp.eq.s32.totalorder %s21, 1
    %p44 = por %p42, %p43
    %p46 = scmp.ne.s32.totalorder %s29, %s45
    %p47 = scmp.eq.s32.totalorder %s21, 0
    %p48 = por %p46, %p47
    %s50 = sadd.s32 %s49, 1
    %p53 = scmp.eq.s32.totalorder %s15, 1
    %p54 = scmp.ne.s32.totalorder %s49, %s51
    %p55 = scmp.eq.s32.totalorder %s15, 0
    %p56 = por %p54, %p55
    %p57 = scmp.ne.s32.totalorder %s49, %s51
    %p58 = scmp.eq.s32.totalorder %s20, 1
    %p59 = por %p57, %p58
    %p60 = scmp.ne.s32.totalorder %s51, %s52
    %p61 = scmp.eq.s32.totalorder %s20, 0
    %p62 = por %p60, %p61
    %p63 = scmp.ne.s32.totalorder %s51, %s52
    %p64 = scmp.eq.s32.totalorder %s21, 1
    %p65 = por %p63, %p64
    %p67 = scmp.ne.s32.totalorder %s52, %s66
    %p68 = scmp.eq.s32.totalorder %s21, 0
    %p69 = por %p67, %p68
    %s71 = sadd.s32 %s70, 1
    %p74 = scmp.eq.s32.totalorder %s15, 1
    %p75 = scmp.ne.s32.totalorder %s70, %s72
    %p76 = scmp.eq.s32.totalorder %s15, 0
    %p77 = por %p75, %p76
    %p78 = scmp.ne.s32.totalorder %s70, %s72
    %p79 = scmp.eq.s32.totalorder %s20, 1
    %p80 = por %p78, %p79
    %p81 = scmp.ne.s32.totalorder %s72, %s73
    %p82 = scmp.eq.s32.totalorder %s20, 0
    %p83 = por %p81, %p82
    %p84 = scmp.ne.s32.totalorder %s72, %s73
    %p85 = scmp.eq.s32.totalorder %s21, 1
    %p86 = por %p84, %p85
    %p88 = scmp.ne.s32.totalorder %s73, %s87
    %p89 = scmp.eq.s32.totalorder %s21, 0
    %p90 = por %p88, %p89
    %s92 = sadd.s32 %s91, 1
    %p95 = scmp.eq.s32.totalorder %s15, 1
    %p96 = scmp.ne.s32.totalorder %s91, %s93
    %p97 = scmp.eq.s32.totalorder %s15, 0
    %p98 = por %p96, %p97
    %p99 = scmp.ne.s32.totalorder %s91, %s93
    %p100 = scmp.eq.s32.totalorder %s20, 1
    %p101 = por %p99, %p100
    %p102 = scmp.ne.s32.totalorder %s93, %s94
    %p103 = scmp.eq.s32.totalorder %s20, 0
    %p104 = por %p102, %p103
    %p105 = scmp.ne.s32.totalorder %s93, %s94
    %p106 = scmp.eq.s32.totalorder %s21, 1
    %p107 = por %p105, %p106
    %p109 = scmp.ne.s32.totalorder %s94, %s108
    %p110 = scmp.eq.s32.totalorder %s21, 0
    %p111 = por %p109, %p110
    %s113 = sadd.s32 %s112, 1
    %p116 = scmp.eq.s32.totalorder %s15, 1
    %p117 = scmp.ne.s32.totalorder %s112, %s114
    %p118 = scmp.eq.s32.totalorder %s15, 0
    %p119 = por %p117, %p118
    %p120 = scmp.ne.s32.totalorder %s112, %s114
    %p121 = scmp.eq.s32.totalorder %s20, 1
    %p122 = por %p120, %p121
    %p123 = scmp.ne.s32.totalorder %s114, %s115
    %p124 = scmp.eq.s32.totalorder %s20, 0
    %p125 = por %p123, %p124
    %p126 = scmp.ne.s32.totalorder %s114, %s115
    %p127 = scmp.eq.s32.totalorder %s21, 1
    %p128 = por %p126, %p127
    %p130 = scmp.ne.s32.totalorder %s115, %s129
    %p131 = scmp.eq.s32.totalorder %s21, 0
    %p132 = por %p130, %p131
    %s134 = sadd.s32 %s133, 1
    %p137 = scmp.eq.s32.totalorder %s15, 1
    %p138 = scmp.ne.s32.totalorder %s133, %s135
    %p139 = scmp.eq.s32.totalorder %s15, 0
    %p140 = por %p138, %p139
    %p141 = scmp.ne.s32.totalorder %s133, %s135
    %p142 = scmp.eq.s32.totalorder %s20, 1
    %p143 = por %p141, %p142
    %p144 = scmp.ne.s32.totalorder %s135, %s136
    %p145 = scmp.eq.s32.totalorder %s20, 0
    %p146 = por %p144, %p145
    %p147 = scmp.ne.s32.totalorder %s135, %s136
    %p148 = scmp.eq.s32.totalorder %s21, 1
    %p149 = por %p147, %p148
    %p151 = scmp.ne.s32.totalorder %s136, %s150
    %p152 = scmp.eq.s32.totalorder %s21, 0
    %p153 = por %p151, %p152
    %s155 = sadd.s32 %s154, 1
    %p158 = scmp.eq.s32.totalorder %s15, 1
    %p159 = scmp.ne.s32.totalorder %s154, %s156
    %p160 = scmp.eq.s32.totalorder %s15, 0
    %p161 = por %p159, %p160
    %p162 = scmp.ne.s32.totalorder %s154, %s156
    %p163 = scmp.eq.s32.totalorder %s20, 1
    %p164 = por %p162, %p163
    %p165 = scmp.ne.s32.totalorder %s156, %s157
    %p166 = scmp.eq.s32.totalorder %s20, 0
    %p167 = por %p165, %p166
    %p168 = scmp.ne.s32.totalorder %s156, %s157
    %p169 = scmp.eq.s32.totalorder %s21, 1
    %p170 = por %p168, %p169
    %p172 = scmp.ne.s32.totalorder %s157, %s171
    %p173 = scmp.eq.s32.totalorder %s21, 0
    %p174 = por %p172, %p173
    %s176 = sadd.s32 %s175, 1
    %p179 = scmp.eq.s32.totalorder %s15, 1
    %p180 = scmp.ne.s32.totalorder %s175, %s177
    %p181 = scmp.eq.s32.totalorder %s15, 0
    %p182 = por %p180, %p181
    %p183 = scmp.ne.s32.totalorder %s175, %s177
    %p184 = scmp.eq.s32.totalorder %s20, 1
    %p185 = por %p183, %p184
    %p186 = scmp.ne.s32.totalorder %s177, %s178
    %p187 = scmp.eq.s32.totalorder %s20, 0
    %p188 = por %p186, %p187
    %p189 = scmp.ne.s32.totalorder %s177, %s178
    %p190 = scmp.eq.s32.totalorder %s21, 1
    %p191 = por %p189, %p190
    %p193 = scmp.ne.s32.totalorder %s178, %s192
    %p194 = scmp.eq.s32.totalorder %s21, 0
    %p195 = por %p193, %p194
    %s197 = sadd.s32 %s196, 1
    %p200 = scmp.eq.s32.totalorder %s15, 1
    %p201 = scmp.ne.s32.totalorder %s196, %s198
    %p202 = scmp.eq.s32.totalorder %s15, 0
    %p203 = por %p201, %p202
    %p204 = scmp.ne.s32.totalorder %s196, %s198
    %p205 = scmp.eq.s32.totalorder %s20, 1
    %p206 = por %p204, %p205
    %p207 = scmp.ne.s32.totalorder %s198, %s199
    %p208 = scmp.eq.s32.totalorder %s20, 0
    %p209 = por %p207, %p208
    %p210 = scmp.ne.s32.totalorder %s198, %s199
    %p211 = scmp.eq.s32.totalorder %s21, 1
    %p212 = por %p210, %p211
    %p214 = scmp.ne.s32.totalorder %s199, %s213
    %p215 = scmp.eq.s32.totalorder %s21, 0
    %p216 = por %p214, %p215
    %s217 = ssub.s32 %s15, %s22
    %p218 = scmp.eq.s32.totalorder %s217, 0
    %s220 = sadd.s32 %s219, 1
    %s221 = scalar_select %p218, %s219, %s220
    %p224 = pneg %p218
    %p225 = scmp.eq.s32.totalorder %s15, 1
    %p226 = por %p224, %p225
    %p227 = scmp.ne.s32.totalorder %s219, %s222
    %p228 = scmp.eq.s32.totalorder %s15, 0
    %p229 = por %p227, %p228
    %p230 = scmp.ne.s32.totalorder %s219, %s222
    %p231 = scmp.eq.s32.totalorder %s20, 1
    %p232 = por %p230, %p231
    %p233 = scmp.ne.s32.totalorder %s222, %s223
    %p234 = scmp.eq.s32.totalorder %s20, 0
    %p235 = por %p233, %p234
    %p236 = scmp.ne.s32.totalorder %s222, %s223
    %p237 = scmp.eq.s32.totalorder %s21, 1
    %p238 = por %p236, %p237
    %p240 = scmp.ne.s32.totalorder %s223, %s239
    %p241 = scmp.eq.s32.totalorder %s21, 0
    %p242 = por %p240, %p241
    %p243 = scmp.le.s32.totalorder 1, %s15
    %p244 = scmp.lt.s32.totalorder %s15, 3
    %p245 = pnand %p243, %p244
    %p246 = pneg %p245
    // Predicated region
    $region9: #{graphnet_forward.8} parent=5 // pred_check
      _
    $region10: #{graphnet_forward.8} parent=5 // pred_check_branch
      %248 = sbr.rel (%p245) target = $region12
    $region11: #{graphnet_forward.8} parent=5 // pred_region
      %s249 = ssub.s32 %s15, 1
      // Predicated region
      $region13: #{graphnet_forward.8} parent=11 // pred_check
        %p250 = pneg %p62
      $region14: #{graphnet_forward.8} parent=11 // pred_check_branch
        %252 = sbr.rel (%p250) target = $region16
      $region15: #{graphnet_forward.8} parent=11 // pred_region
        _
      $region16: #{graphnet_forward.8} parent=11 // pred_fallthru
        _
      // Predicated region
      $region17: #{graphnet_forward.8} parent=11 // pred_check
        %p253 = pneg %p83
      $region18: #{graphnet_forward.8} parent=11 // pred_check_branch
        %255 = sbr.rel (%p253) target = $region20
      $region19: #{graphnet_forward.8} parent=11 // pred_region
        _
      $region20: #{graphnet_forward.8} parent=11 // pred_fallthru
        _
      // Predicated region
      $region21: #{graphnet_forward.8} parent=11 // pred_check
        %p256 = pneg %p104
      $region22: #{graphnet_forward.8} parent=11 // pred_check_branch
        %258 = sbr.rel (%p256) target = $region24
      $region23: #{graphnet_forward.8} parent=11 // pred_region
        _
      $region24: #{graphnet_forward.8} parent=11 // pred_fallthru
        _
      // Predicated region
      $region25: #{graphnet_forward.8} parent=11 // pred_check
        %p259 = pneg %p125
      $region26: #{graphnet_forward.8} parent=11 // pred_check_branch
        %261 = sbr.rel (%p259) target = $region28
      $region27: #{graphnet_forward.8} parent=11 // pred_region
        _
      $region28: #{graphnet_forward.8} parent=11 // pred_fallthru
        _
      // Predicated region
      $region29: #{graphnet_forward.8} parent=11 // pred_check
        %p262 = pneg %p146
      $region30: #{graphnet_forward.8} parent=11 // pred_check_branch
        %264 = sbr.rel (%p262) target = $region32
      $region31: #{graphnet_forward.8} parent=11 // pred_region
        _
      $region32: #{graphnet_forward.8} parent=11 // pred_fallthru
        _
      // Predicated region
      $region33: #{graphnet_forward.8} parent=11 // pred_check
        %p265 = pneg %p167
      $region34: #{graphnet_forward.8} parent=11 // pred_check_branch
        %267 = sbr.rel (%p265) target = $region36
      $region35: #{graphnet_forward.8} parent=11 // pred_region
        _
      $region36: #{graphnet_forward.8} parent=11 // pred_fallthru
        _
      // Predicated region
      $region37: #{graphnet_forward.8} parent=11 // pred_check
        %p268 = pneg %p188
      $region38: #{graphnet_forward.8} parent=11 // pred_check_branch
        %270 = sbr.rel (%p268) target = $region40
      $region39: #{graphnet_forward.8} parent=11 // pred_region
        _
      $region40: #{graphnet_forward.8} parent=11 // pred_fallthru
        _
      // Predicated region
      $region41: #{graphnet_forward.8} parent=11 // pred_check
        %p271 = pneg %p209
      $region42: #{graphnet_forward.8} parent=11 // pred_check_branch
        %273 = sbr.rel (%p271) target = $region44
      $region43: #{graphnet_forward.8} parent=11 // pred_region
        _
      $region44: #{graphnet_forward.8} parent=11 // pred_fallthru
        _
    $region12: #{graphnet_forward.8} parent=5 // pred_fallthru
      _
    %p274 = scmp.lt.s32.totalorder %s15, 2
    // Predicated region
    $region45: #{graphnet_forward.8} parent=5 // pred_check
      %p275 = pneg %p274
    $region46: #{graphnet_forward.8} parent=5 // pred_check_branch
      %277 = sbr.rel (%p275) target = $region48
    $region47: #{graphnet_forward.8} parent=5 // pred_region
      // Predicated region
      $region49: #{graphnet_forward.8} parent=47 // pred_check
        %p278 = pneg %p35
      $region50: #{graphnet_forward.8} parent=47 // pred_check_branch
        %280 = sbr.rel (%p278) target = $region52
      $region51: #{graphnet_forward.8} parent=47 // pred_region
        %s281 = smul.u32 2, %s15
        %p282 = scmp.lt.s32.totalorder %s281, 3
        %s283 = scalar_select %p282, %s281, 3
        %s284 = smul.addr %s283, 8
        %s285 = scalar_lea.vmem %s0, %s284
        %s286 = smul.u32 2, %s15
      $region52: #{graphnet_forward.8} parent=47 // pred_fallthru
        _
    $region48: #{graphnet_forward.8} parent=5 // pred_fallthru
      _
    %p287 = scmp.le.s32.totalorder 1, %s15
    %p288 = scmp.lt.s32.totalorder %s15, 3
    %p289 = pnand %p287, %p288
    %p290 = pneg %p289
    // Predicated region
    $region53: #{graphnet_forward.8} parent=5 // pred_check
      _
    $region54: #{graphnet_forward.8} parent=5 // pred_check_branch
      %292 = sbr.rel (%p289) target = $region56
    $region55: #{graphnet_forward.8} parent=5 // pred_region
      %s293 = ssub.s32 %s15, 1
      %s294 = smul.u32 2, %s20
      %p295 = scmp.lt.s32.totalorder %s294, 3
      %s296 = scalar_select %p295, %s294, 3
      %s297 = smul.addr %s296, 8
      %s298 = scalar_lea.vmem %s0, %s297
      %p299 = pneg %p41
      %p300 = pneg %p38
      %p301 = pneg %p62
      %p302 = pneg %p59
      %p303 = pneg %p83
      %p304 = pneg %p80
      %p305 = pneg %p104
      %p306 = pneg %p101
      %p307 = pneg %p125
      %p308 = pneg %p122
      %p309 = pneg %p146
      %p310 = pneg %p143
      %p311 = pneg %p167
      %p312 = pneg %p164
      %p313 = pneg %p188
      %p314 = pneg %p185
      %p315 = pneg %p209
      %p316 = pneg %p206
      %p317 = pneg %p235
      %p318 = pneg %p232
      %s319 = smul.u32 2, %s20
      %p320 = scmp.lt.s32.totalorder %s319, 3
      %s321 = scalar_select %p320, %s319, 3
      %s322 = smul.addr %s321, 4
      %s323 = scalar_lea.vmem %s9, %s322
      %s324 = smul.u32 2, %s20
      %p325 = scmp.lt.s32.totalorder %s324, 3
      %s326 = scalar_select %p325, %s324, 3
      %s327 = smul.addr %s326, 8
      %s328 = scalar_lea.vmem %s0, %s327
      %s329 = smul.u32 2, %s20
      %s330 = smul.u32 2, %s20
      %p331 = scmp.lt.s32.totalorder %s330, 3
      %s332 = scalar_select %p331, %s330, 3
      %s333 = smul.addr %s332, 4
      %s334 = scalar_lea.vmem %s9, %s333
      %s335 = smul.u32 2, %s20
      %v337 = vld [vmem:[%s328] sm:$0xff]
      %v338 = vld [vmem:[%s328 + $0x8] sm:$0xff]
      %v339 = vpack.c.bf16 %v338, %v337
      %v340 = vld [vmem:[%s1] sm:$0x3]
      %v341 = vld [vmem:[%s2] sm:$0x1]
      %v343 = vperm.slane %v341, 0
      %vm345 = vcmask 31744
      %v347 = vsel %vm345, %v339, 0
      %vm349 = vcmask 1041408
      %v351 = vsel %vm349, %v340, 0
      %353 = vmatpush.bf16.msra.mxu0 0
      %354 = vmatpush.bf16.msra.mxu0 0
      %355 = vmatpush.bf16.msra.mxu0 0
      %356 = vmatpush.bf16.msra.mxu0 0
      %357 = vmatpush.bf16.msra.mxu0 0
      %358 = vmatpush.bf16.msra.mxu0 0
      %359 = vmatpush.bf16.msra.mxu0 0
      %360 = vmatpush.bf16.msra.mxu0 %v351
      %361 = vmatmul.bf16.gmra.mxu0 %v347
      %v362 = vpop.f32.mrf.mxu0
      %v363 = vadd.f32 %v343, %v362
      %v364 = vpop.f32.mrf.mxu0
      %v365 = vadd.f32 %v343, %v364
      %366 = vdwg.mxu0
      %v367 = vmul.f32 %v363, %v363
      %v368 = vmul.f32 %v365, %v365
      %v369 = vmul.f32 %v363, %v367
      %v370 = vmul.f32 %v365, %v368
      %v371 = vmul.f32 %v369, 0.044715
      %v372 = vmul.f32 %v370, 0.044715
      %v373 = vadd.f32 %v363, %v371
      %v374 = vadd.f32 %v365, %v372
      %v375 = vmul.f32 %v373, 0.7978846
      %v376 = vmul.f32 %v374, 0.7978846
      %v377 = vtanh.pop %v375
      %v378 = vtanh.pop %v376
      %v379 = vadd.f32 %v377, 1.0
      %v380 = vadd.f32 %v378, 1.0
      %v381 = vmul.f32 %v379, 0.5
      %v382 = vmul.f32 %v380, 0.5
      %v383 = vmul.f32 %v363, %v381
      %v384 = vmul.f32 %v365, %v382
      %v385 = vpack.c.bf16 %v384, %v383
      %v386 = vld [vmem:[%s3] sm:$0xf]
      %v387 = vld [vmem:[%s3 + $0x4] sm:$0xf]
      %v388 = vld [vmem:[%s3 + $0x8] sm:$0xf]
      %v389 = vld [vmem:[%s3 + $0xc] sm:$0xf]
      %v390 = vld [vmem:[%s3 + $0x10] sm:$0xf]
      %v391 = vld [vmem:[%s3 + $0x14] sm:$0xf]
      %v392 = vld [vmem:[%s3 + $0x18] sm:$0xf]
      %v393 = vld [vmem:[%s3 + $0x1c] sm:$0xf]
      %v394 = vld [vmem:[%s3 + $0x20] sm:$0xf]
      %v395 = vld [vmem:[%s3 + $0x24] sm:$0xf]
      %v396 = vld [vmem:[%s3 + $0x28] sm:$0xf]
      %v397 = vld [vmem:[%s3 + $0x2c] sm:$0xf]
      %v398 = vld [vmem:[%s3 + $0x30] sm:$0xf]
      %v399 = vld [vmem:[%s3 + $0x34] sm:$0xf]
      %v400 = vld [vmem:[%s3 + $0x38] sm:$0xf]
      %v401 = vld [vmem:[%s3 + $0x3c] sm:$0xf]
      %v402 = vld [vmem:[%s4] sm:$0x1]
      %v404 = vperm.slane %v402, 0
      %v422 = vunpack.c.l.b16 %v386
      %v423 = vunpack.c.l.b16 %v387
      %v424 = vunpack.c.l.b16 %v388
      %v425 = vunpack.c.l.b16 %v389
      %v426 = vunpack.c.l.b16 %v390
      %v427 = vunpack.c.l.b16 %v391
      %v428 = vunpack.c.l.b16 %v392
      %v429 = vunpack.c.l.b16 %v393
      %v430 = vunpack.c.l.b16 %v394
      %v431 = vunpack.c.l.b16 %v395
      %v432 = vunpack.c.l.b16 %v396
      %v433 = vunpack.c.l.b16 %v397
      %v434 = vunpack.c.l.b16 %v398
      %v435 = vunpack.c.l.b16 %v399
      %v436 = vunpack.c.l.b16 %v400
      %v437 = vunpack.c.l.b16 %v401
      %v438 = vpack.c.b16 %v423, %v422
      %v439 = vpack.c.b16 %v425, %v424
      %v440 = vpack.c.b16 %v427, %v426
      %v441 = vpack.c.b16 %v429, %v428
      %v442 = vpack.c.b16 %v431, %v430
      %v443 = vpack.c.b16 %v433, %v432
      %v444 = vpack.c.b16 %v435, %v434
      %v445 = vpack.c.b16 %v437, %v436
      %454 = vmatpush.bf16.msra.mxu0 %v445
      %455 = vmatpush.bf16.msra.mxu0 %v444
      %456 = vmatpush.bf16.msra.mxu0 %v443
      %457 = vmatpush.bf16.msra.mxu0 %v442
      %458 = vmatpush.bf16.msra.mxu0 %v441
      %459 = vmatpush.bf16.msra.mxu0 %v440
      %460 = vmatpush.bf16.msra.mxu0 %v439
      %461 = vmatpush.bf16.msra.mxu0 %v438
      %462 = vmatmul.bf16.gmra.mxu0 %v385
      %v463 = vpop.f32.mrf.mxu0
      %v464 = vadd.f32 %v404, %v463
      %v465 = vpop.f32.mrf.mxu0
      %v466 = vadd.f32 %v404, %v465
      %467 = vdwg.mxu0
      %v468 = vmul.f32 %v464, %v464
      %v469 = vmul.f32 %v466, %v466
      %v470 = vmul.f32 %v464, %v468
      %v471 = vmul.f32 %v466, %v469
      %v472 = vmul.f32 %v470, 0.044715
      %v473 = vmul.f32 %v471, 0.044715
      %v474 = vadd.f32 %v464, %v472
      %v475 = vadd.f32 %v466, %v473
      %v476 = vmul.f32 %v474, 0.7978846
      %v477 = vmul.f32 %v475, 0.7978846
      %v478 = vtanh.pop %v476
      %v479 = vtanh.pop %v477
      %v480 = vadd.f32 %v478, 1.0
      %v481 = vadd.f32 %v479, 1.0
      %v482 = vmul.f32 %v480, 0.5
      %v483 = vmul.f32 %v481, 0.5
      %v484 = vmul.f32 %v464, %v482
      %v485 = vmul.f32 %v466, %v483
      %v486 = vpack.c.bf16 %v485, %v484
      %v487 = vld [vmem:[%s5] sm:$0xf]
      %v488 = vld [vmem:[%s5 + $0x4] sm:$0xf]
      %v489 = vld [vmem:[%s5 + $0x8] sm:$0xf]
      %v490 = vld [vmem:[%s5 + $0xc] sm:$0xf]
      %v491 = vld [vmem:[%s5 + $0x10] sm:$0xf]
      %v492 = vld [vmem:[%s5 + $0x14] sm:$0xf]
      %v493 = vld [vmem:[%s5 + $0x18] sm:$0xf]
      %v494 = vld [vmem:[%s5 + $0x1c] sm:$0xf]
      %v495 = vld [vmem:[%s5 + $0x20] sm:$0xf]
      %v496 = vld [vmem:[%s5 + $0x24] sm:$0xf]
      %v497 = vld [vmem:[%s5 + $0x28] sm:$0xf]
      %v498 = vld [vmem:[%s5 + $0x2c] sm:$0xf]
      %v499 = vld [vmem:[%s5 + $0x30] sm:$0xf]
      %v500 = vld [vmem:[%s5 + $0x34] sm:$0xf]
      %v501 = vld [vmem:[%s5 + $0x38] sm:$0xf]
      %v502 = vld [vmem:[%s5 + $0x3c] sm:$0xf]
      %v503 = vld [vmem:[%s6] sm:$0x1]
      %v505 = vperm.slane %v503, 0
      %v523 = vunpack.c.l.b16 %v487
      %v524 = vunpack.c.l.b16 %v488
      %v525 = vunpack.c.l.b16 %v489
      %v526 = vunpack.c.l.b16 %v490
      %v527 = vunpack.c.l.b16 %v491
      %v528 = vunpack.c.l.b16 %v492
      %v529 = vunpack.c.l.b16 %v493
      %v530 = vunpack.c.l.b16 %v494
      %v531 = vunpack.c.l.b16 %v495
      %v532 = vunpack.c.l.b16 %v496
      %v533 = vunpack.c.l.b16 %v497
      %v534 = vunpack.c.l.b16 %v498
      %v535 = vunpack.c.l.b16 %v499
      %v536 = vunpack.c.l.b16 %v500
      %v537 = vunpack.c.l.b16 %v501
      %v538 = vunpack.c.l.b16 %v502
      %v539 = vpack.c.b16 %v524, %v523
      %v540 = vpack.c.b16 %v526, %v525
      %v541 = vpack.c.b16 %v528, %v527
      %v542 = vpack.c.b16 %v530, %v529
      %v543 = vpack.c.b16 %v532, %v531
      %v544 = vpack.c.b16 %v534, %v533
      %v545 = vpack.c.b16 %v536, %v535
      %v546 = vpack.c.b16 %v538, %v537
      %555 = vmatpush.bf16.msra.mxu0 %v546
      %556 = vmatpush.bf16.msra.mxu0 %v545
      %557 = vmatpush.bf16.msra.mxu0 %v544
      %558 = vmatpush.bf16.msra.mxu0 %v543
      %559 = vmatpush.bf16.msra.mxu0 %v542
      %560 = vmatpush.bf16.msra.mxu0 %v541
      %561 = vmatpush.bf16.msra.mxu0 %v540
      %562 = vmatpush.bf16.msra.mxu0 %v539
      %563 = vmatmul.bf16.gmra.mxu0 %v486
      %v564 = vpop.f32.mrf.mxu0
      %v565 = vadd.f32 %v505, %v564
      %v566 = vpop.f32.mrf.mxu0
      %v567 = vadd.f32 %v505, %v566
      %568 = vdwg.mxu0
      %569 = vadd.xlane.f32.xlu0 %v565
      %v570 = vpop.xlane.xlu0 %569
      %571 = vadd.xlane.f32.xlu0 %v567
      %v572 = vpop.xlane.xlu0 %571
      %v573 = vmul.f32 %v570, 0.03125
      %v574 = vmul.f32 %v572, 0.03125
      %v575 = vmul.f32 %v565, %v565
      %v576 = vmul.f32 %v567, %v567
      %577 = vadd.xlane.f32.xlu0 %v575
      %v578 = vpop.xlane.xlu0 %577
      %579 = vadd.xlane.f32.xlu0 %v576
      %v580 = vpop.xlane.xlu0 %579
      %v581 = vmul.f32 %v578, 0.03125
      %v582 = vmul.f32 %v580, 0.03125
      %v583 = vmul.f32 %v573, %v573
      %v584 = vmul.f32 %v574, %v574
      %v585 = vsub.f32 %v581, %v583
      %v586 = vsub.f32 %v582, %v584
      %v587 = vsub.f32 %v565, %v573
      %v588 = vsub.f32 %v567, %v574
      %v589 = vadd.f32 %v585, 1e-05
      %v590 = vadd.f32 %v586, 1e-05
      %v591 = vrsqrt.pop %v589
      %v592 = vmul.f32 %v591, %v589
      %v593 = vmul.f32 %v592, %v591
      %v594 = vmul.f32 0.5, %v593
      %v595 = vsub.f32 1.5, %v594
      %v596 = vmul.f32 %v591, %v595
      %vm597 = vweird.f32 %v589
      %vm598 = vweird.f32 %v591
      %vm599 = vmor %vm597, %vm598
      %v600 = vsel %vm599, %v591, %v596
      %v601 = vrsqrt.pop %v590
      %v602 = vmul.f32 %v601, %v590
      %v603 = vmul.f32 %v602, %v601
      %v604 = vmul.f32 0.5, %v603
      %v605 = vsub.f32 1.5, %v604
      %v606 = vmul.f32 %v601, %v605
      %vm607 = vweird.f32 %v590
      %vm608 = vweird.f32 %v601
      %vm609 = vmor %vm607, %vm608
      %v610 = vsel %vm609, %v601, %v606
      %v611 = vmul.f32 %v587, %v600
      %v612 = vmul.f32 %v588, %v610
      %v613 = vld [vmem:[%s7] sm:$0x1]
      %v615 = vperm.slane %v613, 0
      %v617 = vmul.f32 %v611, %v615
      %v618 = vmul.f32 %v612, %v615
      %v619 = vld [vmem:[%s8] sm:$0x1]
      %v621 = vperm.slane %v619, 0
      %v623 = vadd.f32 %v617, %v621
      %v624 = vadd.f32 %v618, %v621
      %v625 = vpack.c.bf16 %v623, %v623
      %v626 = vpack.c.bf16 %v624, %v624
      %627 = vst [vmem:[%s334] sm:$0xf] %v625
      %628 = vst [vmem:[%s334 + $0x4] sm:$0xf] %v626
      %s629 = smul.u32 2, %s20
      %p630 = scmp.lt.s32.totalorder %s629, 3
      %s631 = scalar_select %p630, %s629, 3
      %s632 = smul.addr %s631, 4
      %s633 = scalar_lea.vmem %s9, %s632
      // Predicated region
      $region57: #{graphnet_forward.8} parent=55 // pred_check
        %p634 = pneg %p232
      $region58: #{graphnet_forward.8} parent=55 // pred_check_branch
        %636 = sbr.rel (%p634) target = $region60
      $region59: #{graphnet_forward.8} parent=55 // pred_region
        %s637 = smul.u32 2, %s20
      $region60: #{graphnet_forward.8} parent=55 // pred_fallthru
        _
    $region56: #{graphnet_forward.8} parent=5 // pred_fallthru
      _
    %p638 = scmp.le.s32.totalorder 2, %s15
    // Predicated region
    $region61: #{graphnet_forward.8} parent=5 // pred_check
      %p639 = pneg %p638
    $region62: #{graphnet_forward.8} parent=5 // pred_check_branch
      %641 = sbr.rel (%p639) target = $region64
    $region63: #{graphnet_forward.8} parent=5 // pred_region
      %s642 = ssub.s32 %s15, 2
      // Predicated region
      $region65: #{graphnet_forward.8} parent=63 // pred_check
        %p643 = pneg %p238
      $region66: #{graphnet_forward.8} parent=63 // pred_check_branch
        %645 = sbr.rel (%p643) target = $region68
      $region67: #{graphnet_forward.8} parent=63 // pred_region
        %s646 = smul.u32 2, %s21
        %p647 = scmp.lt.s32.totalorder %s646, 3
        %s648 = scalar_select %p647, %s646, 3
        %s649 = smul.addr %s648, 4
        %s650 = scalar_lea.vmem %s9, %s649
      $region68: #{graphnet_forward.8} parent=63 // pred_fallthru
        _
    $region64: #{graphnet_forward.8} parent=5 // pred_fallthru
      _
  $region6: #{graphnet_forward.8} parent=0 // loop_footer
    %s19 = sadd.s32 1, %s15
  $region7: #{graphnet_forward.8} parent=0 // loop_footer_branch
    %14 = sbr.rel target = $region3
  $region8: #{graphnet_forward.8} parent=0 // loop_exit
    _

// kernel: graphnet_forward.10
$region0: #{graphnet_forward.10}
  #allocation0 [shape = 'u32[]', space=smem, size = 0x4, offset = 0x4, fixed_abs, tag = 'smem constant byte address 0x4 - core index']
  #allocation1 [shape = 'u32[72,128]{1,0:T(1,128)}', space=vmem, size = 0x9000, scoped, tag = 'internal scratch']
  %s0 = inlined_call_operand.vmem [shape: f32[16,5], index: 0, kind: input, shape index: {}]
  %s1 = inlined_call_operand.vmem [shape: bf16[5,128], index: 1, kind: input, shape index: {}]
  %s2 = inlined_call_operand.vmem [shape: f32[1,128], index: 2, kind: input, shape index: {}]
  %s3 = inlined_call_operand.vmem [shape: bf16[128,128], index: 3, kind: input, shape index: {}]
  %s4 = inlined_call_operand.vmem [shape: f32[1,128], index: 4, kind: input, shape index: {}]
  %s5 = inlined_call_operand.vmem [shape: bf16[128,128], index: 5, kind: input, shape index: {}]
  %s6 = inlined_call_operand.vmem [shape: f32[1,128], index: 6, kind: input, shape index: {}]
  %s7 = inlined_call_operand.vmem [shape: f32[1,128], index: 7, kind: input, shape index: {}]
  %s8 = inlined_call_operand.vmem [shape: f32[1,128], index: 8, kind: input, shape index: {}]
  %s9 = inlined_call_operand.vmem [shape: bf16[16,128], index: 9, kind: output, shape index: {}]
  %s10 = sld [smem:[#allocation0]]
  $region46: #{graphnet_forward.10} parent=0
    _
  %s12 = ssub.s32 1, %s10
  %s13 = scalar_select 0, %s12, %s10
  // Predicated region
  $region2: #{graphnet_forward.10} parent=0 // pred_check
    _
  $region3: #{graphnet_forward.10} parent=0 // pred_check_branch
    %15 = sbr.rel (0) target = $region5
  $region4: #{graphnet_forward.10} parent=0 // pred_region
    _
  $region5: #{graphnet_forward.10} parent=0 // pred_fallthru
    _
  // Predicated region
  $region6: #{graphnet_forward.10} parent=0 // pred_check
    _
  $region7: #{graphnet_forward.10} parent=0 // pred_check_branch
    %17 = sbr.rel (0) target = $region9
  $region8: #{graphnet_forward.10} parent=0 // pred_region
    _
  $region9: #{graphnet_forward.10} parent=0 // pred_fallthru
    _
  // Predicated region
  $region10: #{graphnet_forward.10} parent=0 // pred_check
    _
  $region11: #{graphnet_forward.10} parent=0 // pred_check_branch
    %19 = sbr.rel (0) target = $region13
  $region12: #{graphnet_forward.10} parent=0 // pred_region
    _
  $region13: #{graphnet_forward.10} parent=0 // pred_fallthru
    _
  // Predicated region
  $region14: #{graphnet_forward.10} parent=0 // pred_check
    _
  $region15: #{graphnet_forward.10} parent=0 // pred_check_branch
    %21 = sbr.rel (0) target = $region17
  $region16: #{graphnet_forward.10} parent=0 // pred_region
    _
  $region17: #{graphnet_forward.10} parent=0 // pred_fallthru
    _
  // Predicated region
  $region18: #{graphnet_forward.10} parent=0 // pred_check
    _
  $region19: #{graphnet_forward.10} parent=0 // pred_check_branch
    %23 = sbr.rel (0) target = $region21
  $region20: #{graphnet_forward.10} parent=0 // pred_region
    _
  $region21: #{graphnet_forward.10} parent=0 // pred_fallthru
    _
  // Predicated region
  $region22: #{graphnet_forward.10} parent=0 // pred_check
    _
  $region23: #{graphnet_forward.10} parent=0 // pred_check_branch
    %25 = sbr.rel (0) target = $region25
  $region24: #{graphnet_forward.10} parent=0 // pred_region
    _
  $region25: #{graphnet_forward.10} parent=0 // pred_fallthru
    _
  // Predicated region
  $region26: #{graphnet_forward.10} parent=0 // pred_check
    _
  $region27: #{graphnet_forward.10} parent=0 // pred_check_branch
    %27 = sbr.rel (0) target = $region29
  $region28: #{graphnet_forward.10} parent=0 // pred_region
    _
  $region29: #{graphnet_forward.10} parent=0 // pred_fallthru
    _
  // Predicated region
  $region30: #{graphnet_forward.10} parent=0 // pred_check
    _
  $region31: #{graphnet_forward.10} parent=0 // pred_check_branch
    %29 = sbr.rel (0) target = $region33
  $region32: #{graphnet_forward.10} parent=0 // pred_region
    _
  $region33: #{graphnet_forward.10} parent=0 // pred_fallthru
    _
  // Predicated region
  $region34: #{graphnet_forward.10} parent=0 // pred_check
    _
  $region35: #{graphnet_forward.10} parent=0 // pred_check_branch
    %31 = sbr.rel (0) target = $region37
  $region36: #{graphnet_forward.10} parent=0 // pred_region
    _
  $region37: #{graphnet_forward.10} parent=0 // pred_fallthru
    _
  %v33 = vld [vmem:[%s0] sm:$0xff]
  %v34 = vld [vmem:[%s0 + $0x8] sm:$0xff]
  %v35 = vpack.c.bf16 %v34, %v33
  %v36 = vld [vmem:[%s1] sm:$0x7]
  %v37 = vld [vmem:[%s2] sm:$0x1]
  %v39 = vperm.slane %v37, 0
  %vm41 = vcmask 39936
  %v43 = vsel %vm41, %v35, 0
  %vm45 = vcmask 1041408
  %vm46 = vcmask 1042432
  %v47 = vsel %vm45, 4294967295, 65535
  %v48 = vsel %vm46, %v47, 0
  %v50 = vand.u32 %v36, %v48
  %52 = vmatpush.bf16.msra.mxu0 0
  %53 = vmatpush.bf16.msra.mxu0 0
  %54 = vmatpush.bf16.msra.mxu0 0
  %55 = vmatpush.bf16.msra.mxu0 0
  %56 = vmatpush.bf16.msra.mxu0 0
  %57 = vmatpush.bf16.msra.mxu0 0
  %58 = vmatpush.bf16.msra.mxu0 0
  %59 = vmatpush.bf16.msra.mxu0 %v50
  %60 = vmatmul.bf16.gmra.mxu0 %v43
  %v61 = vpop.f32.mrf.mxu0
  %v62 = vadd.f32 %v39, %v61
  %v63 = vpop.f32.mrf.mxu0
  %v64 = vadd.f32 %v39, %v63
  %65 = vdwg.mxu0
  %v66 = vmul.f32 %v62, %v62
  %v67 = vmul.f32 %v64, %v64
  %v68 = vmul.f32 %v62, %v66
  %v69 = vmul.f32 %v64, %v67
  %v70 = vmul.f32 %v68, 0.044715
  %v71 = vmul.f32 %v69, 0.044715
  %v72 = vadd.f32 %v62, %v70
  %v73 = vadd.f32 %v64, %v71
  %v74 = vmul.f32 %v72, 0.7978846
  %v75 = vmul.f32 %v73, 0.7978846
  %v76 = vtanh.pop %v74
  %v77 = vtanh.pop %v75
  %v78 = vadd.f32 %v76, 1.0
  %v79 = vadd.f32 %v77, 1.0
  %v80 = vmul.f32 %v78, 0.5
  %v81 = vmul.f32 %v79, 0.5
  %v82 = vmul.f32 %v62, %v80
  %v83 = vmul.f32 %v64, %v81
  %v84 = vpack.c.bf16 %v83, %v82
  %v85 = vld [vmem:[%s3] sm:$0xf]
  %v86 = vld [vmem:[%s3 + $0x4] sm:$0xf]
  %v87 = vld [vmem:[%s3 + $0x8] sm:$0xf]
  %v88 = vld [vmem:[%s3 + $0xc] sm:$0xf]
  %v89 = vld [vmem:[%s3 + $0x10] sm:$0xf]
  %v90 = vld [vmem:[%s3 + $0x14] sm:$0xf]
  %v91 = vld [vmem:[%s3 + $0x18] sm:$0xf]
  %v92 = vld [vmem:[%s3 + $0x1c] sm:$0xf]
  %v93 = vld [vmem:[%s3 + $0x20] sm:$0xf]
  %v94 = vld [vmem:[%s3 + $0x24] sm:$0xf]
  %v95 = vld [vmem:[%s3 + $0x28] sm:$0xf]
  %v96 = vld [vmem:[%s3 + $0x2c] sm:$0xf]
  %v97 = vld [vmem:[%s3 + $0x30] sm:$0xf]
  %v98 = vld [vmem:[%s3 + $0x34] sm:$0xf]
  %v99 = vld [vmem:[%s3 + $0x38] sm:$0xf]
  %v100 = vld [vmem:[%s3 + $0x3c] sm:$0xf]
  %v101 = vld [vmem:[%s4] sm:$0x1]
  %v103 = vperm.slane %v101, 0
  %v121 = vunpack.c.l.b16 %v85
  %v122 = vunpack.c.l.b16 %v86
  %v123 = vunpack.c.l.b16 %v87
  %v124 = vunpack.c.l.b16 %v88
  %v125 = vunpack.c.l.b16 %v89
  %v126 = vunpack.c.l.b16 %v90
  %v127 = vunpack.c.l.b16 %v91
  %v128 = vunpack.c.l.b16 %v92
  %v129 = vunpack.c.l.b16 %v93
  %v130 = vunpack.c.l.b16 %v94
  %v131 = vunpack.c.l.b16 %v95
  %v132 = vunpack.c.l.b16 %v96
  %v133 = vunpack.c.l.b16 %v97
  %v134 = vunpack.c.l.b16 %v98
  %v135 = vunpack.c.l.b16 %v99
  %v136 = vunpack.c.l.b16 %v100
  %v137 = vpack.c.b16 %v122, %v121
  %v138 = vpack.c.b16 %v124, %v123
  %v139 = vpack.c.b16 %v126, %v125
  %v140 = vpack.c.b16 %v128, %v127
  %v141 = vpack.c.b16 %v130, %v129
  %v142 = vpack.c.b16 %v132, %v131
  %v143 = vpack.c.b16 %v134, %v133
  %v144 = vpack.c.b16 %v136, %v135
  %153 = vmatpush.bf16.msra.mxu0 %v144
  %154 = vmatpush.bf16.msra.mxu0 %v143
  %155 = vmatpush.bf16.msra.mxu0 %v142
  %156 = vmatpush.bf16.msra.mxu0 %v141
  %157 = vmatpush.bf16.msra.mxu0 %v140
  %158 = vmatpush.bf16.msra.mxu0 %v139
  %159 = vmatpush.bf16.msra.mxu0 %v138
  %160 = vmatpush.bf16.msra.mxu0 %v137
  %161 = vmatmul.bf16.gmra.mxu0 %v84
  %v162 = vpop.f32.mrf.mxu0
  %v163 = vadd.f32 %v103, %v162
  %v164 = vpop.f32.mrf.mxu0
  %v165 = vadd.f32 %v103, %v164
  %166 = vdwg.mxu0
  %v167 = vmul.f32 %v163, %v163
  %v168 = vmul.f32 %v165, %v165
  %v169 = vmul.f32 %v163, %v167
  %v170 = vmul.f32 %v165, %v168
  %v171 = vmul.f32 %v169, 0.044715
  %v172 = vmul.f32 %v170, 0.044715
  %v173 = vadd.f32 %v163, %v171
  %v174 = vadd.f32 %v165, %v172
  %v175 = vmul.f32 %v173, 0.7978846
  %v176 = vmul.f32 %v174, 0.7978846
  %v177 = vtanh.pop %v175
  %v178 = vtanh.pop %v176
  %v179 = vadd.f32 %v177, 1.0
  %v180 = vadd.f32 %v178, 1.0
  %v181 = vmul.f32 %v179, 0.5
  %v182 = vmul.f32 %v180, 0.5
  %v183 = vmul.f32 %v163, %v181
  %v184 = vmul.f32 %v165, %v182
  %v185 = vpack.c.bf16 %v184, %v183
  %v186 = vld [vmem:[%s5] sm:$0xf]
  %v187 = vld [vmem:[%s5 + $0x4] sm:$0xf]
  %v188 = vld [vmem:[%s5 + $0x8] sm:$0xf]
  %v189 = vld [vmem:[%s5 + $0xc] sm:$0xf]
  %v190 = vld [vmem:[%s5 + $0x10] sm:$0xf]
  %v191 = vld [vmem:[%s5 + $0x14] sm:$0xf]
  %v192 = vld [vmem:[%s5 + $0x18] sm:$0xf]
  %v193 = vld [vmem:[%s5 + $0x1c] sm:$0xf]
  %v194 = vld [vmem:[%s5 + $0x20] sm:$0xf]
  %v195 = vld [vmem:[%s5 + $0x24] sm:$0xf]
  %v196 = vld [vmem:[%s5 + $0x28] sm:$0xf]
  %v197 = vld [vmem:[%s5 + $0x2c] sm:$0xf]
  %v198 = vld [vmem:[%s5 + $0x30] sm:$0xf]
  %v199 = vld [vmem:[%s5 + $0x34] sm:$0xf]
  %v200 = vld [vmem:[%s5 + $0x38] sm:$0xf]
  %v201 = vld [vmem:[%s5 + $0x3c] sm:$0xf]
  %v202 = vld [vmem:[%s6] sm:$0x1]
  %v204 = vperm.slane %v202, 0
  %v222 = vunpack.c.l.b16 %v186
  %v223 = vunpack.c.l.b16 %v187
  %v224 = vunpack.c.l.b16 %v188
  %v225 = vunpack.c.l.b16 %v189
  %v226 = vunpack.c.l.b16 %v190
  %v227 = vunpack.c.l.b16 %v191
  %v228 = vunpack.c.l.b16 %v192
  %v229 = vunpack.c.l.b16 %v193
  %v230 = vunpack.c.l.b16 %v194
  %v231 = vunpack.c.l.b16 %v195
  %v232 = vunpack.c.l.b16 %v196
  %v233 = vunpack.c.l.b16 %v197
  %v234 = vunpack.c.l.b16 %v198
  %v235 = vunpack.c.l.b16 %v199
  %v236 = vunpack.c.l.b16 %v200
  %v237 = vunpack.c.l.b16 %v201
  %v238 = vpack.c.b16 %v223, %v222
  %v239 = vpack.c.b16 %v225, %v224
  %v240 = vpack.c.b16 %v227, %v226
  %v241 = vpack.c.b16 %v229, %v228
  %v242 = vpack.c.b16 %v231, %v230
  %v243 = vpack.c.b16 %v233, %v232
  %v244 = vpack.c.b16 %v235, %v234
  %v245 = vpack.c.b16 %v237, %v236
  %254 = vmatpush.bf16.msra.mxu0 %v245
  %255 = vmatpush.bf16.msra.mxu0 %v244
  %256 = vmatpush.bf16.msra.mxu0 %v243
  %257 = vmatpush.bf16.msra.mxu0 %v242
  %258 = vmatpush.bf16.msra.mxu0 %v241
  %259 = vmatpush.bf16.msra.mxu0 %v240
  %260 = vmatpush.bf16.msra.mxu0 %v239
  %261 = vmatpush.bf16.msra.mxu0 %v238
  %262 = vmatmul.bf16.gmra.mxu0 %v185
  %v263 = vpop.f32.mrf.mxu0
  %v264 = vadd.f32 %v204, %v263
  %v265 = vpop.f32.mrf.mxu0
  %v266 = vadd.f32 %v204, %v265
  %267 = vdwg.mxu0
  %268 = vadd.xlane.f32.xlu0 %v264
  %v269 = vpop.xlane.xlu0 %268
  %270 = vadd.xlane.f32.xlu0 %v266
  %v271 = vpop.xlane.xlu0 %270
  %v272 = vmul.f32 %v269, 0.03125
  %v273 = vmul.f32 %v271, 0.03125
  %v274 = vmul.f32 %v264, %v264
  %v275 = vmul.f32 %v266, %v266
  %276 = vadd.xlane.f32.xlu0 %v274
  %v277 = vpop.xlane.xlu0 %276
  %278 = vadd.xlane.f32.xlu0 %v275
  %v279 = vpop.xlane.xlu0 %278
  %v280 = vmul.f32 %v277, 0.03125
  %v281 = vmul.f32 %v279, 0.03125
  %v282 = vmul.f32 %v272, %v272
  %v283 = vmul.f32 %v273, %v273
  %v284 = vsub.f32 %v280, %v282
  %v285 = vsub.f32 %v281, %v283
  %v286 = vsub.f32 %v264, %v272
  %v287 = vsub.f32 %v266, %v273
  %v288 = vadd.f32 %v284, 1e-05
  %v289 = vadd.f32 %v285, 1e-05
  %v290 = vrsqrt.pop %v288
  %v291 = vmul.f32 %v290, %v288
  %v292 = vmul.f32 %v291, %v290
  %v293 = vmul.f32 0.5, %v292
  %v294 = vsub.f32 1.5, %v293
  %v295 = vmul.f32 %v290, %v294
  %vm296 = vweird.f32 %v288
  %vm297 = vweird.f32 %v290
  %vm298 = vmor %vm296, %vm297
  %v299 = vsel %vm298, %v290, %v295
  %v300 = vrsqrt.pop %v289
  %v301 = vmul.f32 %v300, %v289
  %v302 = vmul.f32 %v301, %v300
  %v303 = vmul.f32 0.5, %v302
  %v304 = vsub.f32 1.5, %v303
  %v305 = vmul.f32 %v300, %v304
  %vm306 = vweird.f32 %v289
  %vm307 = vweird.f32 %v300
  %vm308 = vmor %vm306, %vm307
  %v309 = vsel %vm308, %v300, %v305
  %v310 = vmul.f32 %v286, %v299
  %v311 = vmul.f32 %v287, %v309
  %v312 = vld [vmem:[%s7] sm:$0x1]
  %v314 = vperm.slane %v312, 0
  %v316 = vmul.f32 %v310, %v314
  %v317 = vmul.f32 %v311, %v314
  %v318 = vld [vmem:[%s8] sm:$0x1]
  %v320 = vperm.slane %v318, 0
  %v322 = vadd.f32 %v316, %v320
  %v323 = vadd.f32 %v317, %v320
  %v324 = vpack.c.bf16 %v322, %v322
  %v325 = vpack.c.bf16 %v323, %v323
  %326 = vst [vmem:[%s9] sm:$0xf] %v324
  %327 = vst [vmem:[%s9 + $0x4] sm:$0xf] %v325
  // Predicated region
  $region38: #{graphnet_forward.10} parent=0 // pred_check
    _
  $region39: #{graphnet_forward.10} parent=0 // pred_check_branch
    %329 = sbr.rel (0) target = $region41
  $region40: #{graphnet_forward.10} parent=0 // pred_region
    _
  $region41: #{graphnet_forward.10} parent=0 // pred_fallthru
    _
  // Predicated region
  $region42: #{graphnet_forward.10} parent=0 // pred_check
    _
  $region43: #{graphnet_forward.10} parent=0 // pred_check_branch
    %331 = sbr.rel (0) target = $region45
  $region44: #{graphnet_forward.10} parent=0 // pred_region
    _
  $region45: #{graphnet_forward.10} parent=0 // pred_fallthru
    _

// kernel: graphnet_forward.9
$region0: #{graphnet_forward.9}
  #allocation0 [shape = 'u32[]', space=smem, size = 0x4, offset = 0x4, fixed_abs, tag = 'smem constant byte address 0x4 - core index']
  #allocation1 [shape = 'u32[72,128]{1,0:T(1,128)}', space=vmem, size = 0x9000, scoped, tag = 'internal scratch']
  %s0 = inlined_call_operand.vmem [shape: f32[64,3], index: 0, kind: input, shape index: {}]
  %s1 = inlined_call_operand.vmem [shape: bf16[3,128], index: 1, kind: input, shape index: {}]
  %s2 = inlined_call_operand.vmem [shape: f32[1,128], index: 2, kind: input, shape index: {}]
  %s3 = inlined_call_operand.vmem [shape: bf16[128,128], index: 3, kind: input, shape index: {}]
  %s4 = inlined_call_operand.vmem [shape: f32[1,128], index: 4, kind: input, shape index: {}]
  %s5 = inlined_call_operand.vmem [shape: bf16[128,128], index: 5, kind: input, shape index: {}]
  %s6 = inlined_call_operand.vmem [shape: f32[1,128], index: 6, kind: input, shape index: {}]
  %s7 = inlined_call_operand.vmem [shape: f32[1,128], index: 7, kind: input, shape index: {}]
  %s8 = inlined_call_operand.vmem [shape: f32[1,128], index: 8, kind: input, shape index: {}]
  %s9 = inlined_call_operand.vmem [shape: bf16[64,128], index: 9, kind: output, shape index: {}]
  %s10 = sld [smem:[#allocation0]]
  $region69: #{graphnet_forward.9} parent=0
    _
  %s12 = ssub.s32 1, %s10
  %s13 = scalar_select 0, %s12, %s10
  loop: start=0, step=1, limit=4
  $region2: #{graphnet_forward.9} parent=0 // loop_pre_header
    _
  $region3: #{graphnet_forward.9} parent=0 // loop_header
    %s15 = sphi 0, %s19
    %p16 = scmp.ge.s32.totalorder %s15, 4
    %s25 = sphi 0, %s27
    %s28 = sphi 0, %s25
    %s29 = sphi 0, %s28
    %s45 = sphi 0, %s29
    %s49 = sphi 0, %s49
    %s51 = sphi 0, %s49
    %s52 = sphi 0, %s51
    %s66 = sphi 0, %s52
    %s70 = sphi 0, %s70
    %s72 = sphi 0, %s70
    %s73 = sphi 0, %s72
    %s87 = sphi 0, %s73
    %s91 = sphi 0, %s91
    %s93 = sphi 0, %s91
    %s94 = sphi 0, %s93
    %s108 = sphi 0, %s94
    %s112 = sphi 0, %s112
    %s114 = sphi 0, %s112
    %s115 = sphi 0, %s114
    %s129 = sphi 0, %s115
    %s133 = sphi 0, %s133
    %s135 = sphi 0, %s133
    %s136 = sphi 0, %s135
    %s150 = sphi 0, %s136
    %s154 = sphi 0, %s154
    %s156 = sphi 0, %s154
    %s157 = sphi 0, %s156
    %s171 = sphi 0, %s157
    %s175 = sphi 0, %s175
    %s177 = sphi 0, %s175
    %s178 = sphi 0, %s177
    %s192 = sphi 0, %s178
    %s196 = sphi 0, %s196
    %s198 = sphi 0, %s196
    %s199 = sphi 0, %s198
    %s213 = sphi 0, %s199
    %s219 = sphi 0, %s221
    %s222 = sphi 0, %s219
    %s223 = sphi 0, %s222
    %s239 = sphi 0, %s223
  $region4: #{graphnet_forward.9} parent=0 // loop_header_branch
    %18 = sbr.rel (%p16) target = $region8
  $region5: #{graphnet_forward.9} parent=0 // loop_body
    %s20 = ssub.s32 %s15, 1
    %s21 = ssub.s32 %s15, 2
    %s22 = sadd.s32 %s15, 1
    %s23 = ssub.s32 %s15, %s22
    %p24 = scmp.eq.s32.totalorder %s23, 0
    %s26 = sadd.s32 %s25, 1
    %s27 = scalar_select %p24, %s25, %s26
    %p30 = pneg %p24
    %p31 = scmp.eq.s32.totalorder %s15, 1
    %p32 = por %p30, %p31
    %p33 = scmp.ne.s32.totalorder %s25, %s28
    %p34 = scmp.eq.s32.totalorder %s15, 0
    %p35 = por %p33, %p34
    %p36 = scmp.ne.s32.totalorder %s25, %s28
    %p37 = scmp.eq.s32.totalorder %s20, 1
    %p38 = por %p36, %p37
    %p39 = scmp.ne.s32.totalorder %s28, %s29
    %p40 = scmp.eq.s32.totalorder %s20, 0
    %p41 = por %p39, %p40
    %p42 = scmp.ne.s32.totalorder %s28, %s29
    %p43 = scmp.eq.s32.totalorder %s21, 1
    %p44 = por %p42, %p43
    %p46 = scmp.ne.s32.totalorder %s29, %s45
    %p47 = scmp.eq.s32.totalorder %s21, 0
    %p48 = por %p46, %p47
    %s50 = sadd.s32 %s49, 1
    %p53 = scmp.eq.s32.totalorder %s15, 1
    %p54 = scmp.ne.s32.totalorder %s49, %s51
    %p55 = scmp.eq.s32.totalorder %s15, 0
    %p56 = por %p54, %p55
    %p57 = scmp.ne.s32.totalorder %s49, %s51
    %p58 = scmp.eq.s32.totalorder %s20, 1
    %p59 = por %p57, %p58
    %p60 = scmp.ne.s32.totalorder %s51, %s52
    %p61 = scmp.eq.s32.totalorder %s20, 0
    %p62 = por %p60, %p61
    %p63 = scmp.ne.s32.totalorder %s51, %s52
    %p64 = scmp.eq.s32.totalorder %s21, 1
    %p65 = por %p63, %p64
    %p67 = scmp.ne.s32.totalorder %s52, %s66
    %p68 = scmp.eq.s32.totalorder %s21, 0
    %p69 = por %p67, %p68
    %s71 = sadd.s32 %s70, 1
    %p74 = scmp.eq.s32.totalorder %s15, 1
    %p75 = scmp.ne.s32.totalorder %s70, %s72
    %p76 = scmp.eq.s32.totalorder %s15, 0
    %p77 = por %p75, %p76
    %p78 = scmp.ne.s32.totalorder %s70, %s72
    %p79 = scmp.eq.s32.totalorder %s20, 1
    %p80 = por %p78, %p79
    %p81 = scmp.ne.s32.totalorder %s72, %s73
    %p82 = scmp.eq.s32.totalorder %s20, 0
    %p83 = por %p81, %p82
    %p84 = scmp.ne.s32.totalorder %s72, %s73
    %p85 = scmp.eq.s32.totalorder %s21, 1
    %p86 = por %p84, %p85
    %p88 = scmp.ne.s32.totalorder %s73, %s87
    %p89 = scmp.eq.s32.totalorder %s21, 0
    %p90 = por %p88, %p89
    %s92 = sadd.s32 %s91, 1
    %p95 = scmp.eq.s32.totalorder %s15, 1
    %p96 = scmp.ne.s32.totalorder %s91, %s93
    %p97 = scmp.eq.s32.totalorder %s15, 0
    %p98 = por %p96, %p97
    %p99 = scmp.ne.s32.totalorder %s91, %s93
    %p100 = scmp.eq.s32.totalorder %s20, 1
    %p101 = por %p99, %p100
    %p102 = scmp.ne.s32.totalorder %s93, %s94
    %p103 = scmp.eq.s32.totalorder %s20, 0
    %p104 = por %p102, %p103
    %p105 = scmp.ne.s32.totalorder %s93, %s94
    %p106 = scmp.eq.s32.totalorder %s21, 1
    %p107 = por %p105, %p106
    %p109 = scmp.ne.s32.totalorder %s94, %s108
    %p110 = scmp.eq.s32.totalorder %s21, 0
    %p111 = por %p109, %p110
    %s113 = sadd.s32 %s112, 1
    %p116 = scmp.eq.s32.totalorder %s15, 1
    %p117 = scmp.ne.s32.totalorder %s112, %s114
    %p118 = scmp.eq.s32.totalorder %s15, 0
    %p119 = por %p117, %p118
    %p120 = scmp.ne.s32.totalorder %s112, %s114
    %p121 = scmp.eq.s32.totalorder %s20, 1
    %p122 = por %p120, %p121
    %p123 = scmp.ne.s32.totalorder %s114, %s115
    %p124 = scmp.eq.s32.totalorder %s20, 0
    %p125 = por %p123, %p124
    %p126 = scmp.ne.s32.totalorder %s114, %s115
    %p127 = scmp.eq.s32.totalorder %s21, 1
    %p128 = por %p126, %p127
    %p130 = scmp.ne.s32.totalorder %s115, %s129
    %p131 = scmp.eq.s32.totalorder %s21, 0
    %p132 = por %p130, %p131
    %s134 = sadd.s32 %s133, 1
    %p137 = scmp.eq.s32.totalorder %s15, 1
    %p138 = scmp.ne.s32.totalorder %s133, %s135
    %p139 = scmp.eq.s32.totalorder %s15, 0
    %p140 = por %p138, %p139
    %p141 = scmp.ne.s32.totalorder %s133, %s135
    %p142 = scmp.eq.s32.totalorder %s20, 1
    %p143 = por %p141, %p142
    %p144 = scmp.ne.s32.totalorder %s135, %s136
    %p145 = scmp.eq.s32.totalorder %s20, 0
    %p146 = por %p144, %p145
    %p147 = scmp.ne.s32.totalorder %s135, %s136
    %p148 = scmp.eq.s32.totalorder %s21, 1
    %p149 = por %p147, %p148
    %p151 = scmp.ne.s32.totalorder %s136, %s150
    %p152 = scmp.eq.s32.totalorder %s21, 0
    %p153 = por %p151, %p152
    %s155 = sadd.s32 %s154, 1
    %p158 = scmp.eq.s32.totalorder %s15, 1
    %p159 = scmp.ne.s32.totalorder %s154, %s156
    %p160 = scmp.eq.s32.totalorder %s15, 0
    %p161 = por %p159, %p160
    %p162 = scmp.ne.s32.totalorder %s154, %s156
    %p163 = scmp.eq.s32.totalorder %s20, 1
    %p164 = por %p162, %p163
    %p165 = scmp.ne.s32.totalorder %s156, %s157
    %p166 = scmp.eq.s32.totalorder %s20, 0
    %p167 = por %p165, %p166
    %p168 = scmp.ne.s32.totalorder %s156, %s157
    %p169 = scmp.eq.s32.totalorder %s21, 1
    %p170 = por %p168, %p169
    %p172 = scmp.ne.s32.totalorder %s157, %s171
    %p173 = scmp.eq.s32.totalorder %s21, 0
    %p174 = por %p172, %p173
    %s176 = sadd.s32 %s175, 1
    %p179 = scmp.eq.s32.totalorder %s15, 1
    %p180 = scmp.ne.s32.totalorder %s175, %s177
    %p181 = scmp.eq.s32.totalorder %s15, 0
    %p182 = por %p180, %p181
    %p183 = scmp.ne.s32.totalorder %s175, %s177
    %p184 = scmp.eq.s32.totalorder %s20, 1
    %p185 = por %p183, %p184
    %p186 = scmp.ne.s32.totalorder %s177, %s178
    %p187 = scmp.eq.s32.totalorder %s20, 0
    %p188 = por %p186, %p187
    %p189 = scmp.ne.s32.totalorder %s177, %s178
    %p190 = scmp.eq.s32.totalorder %s21, 1
    %p191 = por %p189, %p190
    %p193 = scmp.ne.s32.totalorder %s178, %s192
    %p194 = scmp.eq.s32.totalorder %s21, 0
    %p195 = por %p193, %p194
    %s197 = sadd.s32 %s196, 1
    %p200 = scmp.eq.s32.totalorder %s15, 1
    %p201 = scmp.ne.s32.totalorder %s196, %s198
    %p202 = scmp.eq.s32.totalorder %s15, 0
    %p203 = por %p201, %p202
    %p204 = scmp.ne.s32.totalorder %s196, %s198
    %p205 = scmp.eq.s32.totalorder %s20, 1
    %p206 = por %p204, %p205
    %p207 = scmp.ne.s32.totalorder %s198, %s199
    %p208 = scmp.eq.s32.totalorder %s20, 0
    %p209 = por %p207, %p208
    %p210 = scmp.ne.s32.totalorder %s198, %s199
    %p211 = scmp.eq.s32.totalorder %s21, 1
    %p212 = por %p210, %p211
    %p214 = scmp.ne.s32.totalorder %s199, %s213
    %p215 = scmp.eq.s32.totalorder %s21, 0
    %p216 = por %p214, %p215
    %s217 = ssub.s32 %s15, %s22
    %p218 = scmp.eq.s32.totalorder %s217, 0
    %s220 = sadd.s32 %s219, 1
    %s221 = scalar_select %p218, %s219, %s220
    %p224 = pneg %p218
    %p225 = scmp.eq.s32.totalorder %s15, 1
    %p226 = por %p224, %p225
    %p227 = scmp.ne.s32.totalorder %s219, %s222
    %p228 = scmp.eq.s32.totalorder %s15, 0
    %p229 = por %p227, %p228
    %p230 = scmp.ne.s32.totalorder %s219, %s222
    %p231 = scmp.eq.s32.totalorder %s20, 1
    %p232 = por %p230, %p231
    %p233 = scmp.ne.s32.totalorder %s222, %s223
    %p234 = scmp.eq.s32.totalorder %s20, 0
    %p235 = por %p233, %p234
    %p236 = scmp.ne.s32.totalorder %s222, %s223
    %p237 = scmp.eq.s32.totalorder %s21, 1
    %p238 = por %p236, %p237
    %p240 = scmp.ne.s32.totalorder %s223, %s239
    %p241 = scmp.eq.s32.totalorder %s21, 0
    %p242 = por %p240, %p241
    %p243 = scmp.le.s32.totalorder 1, %s15
    %p244 = scmp.lt.s32.totalorder %s15, 3
    %p245 = pnand %p243, %p244
    %p246 = pneg %p245
    // Predicated region
    $region9: #{graphnet_forward.9} parent=5 // pred_check
      _
    $region10: #{graphnet_forward.9} parent=5 // pred_check_branch
      %248 = sbr.rel (%p245) target = $region12
    $region11: #{graphnet_forward.9} parent=5 // pred_region
      %s249 = ssub.s32 %s15, 1
      // Predicated region
      $region13: #{graphnet_forward.9} parent=11 // pred_check
        %p250 = pneg %p62
      $region14: #{graphnet_forward.9} parent=11 // pred_check_branch
        %252 = sbr.rel (%p250) target = $region16
      $region15: #{graphnet_forward.9} parent=11 // pred_region
        _
      $region16: #{graphnet_forward.9} parent=11 // pred_fallthru
        _
      // Predicated region
      $region17: #{graphnet_forward.9} parent=11 // pred_check
        %p253 = pneg %p83
      $region18: #{graphnet_forward.9} parent=11 // pred_check_branch
        %255 = sbr.rel (%p253) target = $region20
      $region19: #{graphnet_forward.9} parent=11 // pred_region
        _
      $region20: #{graphnet_forward.9} parent=11 // pred_fallthru
        _
      // Predicated region
      $region21: #{graphnet_forward.9} parent=11 // pred_check
        %p256 = pneg %p104
      $region22: #{graphnet_forward.9} parent=11 // pred_check_branch
        %258 = sbr.rel (%p256) target = $region24
      $region23: #{graphnet_forward.9} parent=11 // pred_region
        _
      $region24: #{graphnet_forward.9} parent=11 // pred_fallthru
        _
      // Predicated region
      $region25: #{graphnet_forward.9} parent=11 // pred_check
        %p259 = pneg %p125
      $region26: #{graphnet_forward.9} parent=11 // pred_check_branch
        %261 = sbr.rel (%p259) target = $region28
      $region27: #{graphnet_forward.9} parent=11 // pred_region
        _
      $region28: #{graphnet_forward.9} parent=11 // pred_fallthru
        _
      // Predicated region
      $region29: #{graphnet_forward.9} parent=11 // pred_check
        %p262 = pneg %p146
      $region30: #{graphnet_forward.9} parent=11 // pred_check_branch
        %264 = sbr.rel (%p262) target = $region32
      $region31: #{graphnet_forward.9} parent=11 // pred_region
        _
      $region32: #{graphnet_forward.9} parent=11 // pred_fallthru
        _
      // Predicated region
      $region33: #{graphnet_forward.9} parent=11 // pred_check
        %p265 = pneg %p167
      $region34: #{graphnet_forward.9} parent=11 // pred_check_branch
        %267 = sbr.rel (%p265) target = $region36
      $region35: #{graphnet_forward.9} parent=11 // pred_region
        _
      $region36: #{graphnet_forward.9} parent=11 // pred_fallthru
        _
      // Predicated region
      $region37: #{graphnet_forward.9} parent=11 // pred_check
        %p268 = pneg %p188
      $region38: #{graphnet_forward.9} parent=11 // pred_check_branch
        %270 = sbr.rel (%p268) target = $region40
      $region39: #{graphnet_forward.9} parent=11 // pred_region
        _
      $region40: #{graphnet_forward.9} parent=11 // pred_fallthru
        _
      // Predicated region
      $region41: #{graphnet_forward.9} parent=11 // pred_check
        %p271 = pneg %p209
      $region42: #{graphnet_forward.9} parent=11 // pred_check_branch
        %273 = sbr.rel (%p271) target = $region44
      $region43: #{graphnet_forward.9} parent=11 // pred_region
        _
      $region44: #{graphnet_forward.9} parent=11 // pred_fallthru
        _
    $region12: #{graphnet_forward.9} parent=5 // pred_fallthru
      _
    %p274 = scmp.lt.s32.totalorder %s15, 2
    // Predicated region
    $region45: #{graphnet_forward.9} parent=5 // pred_check
      %p275 = pneg %p274
    $region46: #{graphnet_forward.9} parent=5 // pred_check_branch
      %277 = sbr.rel (%p275) target = $region48
    $region47: #{graphnet_forward.9} parent=5 // pred_region
      // Predicated region
      $region49: #{graphnet_forward.9} parent=47 // pred_check
        %p278 = pneg %p35
      $region50: #{graphnet_forward.9} parent=47 // pred_check_branch
        %280 = sbr.rel (%p278) target = $region52
      $region51: #{graphnet_forward.9} parent=47 // pred_region
        %s281 = smul.u32 4, %s15
        %p282 = scmp.lt.s32.totalorder %s281, 7
        %s283 = scalar_select %p282, %s281, 7
        %s284 = smul.addr %s283, 8
        %s285 = scalar_lea.vmem %s0, %s284
        %s286 = smul.u32 4, %s15
      $region52: #{graphnet_forward.9} parent=47 // pred_fallthru
        _
    $region48: #{graphnet_forward.9} parent=5 // pred_fallthru
      _
    %p287 = scmp.le.s32.totalorder 1, %s15
    %p288 = scmp.lt.s32.totalorder %s15, 3
    %p289 = pnand %p287, %p288
    %p290 = pneg %p289
    // Predicated region
    $region53: #{graphnet_forward.9} parent=5 // pred_check
      _
    $region54: #{graphnet_forward.9} parent=5 // pred_check_branch
      %292 = sbr.rel (%p289) target = $region56
    $region55: #{graphnet_forward.9} parent=5 // pred_region
      %s293 = ssub.s32 %s15, 1
      %s294 = smul.u32 4, %s20
      %p295 = scmp.lt.s32.totalorder %s294, 7
      %s296 = scalar_select %p295, %s294, 7
      %s297 = smul.addr %s296, 8
      %s298 = scalar_lea.vmem %s0, %s297
      %p299 = pneg %p41
      %p300 = pneg %p38
      %p301 = pneg %p62
      %p302 = pneg %p59
      %p303 = pneg %p83
      %p304 = pneg %p80
      %p305 = pneg %p104
      %p306 = pneg %p101
      %p307 = pneg %p125
      %p308 = pneg %p122
      %p309 = pneg %p146
      %p310 = pneg %p143
      %p311 = pneg %p167
      %p312 = pneg %p164
      %p313 = pneg %p188
      %p314 = pneg %p185
      %p315 = pneg %p209
      %p316 = pneg %p206
      %p317 = pneg %p235
      %p318 = pneg %p232
      %s319 = smul.u32 4, %s20
      %p320 = scmp.lt.s32.totalorder %s319, 7
      %s321 = scalar_select %p320, %s319, 7
      %s322 = smul.addr %s321, 4
      %s323 = scalar_lea.vmem %s9, %s322
      %s324 = smul.u32 4, %s20
      %p325 = scmp.lt.s32.totalorder %s324, 7
      %s326 = scalar_select %p325, %s324, 7
      %s327 = smul.addr %s326, 8
      %s328 = scalar_lea.vmem %s0, %s327
      %s329 = smul.u32 4, %s20
      %s330 = smul.u32 4, %s20
      %p331 = scmp.lt.s32.totalorder %s330, 7
      %s332 = scalar_select %p331, %s330, 7
      %s333 = smul.addr %s332, 4
      %s334 = scalar_lea.vmem %s9, %s333
      %s335 = smul.u32 4, %s20
      %v337 = vld [vmem:[%s328] sm:$0xff]
      %v338 = vld [vmem:[%s328 + $0x8] sm:$0xff]
      %v339 = vld [vmem:[%s328 + $0x10] sm:$0xff]
      %v340 = vld [vmem:[%s328 + $0x18] sm:$0xff]
      %v341 = vpack.c.bf16 %v338, %v337
      %v342 = vpack.c.bf16 %v340, %v339
      %v343 = vld [vmem:[%s1] sm:$0x3]
      %v344 = vld [vmem:[%s2] sm:$0x1]
      %v346 = vperm.slane %v344, 0
      %vm348 = vcmask 23552
      %v350 = vsel %vm348, %v341, 0
      %v353 = vsel %vm348, %v342, 0
      %vm355 = vcmask 1040384
      %vm356 = vcmask 1041408
      %v357 = vsel %vm355, 4294967295, 65535
      %v358 = vsel %vm356, %v357, 0
      %v360 = vand.u32 %v343, %v358
      %362 = vmatpush.bf16.msra.mxu0 0
      %363 = vmatpush.bf16.msra.mxu0 0
      %364 = vmatpush.bf16.msra.mxu0 0
      %365 = vmatpush.bf16.msra.mxu0 0
      %366 = vmatpush.bf16.msra.mxu0 0
      %367 = vmatpush.bf16.msra.mxu0 0
      %368 = vmatpush.bf16.msra.mxu0 0
      %369 = vmatpush.bf16.msra.mxu0 %v360
      %370 = vmatmul.bf16.gmra.mxu0 %v350
      %v371 = vpop.f32.mrf.mxu0
      %v372 = vadd.f32 %v346, %v371
      %v373 = vpop.f32.mrf.mxu0
      %v374 = vadd.f32 %v346, %v373
      %375 = vmatmul.bf16.gmra.mxu0 %v353
      %v376 = vpop.f32.mrf.mxu0
      %v377 = vadd.f32 %v346, %v376
      %v378 = vpop.f32.mrf.mxu0
      %v379 = vadd.f32 %v346, %v378
      %380 = vdwg.mxu0
      %v381 = vmul.f32 %v372, %v372
      %v382 = vmul.f32 %v374, %v374
      %v383 = vmul.f32 %v377, %v377
      %v384 = vmul.f32 %v379, %v379
      %v385 = vmul.f32 %v372, %v381
      %v386 = vmul.f32 %v374, %v382
      %v387 = vmul.f32 %v377, %v383
      %v388 = vmul.f32 %v379, %v384
      %v389 = vmul.f32 %v385, 0.044715
      %v390 = vmul.f32 %v386, 0.044715
      %v391 = vmul.f32 %v387, 0.044715
      %v392 = vmul.f32 %v388, 0.044715
      %v393 = vadd.f32 %v372, %v389
      %v394 = vadd.f32 %v374, %v390
      %v395 = vadd.f32 %v377, %v391
      %v396 = vadd.f32 %v379, %v392
      %v397 = vmul.f32 %v393, 0.7978846
      %v398 = vmul.f32 %v394, 0.7978846
      %v399 = vmul.f32 %v395, 0.7978846
      %v400 = vmul.f32 %v396, 0.7978846
      %v401 = vtanh.pop %v397
      %v402 = vtanh.pop %v398
      %v403 = vtanh.pop %v399
      %v404 = vtanh.pop %v400
      %v405 = vadd.f32 %v401, 1.0
      %v406 = vadd.f32 %v402, 1.0
      %v407 = vadd.f32 %v403, 1.0
      %v408 = vadd.f32 %v404, 1.0
      %v409 = vmul.f32 %v405, 0.5
      %v410 = vmul.f32 %v406, 0.5
      %v411 = vmul.f32 %v407, 0.5
      %v412 = vmul.f32 %v408, 0.5
      %v413 = vmul.f32 %v372, %v409
      %v414 = vmul.f32 %v374, %v410
      %v415 = vmul.f32 %v377, %v411
      %v416 = vmul.f32 %v379, %v412
      %v417 = vpack.c.bf16 %v414, %v413
      %v418 = vpack.c.bf16 %v416, %v415
      %v419 = vld [vmem:[%s3] sm:$0xf]
      %v420 = vld [vmem:[%s3 + $0x4] sm:$0xf]
      %v421 = vld [vmem:[%s3 + $0x8] sm:$0xf]
      %v422 = vld [vmem:[%s3 + $0xc] sm:$0xf]
      %v423 = vld [vmem:[%s3 + $0x10] sm:$0xf]
      %v424 = vld [vmem:[%s3 + $0x14] sm:$0xf]
      %v425 = vld [vmem:[%s3 + $0x18] sm:$0xf]
      %v426 = vld [vmem:[%s3 + $0x1c] sm:$0xf]
      %v427 = vld [vmem:[%s3 + $0x20] sm:$0xf]
      %v428 = vld [vmem:[%s3 + $0x24] sm:$0xf]
      %v429 = vld [vmem:[%s3 + $0x28] sm:$0xf]
      %v430 = vld [vmem:[%s3 + $0x2c] sm:$0xf]
      %v431 = vld [vmem:[%s3 + $0x30] sm:$0xf]
      %v432 = vld [vmem:[%s3 + $0x34] sm:$0xf]
      %v433 = vld [vmem:[%s3 + $0x38] sm:$0xf]
      %v434 = vld [vmem:[%s3 + $0x3c] sm:$0xf]
      %v435 = vld [vmem:[%s4] sm:$0x1]
      %v437 = vperm.slane %v435, 0
      %v455 = vunpack.c.l.b16 %v419
      %v456 = vunpack.c.l.b16 %v420
      %v457 = vunpack.c.l.b16 %v421
      %v458 = vunpack.c.l.b16 %v422
      %v459 = vunpack.c.l.b16 %v423
      %v460 = vunpack.c.l.b16 %v424
      %v461 = vunpack.c.l.b16 %v425
      %v462 = vunpack.c.l.b16 %v426
      %v463 = vunpack.c.l.b16 %v427
      %v464 = vunpack.c.l.b16 %v428
      %v465 = vunpack.c.l.b16 %v429
      %v466 = vunpack.c.l.b16 %v430
      %v467 = vunpack.c.l.b16 %v431
      %v468 = vunpack.c.l.b16 %v432
      %v469 = vunpack.c.l.b16 %v433
      %v470 = vunpack.c.l.b16 %v434
      %v471 = vpack.c.b16 %v456, %v455
      %v472 = vpack.c.b16 %v458, %v457
      %v473 = vpack.c.b16 %v460, %v459
      %v474 = vpack.c.b16 %v462, %v461
      %v475 = vpack.c.b16 %v464, %v463
      %v476 = vpack.c.b16 %v466, %v465
      %v477 = vpack.c.b16 %v468, %v467
      %v478 = vpack.c.b16 %v470, %v469
      %487 = vmatpush.bf16.msra.mxu0 %v478
      %488 = vmatpush.bf16.msra.mxu0 %v477
      %489 = vmatpush.bf16.msra.mxu0 %v476
      %490 = vmatpush.bf16.msra.mxu0 %v475
      %491 = vmatpush.bf16.msra.mxu0 %v474
      %492 = vmatpush.bf16.msra.mxu0 %v473
      %493 = vmatpush.bf16.msra.mxu0 %v472
      %494 = vmatpush.bf16.msra.mxu0 %v471
      %495 = vmatmul.bf16.gmra.mxu0 %v417
      %v496 = vpop.f32.mrf.mxu0
      %v497 = vadd.f32 %v437, %v496
      %v498 = vpop.f32.mrf.mxu0
      %v499 = vadd.f32 %v437, %v498
      %500 = vmatmul.bf16.gmra.mxu0 %v418
      %v501 = vpop.f32.mrf.mxu0
      %v502 = vadd.f32 %v437, %v501
      %v503 = vpop.f32.mrf.mxu0
      %v504 = vadd.f32 %v437, %v503
      %505 = vdwg.mxu0
      %v506 = vmul.f32 %v497, %v497
      %v507 = vmul.f32 %v499, %v499
      %v508 = vmul.f32 %v502, %v502
      %v509 = vmul.f32 %v504, %v504
      %v510 = vmul.f32 %v497, %v506
      %v511 = vmul.f32 %v499, %v507
      %v512 = vmul.f32 %v502, %v508
      %v513 = vmul.f32 %v504, %v509
      %v514 = vmul.f32 %v510, 0.044715
      %v515 = vmul.f32 %v511, 0.044715
      %v516 = vmul.f32 %v512, 0.044715
      %v517 = vmul.f32 %v513, 0.044715
      %v518 = vadd.f32 %v497, %v514
      %v519 = vadd.f32 %v499, %v515
      %v520 = vadd.f32 %v502, %v516
      %v521 = vadd.f32 %v504, %v517
      %v522 = vmul.f32 %v518, 0.7978846
      %v523 = vmul.f32 %v519, 0.7978846
      %v524 = vmul.f32 %v520, 0.7978846
      %v525 = vmul.f32 %v521, 0.7978846
      %v526 = vtanh.pop %v522
      %v527 = vtanh.pop %v523
      %v528 = vtanh.pop %v524
      %v529 = vtanh.pop %v525
      %v530 = vadd.f32 %v526, 1.0
      %v531 = vadd.f32 %v527, 1.0
      %v532 = vadd.f32 %v528, 1.0
      %v533 = vadd.f32 %v529, 1.0
      %v534 = vmul.f32 %v530, 0.5
      %v535 = vmul.f32 %v531, 0.5
      %v536 = vmul.f32 %v532, 0.5
      %v537 = vmul.f32 %v533, 0.5
      %v538 = vmul.f32 %v497, %v534
      %v539 = vmul.f32 %v499, %v535
      %v540 = vmul.f32 %v502, %v536
      %v541 = vmul.f32 %v504, %v537
      %v542 = vpack.c.bf16 %v539, %v538
      %v543 = vpack.c.bf16 %v541, %v540
      %v544 = vld [vmem:[%s5] sm:$0xf]
      %v545 = vld [vmem:[%s5 + $0x4] sm:$0xf]
      %v546 = vld [vmem:[%s5 + $0x8] sm:$0xf]
      %v547 = vld [vmem:[%s5 + $0xc] sm:$0xf]
      %v548 = vld [vmem:[%s5 + $0x10] sm:$0xf]
      %v549 = vld [vmem:[%s5 + $0x14] sm:$0xf]
      %v550 = vld [vmem:[%s5 + $0x18] sm:$0xf]
      %v551 = vld [vmem:[%s5 + $0x1c] sm:$0xf]
      %v552 = vld [vmem:[%s5 + $0x20] sm:$0xf]
      %v553 = vld [vmem:[%s5 + $0x24] sm:$0xf]
      %v554 = vld [vmem:[%s5 + $0x28] sm:$0xf]
      %v555 = vld [vmem:[%s5 + $0x2c] sm:$0xf]
      %v556 = vld [vmem:[%s5 + $0x30] sm:$0xf]
      %v557 = vld [vmem:[%s5 + $0x34] sm:$0xf]
      %v558 = vld [vmem:[%s5 + $0x38] sm:$0xf]
      %v559 = vld [vmem:[%s5 + $0x3c] sm:$0xf]
      %v560 = vld [vmem:[%s6] sm:$0x1]
      %v562 = vperm.slane %v560, 0
      %v580 = vunpack.c.l.b16 %v544
      %v581 = vunpack.c.l.b16 %v545
      %v582 = vunpack.c.l.b16 %v546
      %v583 = vunpack.c.l.b16 %v547
      %v584 = vunpack.c.l.b16 %v548
      %v585 = vunpack.c.l.b16 %v549
      %v586 = vunpack.c.l.b16 %v550
      %v587 = vunpack.c.l.b16 %v551
      %v588 = vunpack.c.l.b16 %v552
      %v589 = vunpack.c.l.b16 %v553
      %v590 = vunpack.c.l.b16 %v554
      %v591 = vunpack.c.l.b16 %v555
      %v592 = vunpack.c.l.b16 %v556
      %v593 = vunpack.c.l.b16 %v557
      %v594 = vunpack.c.l.b16 %v558
      %v595 = vunpack.c.l.b16 %v559
      %v596 = vpack.c.b16 %v581, %v580
      %v597 = vpack.c.b16 %v583, %v582
      %v598 = vpack.c.b16 %v585, %v584
      %v599 = vpack.c.b16 %v587, %v586
      %v600 = vpack.c.b16 %v589, %v588
      %v601 = vpack.c.b16 %v591, %v590
      %v602 = vpack.c.b16 %v593, %v592
      %v603 = vpack.c.b16 %v595, %v594
      %612 = vmatpush.bf16.msra.mxu0 %v603
      %613 = vmatpush.bf16.msra.mxu0 %v602
      %614 = vmatpush.bf16.msra.mxu0 %v601
      %615 = vmatpush.bf16.msra.mxu0 %v600
      %616 = vmatpush.bf16.msra.mxu0 %v599
      %617 = vmatpush.bf16.msra.mxu0 %v598
      %618 = vmatpush.bf16.msra.mxu0 %v597
      %619 = vmatpush.bf16.msra.mxu0 %v596
      %620 = vmatmul.bf16.gmra.mxu0 %v542
      %v621 = vpop.f32.mrf.mxu0
      %v622 = vadd.f32 %v562, %v621
      %v623 = vpop.f32.mrf.mxu0
      %v624 = vadd.f32 %v562, %v623
      %625 = vmatmul.bf16.gmra.mxu0 %v543
      %v626 = vpop.f32.mrf.mxu0
      %v627 = vadd.f32 %v562, %v626
      %v628 = vpop.f32.mrf.mxu0
      %v629 = vadd.f32 %v562, %v628
      %630 = vdwg.mxu0
      %631 = vadd.xlane.f32.xlu0 %v622
      %v632 = vpop.xlane.xlu0 %631
      %633 = vadd.xlane.f32.xlu0 %v624
      %v634 = vpop.xlane.xlu0 %633
      %635 = vadd.xlane.f32.xlu0 %v627
      %v636 = vpop.xlane.xlu0 %635
      %637 = vadd.xlane.f32.xlu0 %v629
      %v638 = vpop.xlane.xlu0 %637
      %v639 = vmul.f32 %v632, 0.03125
      %v640 = vmul.f32 %v634, 0.03125
      %v641 = vmul.f32 %v636, 0.03125
      %v642 = vmul.f32 %v638, 0.03125
      %v643 = vmul.f32 %v622, %v622
      %v644 = vmul.f32 %v624, %v624
      %v645 = vmul.f32 %v627, %v627
      %v646 = vmul.f32 %v629, %v629
      %647 = vadd.xlane.f32.xlu0 %v643
      %v648 = vpop.xlane.xlu0 %647
      %649 = vadd.xlane.f32.xlu0 %v644
      %v650 = vpop.xlane.xlu0 %649
      %651 = vadd.xlane.f32.xlu0 %v645
      %v652 = vpop.xlane.xlu0 %651
      %653 = vadd.xlane.f32.xlu0 %v646
      %v654 = vpop.xlane.xlu0 %653
      %v655 = vmul.f32 %v648, 0.03125
      %v656 = vmul.f32 %v650, 0.03125
      %v657 = vmul.f32 %v652, 0.03125
      %v658 = vmul.f32 %v654, 0.03125
      %v659 = vmul.f32 %v639, %v639
      %v660 = vmul.f32 %v640, %v640
      %v661 = vmul.f32 %v641, %v641
      %v662 = vmul.f32 %v642, %v642
      %v663 = vsub.f32 %v655, %v659
      %v664 = vsub.f32 %v656, %v660
      %v665 = vsub.f32 %v657, %v661
      %v666 = vsub.f32 %v658, %v662
      %v667 = vsub.f32 %v622, %v639
      %v668 = vsub.f32 %v624, %v640
      %v669 = vsub.f32 %v627, %v641
      %v670 = vsub.f32 %v629, %v642
      %v671 = vadd.f32 %v663, 1e-05
      %v672 = vadd.f32 %v664, 1e-05
      %v673 = vadd.f32 %v665, 1e-05
      %v674 = vadd.f32 %v666, 1e-05
      %v675 = vrsqrt.pop %v671
      %v676 = vmul.f32 %v675, %v671
      %v677 = vmul.f32 %v676, %v675
      %v678 = vmul.f32 0.5, %v677
      %v679 = vsub.f32 1.5, %v678
      %v680 = vmul.f32 %v675, %v679
      %vm681 = vweird.f32 %v671
      %vm682 = vweird.f32 %v675
      %vm683 = vmor %vm681, %vm682
      %v684 = vsel %vm683, %v675, %v680
      %v685 = vrsqrt.pop %v672
      %v686 = vmul.f32 %v685, %v672
      %v687 = vmul.f32 %v686, %v685
      %v688 = vmul.f32 0.5, %v687
      %v689 = vsub.f32 1.5, %v688
      %v690 = vmul.f32 %v685, %v689
      %vm691 = vweird.f32 %v672
      %vm692 = vweird.f32 %v685
      %vm693 = vmor %vm691, %vm692
      %v694 = vsel %vm693, %v685, %v690
      %v695 = vrsqrt.pop %v673
      %v696 = vmul.f32 %v695, %v673
      %v697 = vmul.f32 %v696, %v695
      %v698 = vmul.f32 0.5, %v697
      %v699 = vsub.f32 1.5, %v698
      %v700 = vmul.f32 %v695, %v699
      %vm701 = vweird.f32 %v673
      %vm702 = vweird.f32 %v695
      %vm703 = vmor %vm701, %vm702
      %v704 = vsel %vm703, %v695, %v700
      %v705 = vrsqrt.pop %v674
      %v706 = vmul.f32 %v705, %v674
      %v707 = vmul.f32 %v706, %v705
      %v708 = vmul.f32 0.5, %v707
      %v709 = vsub.f32 1.5, %v708
      %v710 = vmul.f32 %v705, %v709
      %vm711 = vweird.f32 %v674
      %vm712 = vweird.f32 %v705
      %vm713 = vmor %vm711, %vm712
      %v714 = vsel %vm713, %v705, %v710
      %v715 = vmul.f32 %v667, %v684
      %v716 = vmul.f32 %v668, %v694
      %v717 = vmul.f32 %v669, %v704
      %v718 = vmul.f32 %v670, %v714
      %v719 = vld [vmem:[%s7] sm:$0x1]
      %v721 = vperm.slane %v719, 0
      %v723 = vmul.f32 %v715, %v721
      %v724 = vmul.f32 %v716, %v721
      %v725 = vmul.f32 %v717, %v721
      %v726 = vmul.f32 %v718, %v721
      %v727 = vld [vmem:[%s8] sm:$0x1]
      %v729 = vperm.slane %v727, 0
      %v731 = vadd.f32 %v723, %v729
      %v732 = vadd.f32 %v724, %v729
      %v733 = vadd.f32 %v725, %v729
      %v734 = vadd.f32 %v726, %v729
      %v735 = vpack.c.bf16 %v731, %v731
      %v736 = vpack.c.bf16 %v732, %v732
      %v737 = vpack.c.bf16 %v733, %v733
      %v738 = vpack.c.bf16 %v734, %v734
      %739 = vst [vmem:[%s334] sm:$0xf] %v735
      %740 = vst [vmem:[%s334 + $0x4] sm:$0xf] %v736
      %741 = vst [vmem:[%s334 + $0x8] sm:$0xf] %v737
      %742 = vst [vmem:[%s334 + $0xc] sm:$0xf] %v738
      %s743 = smul.u32 4, %s20
      %p744 = scmp.lt.s32.totalorder %s743, 7
      %s745 = scalar_select %p744, %s743, 7
      %s746 = smul.addr %s745, 4
      %s747 = scalar_lea.vmem %s9, %s746
      // Predicated region
      $region57: #{graphnet_forward.9} parent=55 // pred_check
        %p748 = pneg %p232
      $region58: #{graphnet_forward.9} parent=55 // pred_check_branch
        %750 = sbr.rel (%p748) target = $region60
      $region59: #{graphnet_forward.9} parent=55 // pred_region
        %s751 = smul.u32 4, %s20
      $region60: #{graphnet_forward.9} parent=55 // pred_fallthru
        _
    $region56: #{graphnet_forward.9} parent=5 // pred_fallthru
      _
    %p752 = scmp.le.s32.totalorder 2, %s15
    // Predicated region
    $region61: #{graphnet_forward.9} parent=5 // pred_check
      %p753 = pneg %p752
    $region62: #{graphnet_forward.9} parent=5 // pred_check_branch
      %755 = sbr.rel (%p753) target = $region64
    $region63: #{graphnet_forward.9} parent=5 // pred_region
      %s756 = ssub.s32 %s15, 2
      // Predicated region
      $region65: #{graphnet_forward.9} parent=63 // pred_check
        %p757 = pneg %p238
      $region66: #{graphnet_forward.9} parent=63 // pred_check_branch
        %759 = sbr.rel (%p757) target = $region68
      $region67: #{graphnet_forward.9} parent=63 // pred_region
        %s760 = smul.u32 4, %s21
        %p761 = scmp.lt.s32.totalorder %s760, 7
        %s762 = scalar_select %p761, %s760, 7
        %s763 = smul.addr %s762, 4
        %s764 = scalar_lea.vmem %s9, %s763
      $region68: #{graphnet_forward.9} parent=63 // pred_fallthru
        _
    $region64: #{graphnet_forward.9} parent=5 // pred_fallthru
      _
  $region6: #{graphnet_forward.9} parent=0 // loop_footer
    %s19 = sadd.s32 1, %s15
  $region7: #{graphnet_forward.9} parent=0 // loop_footer_branch
    %14 = sbr.rel target = $region3
  $region8: #{graphnet_forward.9} parent=0 // loop_exit
    _

// kernel: graphnet_forward.11
$region0: #{graphnet_forward.11}
  #allocation0 [shape = 'u32[]', space=smem, size = 0x4, offset = 0x4, fixed_abs, tag = 'smem constant byte address 0x4 - core index']
  #allocation1 [shape = 'u32[72,128]{1,0:T(1,128)}', space=vmem, size = 0x9000, scoped, tag = 'internal scratch']
  #allocation2 [shape = 'f32[16,128]{1,0:T(8,128)}', space=vmem, size = 0x2000, scoped, tag = 'scratch operand']
  %s0 = inlined_call_operand.vmem [shape: bf16[4,16,128], index: 0, kind: input, shape index: {}]
  %s1 = inlined_call_operand.vmem [shape: bf16[4,16,128], index: 1, kind: input, shape index: {}]
  %s2 = inlined_call_operand.vmem [shape: bf16[16,128], index: 2, kind: input, shape index: {}]
  %s3 = inlined_call_operand.vmem [shape: bf16[384,128], index: 3, kind: input, shape index: {}]
  %s4 = inlined_call_operand.vmem [shape: f32[1,128], index: 4, kind: input, shape index: {}]
  %s5 = inlined_call_operand.vmem [shape: bf16[128,128], index: 5, kind: input, shape index: {}]
  %s6 = inlined_call_operand.vmem [shape: f32[1,128], index: 6, kind: input, shape index: {}]
  %s7 = inlined_call_operand.vmem [shape: bf16[128,128], index: 7, kind: input, shape index: {}]
  %s8 = inlined_call_operand.vmem [shape: f32[1,128], index: 8, kind: input, shape index: {}]
  %s9 = inlined_call_operand.vmem [shape: f32[1,128], index: 9, kind: input, shape index: {}]
  %s10 = inlined_call_operand.vmem [shape: f32[1,128], index: 10, kind: input, shape index: {}]
  %s11 = inlined_call_operand.vmem [shape: bf16[16,128], index: 11, kind: output, shape index: {}]
  %s12 = sld [smem:[#allocation0]]
  $region89: #{graphnet_forward.11} parent=0
    _
  %s14 = ssub.s32 1, %s12
  %s15 = scalar_select 0, %s14, %s12
  loop: start=0, step=1, limit=6
  $region2: #{graphnet_forward.11} parent=0 // loop_pre_header
    _
  $region3: #{graphnet_forward.11} parent=0 // loop_header
    %s17 = sphi 0, %s21
    %p18 = scmp.ge.s32.totalorder %s17, 6
    %s24 = sphi 0, %s36
    %s25 = sphi 0, %s32
    %s26 = sphi 0, %s24
    %s27 = sphi 0, %s25
    %s28 = sphi 0, %s26
    %s29 = sphi 0, %s27
    %s41 = sphi 0, %s43
    %s44 = sphi 0, %s41
    %s45 = sphi 0, %s44
    %s61 = sphi 0, %s45
    %s69 = sphi 0, %s71
    %s72 = sphi 0, %s69
    %s73 = sphi 0, %s72
    %s89 = sphi 0, %s73
    %s95 = sphi 0, %s97
    %s98 = sphi 0, %s95
    %s99 = sphi 0, %s98
    %s115 = sphi 0, %s99
    %s119 = sphi 0, %s119
    %s121 = sphi 0, %s119
    %s122 = sphi 0, %s121
    %s136 = sphi 0, %s122
    %s140 = sphi 0, %s140
    %s142 = sphi 0, %s140
    %s143 = sphi 0, %s142
    %s157 = sphi 0, %s143
    %s161 = sphi 0, %s161
    %s163 = sphi 0, %s161
    %s164 = sphi 0, %s163
    %s178 = sphi 0, %s164
    %s182 = sphi 0, %s182
    %s184 = sphi 0, %s182
    %s185 = sphi 0, %s184
    %s199 = sphi 0, %s185
    %s203 = sphi 0, %s203
    %s205 = sphi 0, %s203
    %s206 = sphi 0, %s205
    %s220 = sphi 0, %s206
    %s224 = sphi 0, %s224
    %s226 = sphi 0, %s224
    %s227 = sphi 0, %s226
    %s241 = sphi 0, %s227
    %s245 = sphi 0, %s245
    %s247 = sphi 0, %s245
    %s248 = sphi 0, %s247
    %s262 = sphi 0, %s248
    %s266 = sphi 0, %s266
    %s268 = sphi 0, %s266
    %s269 = sphi 0, %s268
    %s283 = sphi 0, %s269
    %s289 = sphi 0, %s291
    %s292 = sphi 0, %s289
    %s293 = sphi 0, %s292
    %s309 = sphi 0, %s293
  $region4: #{graphnet_forward.11} parent=0 // loop_header_branch
    %20 = sbr.rel (%p18) target = $region8
  $region5: #{graphnet_forward.11} parent=0 // loop_body
    %s22 = ssub.s32 %s17, 1
    %s23 = ssub.s32 %s17, 2
    %s30 = sadd.s32 1, %s25
    %p31 = scmp.ge.s32.totalorder %s30, 4
    %s32 = scalar_select %p31, 0, %s30
    %s33 = sadd.s32 1, %s24
    %s34 = scalar_select %p31, %s33, %s24
    %p35 = scmp.ge.s32.totalorder %s34, 1
    %s36 = scalar_select %p35, 0, %s34
    %s37 = ssub.s32 %s25, %s32
    %s38 = ssub.s32 %s24, %s36
    %s39 = sor.u32 %s37, %s38
    %p40 = scmp.eq.s32.totalorder %s39, 0
    %s42 = sadd.s32 %s41, 1
    %s43 = scalar_select %p40, %s41, %s42
    %p46 = pneg %p40
    %p47 = scmp.eq.s32.totalorder %s17, 3
    %p48 = por %p46, %p47
    %p49 = scmp.ne.s32.totalorder %s41, %s44
    %p50 = scmp.eq.s32.totalorder %s17, 0
    %p51 = por %p49, %p50
    %p52 = scmp.ne.s32.totalorder %s41, %s44
    %p53 = scmp.eq.s32.totalorder %s22, 3
    %p54 = por %p52, %p53
    %p55 = scmp.ne.s32.totalorder %s44, %s45
    %p56 = scmp.eq.s32.totalorder %s22, 0
    %p57 = por %p55, %p56
    %p58 = scmp.ne.s32.totalorder %s44, %s45
    %p59 = scmp.eq.s32.totalorder %s23, 3
    %p60 = por %p58, %p59
    %p62 = scmp.ne.s32.totalorder %s45, %s61
    %p63 = scmp.eq.s32.totalorder %s23, 0
    %p64 = por %p62, %p63
    %s65 = ssub.s32 %s25, %s32
    %s66 = ssub.s32 %s24, %s36
    %s67 = sor.u32 %s65, %s66
    %p68 = scmp.eq.s32.totalorder %s67, 0
    %s70 = sadd.s32 %s69, 1
    %s71 = scalar_select %p68, %s69, %s70
    %p74 = pneg %p68
    %p75 = scmp.eq.s32.totalorder %s17, 3
    %p76 = por %p74, %p75
    %p77 = scmp.ne.s32.totalorder %s69, %s72
    %p78 = scmp.eq.s32.totalorder %s17, 0
    %p79 = por %p77, %p78
    %p80 = scmp.ne.s32.totalorder %s69, %s72
    %p81 = scmp.eq.s32.totalorder %s22, 3
    %p82 = por %p80, %p81
    %p83 = scmp.ne.s32.totalorder %s72, %s73
    %p84 = scmp.eq.s32.totalorder %s22, 0
    %p85 = por %p83, %p84
    %p86 = scmp.ne.s32.totalorder %s72, %s73
    %p87 = scmp.eq.s32.totalorder %s23, 3
    %p88 = por %p86, %p87
    %p90 = scmp.ne.s32.totalorder %s73, %s89
    %p91 = scmp.eq.s32.totalorder %s23, 0
    %p92 = por %p90, %p91
    %s93 = ssub.s32 %s24, %s36
    %p94 = scmp.eq.s32.totalorder %s93, 0
    %s96 = sadd.s32 %s95, 1
    %s97 = scalar_select %p94, %s95, %s96
    %p100 = pneg %p94
    %p101 = scmp.eq.s32.totalorder %s17, 3
    %p102 = por %p100, %p101
    %p103 = scmp.ne.s32.totalorder %s95, %s98
    %p104 = scmp.eq.s32.totalorder %s17, 0
    %p105 = por %p103, %p104
    %p106 = scmp.ne.s32.totalorder %s95, %s98
    %p107 = scmp.eq.s32.totalorder %s22, 3
    %p108 = por %p106, %p107
    %p109 = scmp.ne.s32.totalorder %s98, %s99
    %p110 = scmp.eq.s32.totalorder %s22, 0
    %p111 = por %p109, %p110
    %p112 = scmp.ne.s32.totalorder %s98, %s99
    %p113 = scmp.eq.s32.totalorder %s23, 3
    %p114 = por %p112, %p113
    %p116 = scmp.ne.s32.totalorder %s99, %s115
    %p117 = scmp.eq.s32.totalorder %s23, 0
    %p118 = por %p116, %p117
    %s120 = sadd.s32 %s119, 1
    %p123 = scmp.eq.s32.totalorder %s17, 3
    %p124 = scmp.ne.s32.totalorder %s119, %s121
    %p125 = scmp.eq.s32.totalorder %s17, 0
    %p126 = por %p124, %p125
    %p127 = scmp.ne.s32.totalorder %s119, %s121
    %p128 = scmp.eq.s32.totalorder %s22, 3
    %p129 = por %p127, %p128
    %p130 = scmp.ne.s32.totalorder %s121, %s122
    %p131 = scmp.eq.s32.totalorder %s22, 0
    %p132 = por %p130, %p131
    %p133 = scmp.ne.s32.totalorder %s121, %s122
    %p134 = scmp.eq.s32.totalorder %s23, 3
    %p135 = por %p133, %p134
    %p137 = scmp.ne.s32.totalorder %s122, %s136
    %p138 = scmp.eq.s32.totalorder %s23, 0
    %p139 = por %p137, %p138
    %s141 = sadd.s32 %s140, 1
    %p144 = scmp.eq.s32.totalorder %s17, 3
    %p145 = scmp.ne.s32.totalorder %s140, %s142
    %p146 = scmp.eq.s32.totalorder %s17, 0
    %p147 = por %p145, %p146
    %p148 = scmp.ne.s32.totalorder %s140, %s142
    %p149 = scmp.eq.s32.totalorder %s22, 3
    %p150 = por %p148, %p149
    %p151 = scmp.ne.s32.totalorder %s142, %s143
    %p152 = scmp.eq.s32.totalorder %s22, 0
    %p153 = por %p151, %p152
    %p154 = scmp.ne.s32.totalorder %s142, %s143
    %p155 = scmp.eq.s32.totalorder %s23, 3
    %p156 = por %p154, %p155
    %p158 = scmp.ne.s32.totalorder %s143, %s157
    %p159 = scmp.eq.s32.totalorder %s23, 0
    %p160 = por %p158, %p159
    %s162 = sadd.s32 %s161, 1
    %p165 = scmp.eq.s32.totalorder %s17, 3
    %p166 = scmp.ne.s32.totalorder %s161, %s163
    %p167 = scmp.eq.s32.totalorder %s17, 0
    %p168 = por %p166, %p167
    %p169 = scmp.ne.s32.totalorder %s161, %s163
    %p170 = scmp.eq.s32.totalorder %s22, 3
    %p171 = por %p169, %p170
    %p172 = scmp.ne.s32.totalorder %s163, %s164
    %p173 = scmp.eq.s32.totalorder %s22, 0
    %p174 = por %p172, %p173
    %p175 = scmp.ne.s32.totalorder %s163, %s164
    %p176 = scmp.eq.s32.totalorder %s23, 3
    %p177 = por %p175, %p176
    %p179 = scmp.ne.s32.totalorder %s164, %s178
    %p180 = scmp.eq.s32.totalorder %s23, 0
    %p181 = por %p179, %p180
    %s183 = sadd.s32 %s182, 1
    %p186 = scmp.eq.s32.totalorder %s17, 3
    %p187 = scmp.ne.s32.totalorder %s182, %s184
    %p188 = scmp.eq.s32.totalorder %s17, 0
    %p189 = por %p187, %p188
    %p190 = scmp.ne.s32.totalorder %s182, %s184
    %p191 = scmp.eq.s32.totalorder %s22, 3
    %p192 = por %p190, %p191
    %p193 = scmp.ne.s32.totalorder %s184, %s185
    %p194 = scmp.eq.s32.totalorder %s22, 0
    %p195 = por %p193, %p194
    %p196 = scmp.ne.s32.totalorder %s184, %s185
    %p197 = scmp.eq.s32.totalorder %s23, 3
    %p198 = por %p196, %p197
    %p200 = scmp.ne.s32.totalorder %s185, %s199
    %p201 = scmp.eq.s32.totalorder %s23, 0
    %p202 = por %p200, %p201
    %s204 = sadd.s32 %s203, 1
    %p207 = scmp.eq.s32.totalorder %s17, 3
    %p208 = scmp.ne.s32.totalorder %s203, %s205
    %p209 = scmp.eq.s32.totalorder %s17, 0
    %p210 = por %p208, %p209
    %p211 = scmp.ne.s32.totalorder %s203, %s205
    %p212 = scmp.eq.s32.totalorder %s22, 3
    %p213 = por %p211, %p212
    %p214 = scmp.ne.s32.totalorder %s205, %s206
    %p215 = scmp.eq.s32.totalorder %s22, 0
    %p216 = por %p214, %p215
    %p217 = scmp.ne.s32.totalorder %s205, %s206
    %p218 = scmp.eq.s32.totalorder %s23, 3
    %p219 = por %p217, %p218
    %p221 = scmp.ne.s32.totalorder %s206, %s220
    %p222 = scmp.eq.s32.totalorder %s23, 0
    %p223 = por %p221, %p222
    %s225 = sadd.s32 %s224, 1
    %p228 = scmp.eq.s32.totalorder %s17, 3
    %p229 = scmp.ne.s32.totalorder %s224, %s226
    %p230 = scmp.eq.s32.totalorder %s17, 0
    %p231 = por %p229, %p230
    %p232 = scmp.ne.s32.totalorder %s224, %s226
    %p233 = scmp.eq.s32.totalorder %s22, 3
    %p234 = por %p232, %p233
    %p235 = scmp.ne.s32.totalorder %s226, %s227
    %p236 = scmp.eq.s32.totalorder %s22, 0
    %p237 = por %p235, %p236
    %p238 = scmp.ne.s32.totalorder %s226, %s227
    %p239 = scmp.eq.s32.totalorder %s23, 3
    %p240 = por %p238, %p239
    %p242 = scmp.ne.s32.totalorder %s227, %s241
    %p243 = scmp.eq.s32.totalorder %s23, 0
    %p244 = por %p242, %p243
    %s246 = sadd.s32 %s245, 1
    %p249 = scmp.eq.s32.totalorder %s17, 3
    %p250 = scmp.ne.s32.totalorder %s245, %s247
    %p251 = scmp.eq.s32.totalorder %s17, 0
    %p252 = por %p250, %p251
    %p253 = scmp.ne.s32.totalorder %s245, %s247
    %p254 = scmp.eq.s32.totalorder %s22, 3
    %p255 = por %p253, %p254
    %p256 = scmp.ne.s32.totalorder %s247, %s248
    %p257 = scmp.eq.s32.totalorder %s22, 0
    %p258 = por %p256, %p257
    %p259 = scmp.ne.s32.totalorder %s247, %s248
    %p260 = scmp.eq.s32.totalorder %s23, 3
    %p261 = por %p259, %p260
    %p263 = scmp.ne.s32.totalorder %s248, %s262
    %p264 = scmp.eq.s32.totalorder %s23, 0
    %p265 = por %p263, %p264
    %s267 = sadd.s32 %s266, 1
    %p270 = scmp.eq.s32.totalorder %s17, 3
    %p271 = scmp.ne.s32.totalorder %s266, %s268
    %p272 = scmp.eq.s32.totalorder %s17, 0
    %p273 = por %p271, %p272
    %p274 = scmp.ne.s32.totalorder %s266, %s268
    %p275 = scmp.eq.s32.totalorder %s22, 3
    %p276 = por %p274, %p275
    %p277 = scmp.ne.s32.totalorder %s268, %s269
    %p278 = scmp.eq.s32.totalorder %s22, 0
    %p279 = por %p277, %p278
    %p280 = scmp.ne.s32.totalorder %s268, %s269
    %p281 = scmp.eq.s32.totalorder %s23, 3
    %p282 = por %p280, %p281
    %p284 = scmp.ne.s32.totalorder %s269, %s283
    %p285 = scmp.eq.s32.totalorder %s23, 0
    %p286 = por %p284, %p285
    %s287 = ssub.s32 %s24, %s36
    %p288 = scmp.eq.s32.totalorder %s287, 0
    %s290 = sadd.s32 %s289, 1
    %s291 = scalar_select %p288, %s289, %s290
    %p294 = pneg %p288
    %p295 = scmp.eq.s32.totalorder %s17, 3
    %p296 = por %p294, %p295
    %p297 = scmp.ne.s32.totalorder %s289, %s292
    %p298 = scmp.eq.s32.totalorder %s17, 0
    %p299 = por %p297, %p298
    %p300 = scmp.ne.s32.totalorder %s289, %s292
    %p301 = scmp.eq.s32.totalorder %s22, 3
    %p302 = por %p300, %p301
    %p303 = scmp.ne.s32.totalorder %s292, %s293
    %p304 = scmp.eq.s32.totalorder %s22, 0
    %p305 = por %p303, %p304
    %p306 = scmp.ne.s32.totalorder %s292, %s293
    %p307 = scmp.eq.s32.totalorder %s23, 3
    %p308 = por %p306, %p307
    %p310 = scmp.ne.s32.totalorder %s293, %s309
    %p311 = scmp.eq.s32.totalorder %s23, 0
    %p312 = por %p310, %p311
    %p313 = scmp.le.s32.totalorder 1, %s17
    %p314 = scmp.lt.s32.totalorder %s17, 5
    %p315 = pnand %p313, %p314
    %p316 = pneg %p315
    // Predicated region
    $region9: #{graphnet_forward.11} parent=5 // pred_check
      _
    $region10: #{graphnet_forward.11} parent=5 // pred_check_branch
      %318 = sbr.rel (%p315) target = $region12
    $region11: #{graphnet_forward.11} parent=5 // pred_region
      %s319 = ssub.s32 %s17, 1
      // Predicated region
      $region13: #{graphnet_forward.11} parent=11 // pred_check
        %p320 = pneg %p111
      $region14: #{graphnet_forward.11} parent=11 // pred_check_branch
        %322 = sbr.rel (%p320) target = $region16
      $region15: #{graphnet_forward.11} parent=11 // pred_region
        %s323 = smul.u32 2, %s26
        %p324 = scmp.lt.s32.totalorder %s323, 1
        %s325 = scalar_select %p324, %s323, 1
        %s326 = smul.addr %s325, 4
        %s327 = scalar_lea.vmem %s2, %s326
        %s328 = smul.u32 2, %s26
      $region16: #{graphnet_forward.11} parent=11 // pred_fallthru
        _
      // Predicated region
      $region17: #{graphnet_forward.11} parent=11 // pred_check
        %p329 = pneg %p132
      $region18: #{graphnet_forward.11} parent=11 // pred_check_branch
        %331 = sbr.rel (%p329) target = $region20
      $region19: #{graphnet_forward.11} parent=11 // pred_region
        _
      $region20: #{graphnet_forward.11} parent=11 // pred_fallthru
        _
      // Predicated region
      $region21: #{graphnet_forward.11} parent=11 // pred_check
        %p332 = pneg %p153
      $region22: #{graphnet_forward.11} parent=11 // pred_check_branch
        %334 = sbr.rel (%p332) target = $region24
      $region23: #{graphnet_forward.11} parent=11 // pred_region
        _
      $region24: #{graphnet_forward.11} parent=11 // pred_fallthru
        _
      // Predicated region
      $region25: #{graphnet_forward.11} parent=11 // pred_check
        %p335 = pneg %p174
      $region26: #{graphnet_forward.11} parent=11 // pred_check_branch
        %337 = sbr.rel (%p335) target = $region28
      $region27: #{graphnet_forward.11} parent=11 // pred_region
        _
      $region28: #{graphnet_forward.11} parent=11 // pred_fallthru
        _
      // Predicated region
      $region29: #{graphnet_forward.11} parent=11 // pred_check
        %p338 = pneg %p195
      $region30: #{graphnet_forward.11} parent=11 // pred_check_branch
        %340 = sbr.rel (%p338) target = $region32
      $region31: #{graphnet_forward.11} parent=11 // pred_region
        _
      $region32: #{graphnet_forward.11} parent=11 // pred_fallthru
        _
      // Predicated region
      $region33: #{graphnet_forward.11} parent=11 // pred_check
        %p341 = pneg %p216
      $region34: #{graphnet_forward.11} parent=11 // pred_check_branch
        %343 = sbr.rel (%p341) target = $region36
      $region35: #{graphnet_forward.11} parent=11 // pred_region
        _
      $region36: #{graphnet_forward.11} parent=11 // pred_fallthru
        _
      // Predicated region
      $region37: #{graphnet_forward.11} parent=11 // pred_check
        %p344 = pneg %p237
      $region38: #{graphnet_forward.11} parent=11 // pred_check_branch
        %346 = sbr.rel (%p344) target = $region40
      $region39: #{graphnet_forward.11} parent=11 // pred_region
        _
      $region40: #{graphnet_forward.11} parent=11 // pred_fallthru
        _
      // Predicated region
      $region41: #{graphnet_forward.11} parent=11 // pred_check
        %p347 = pneg %p258
      $region42: #{graphnet_forward.11} parent=11 // pred_check_branch
        %349 = sbr.rel (%p347) target = $region44
      $region43: #{graphnet_forward.11} parent=11 // pred_region
        _
      $region44: #{graphnet_forward.11} parent=11 // pred_fallthru
        _
      // Predicated region
      $region45: #{graphnet_forward.11} parent=11 // pred_check
        %p350 = pneg %p279
      $region46: #{graphnet_forward.11} parent=11 // pred_check_branch
        %352 = sbr.rel (%p350) target = $region48
      $region47: #{graphnet_forward.11} parent=11 // pred_region
        _
      $region48: #{graphnet_forward.11} parent=11 // pred_fallthru
        _
    $region12: #{graphnet_forward.11} parent=5 // pred_fallthru
      _
    %p353 = scmp.lt.s32.totalorder %s17, 4
    // Predicated region
    $region49: #{graphnet_forward.11} parent=5 // pred_check
      %p354 = pneg %p353
    $region50: #{graphnet_forward.11} parent=5 // pred_check_branch
      %356 = sbr.rel (%p354) target = $region52
    $region51: #{graphnet_forward.11} parent=5 // pred_region
      // Predicated region
      $region53: #{graphnet_forward.11} parent=51 // pred_check
        %p357 = pneg %p51
      $region54: #{graphnet_forward.11} parent=51 // pred_check_branch
        %359 = sbr.rel (%p357) target = $region56
      $region55: #{graphnet_forward.11} parent=51 // pred_region
        %s360 = smul.u32 2, %s24
        %p361 = scmp.lt.s32.totalorder %s25, 3
        %s362 = scalar_select %p361, %s25, 3
        %p363 = scmp.lt.s32.totalorder %s360, 1
        %s364 = scalar_select %p363, %s360, 1
        %s365 = smul.addr %s362, 2
        %s366 = sadd.s32 %s364, %s365
        %s367 = smul.addr %s366, 4
        %s368 = scalar_lea.vmem %s0, %s367
        %s369 = smul.u32 2, %s24
      $region56: #{graphnet_forward.11} parent=51 // pred_fallthru
        _
      // Predicated region
      $region57: #{graphnet_forward.11} parent=51 // pred_check
        %p370 = pneg %p79
      $region58: #{graphnet_forward.11} parent=51 // pred_check_branch
        %372 = sbr.rel (%p370) target = $region60
      $region59: #{graphnet_forward.11} parent=51 // pred_region
        %s373 = smul.u32 2, %s24
        %p374 = scmp.lt.s32.totalorder %s25, 3
        %s375 = scalar_select %p374, %s25, 3
        %p376 = scmp.lt.s32.totalorder %s373, 1
        %s377 = scalar_select %p376, %s373, 1
        %s378 = smul.addr %s375, 2
        %s379 = sadd.s32 %s377, %s378
        %s380 = smul.addr %s379, 4
        %s381 = scalar_lea.vmem %s1, %s380
        %s382 = smul.u32 2, %s24
      $region60: #{graphnet_forward.11} parent=51 // pred_fallthru
        _
    $region52: #{graphnet_forward.11} parent=5 // pred_fallthru
      _
    %p383 = scmp.le.s32.totalorder 1, %s17
    %p384 = scmp.lt.s32.totalorder %s17, 5
    %p385 = pnand %p383, %p384
    %p386 = pneg %p385
    // Predicated region
    $region61: #{graphnet_forward.11} parent=5 // pred_check
      _
    $region62: #{graphnet_forward.11} parent=5 // pred_check_branch
      %388 = sbr.rel (%p385) target = $region64
    $region63: #{graphnet_forward.11} parent=5 // pred_region
      %s389 = ssub.s32 %s17, 1
      %s390 = smul.u32 2, %s26
      %p391 = scmp.lt.s32.totalorder %s27, 3
      %s392 = scalar_select %p391, %s27, 3
      %p393 = scmp.lt.s32.totalorder %s390, 1
      %s394 = scalar_select %p393, %s390, 1
      %s395 = smul.addr %s392, 2
      %s396 = sadd.s32 %s394, %s395
      %s397 = smul.addr %s396, 4
      %s398 = scalar_lea.vmem %s0, %s397
      %p399 = pneg %p57
      %p400 = pneg %p54
      %s401 = smul.u32 2, %s26
      %p402 = scmp.lt.s32.totalorder %s27, 3
      %s403 = scalar_select %p402, %s27, 3
      %p404 = scmp.lt.s32.totalorder %s401, 1
      %s405 = scalar_select %p404, %s401, 1
      %s406 = smul.addr %s403, 2
      %s407 = sadd.s32 %s405, %s406
      %s408 = smul.addr %s407, 4
      %s409 = scalar_lea.vmem %s1, %s408
      %p410 = pneg %p85
      %p411 = pneg %p82
      %s412 = smul.u32 2, %s26
      %p413 = scmp.lt.s32.totalorder %s412, 1
      %s414 = scalar_select %p413, %s412, 1
      %s415 = smul.addr %s414, 4
      %s416 = scalar_lea.vmem %s2, %s415
      %p417 = pneg %p111
      %p418 = pneg %p108
      %p419 = pneg %p132
      %p420 = pneg %p129
      %p421 = pneg %p153
      %p422 = pneg %p150
      %p423 = pneg %p174
      %p424 = pneg %p171
      %p425 = pneg %p195
      %p426 = pneg %p192
      %p427 = pneg %p216
      %p428 = pneg %p213
      %p429 = pneg %p237
      %p430 = pneg %p234
      %p431 = pneg %p258
      %p432 = pneg %p255
      %p433 = pneg %p279
      %p434 = pneg %p276
      %p435 = pneg %p305
      %p436 = pneg %p302
      %s437 = smul.u32 2, %s26
      %p438 = scmp.lt.s32.totalorder %s437, 1
      %s439 = scalar_select %p438, %s437, 1
      %s440 = smul.addr %s439, 4
      %s441 = scalar_lea.vmem %s11, %s440
      %s442 = smul.u32 2, %s26
      %p443 = scmp.lt.s32.totalorder %s27, 3
      %s444 = scalar_select %p443, %s27, 3
      %p445 = scmp.lt.s32.totalorder %s442, 1
      %s446 = scalar_select %p445, %s442, 1
      %s447 = smul.addr %s444, 2
      %s448 = sadd.s32 %s446, %s447
      %s449 = smul.addr %s448, 4
      %s450 = scalar_lea.vmem %s0, %s449
      %s451 = smul.u32 2, %s26
      %s452 = smul.u32 2, %s26
      %p453 = scmp.lt.s32.totalorder %s27, 3
      %s454 = scalar_select %p453, %s27, 3
      %p455 = scmp.lt.s32.totalorder %s452, 1
      %s456 = scalar_select %p455, %s452, 1
      %s457 = smul.addr %s454, 2
      %s458 = sadd.s32 %s456, %s457
      %s459 = smul.addr %s458, 4
      %s460 = scalar_lea.vmem %s1, %s459
      %s461 = smul.u32 2, %s26
      %s462 = smul.u32 2, %s26
      %p463 = scmp.lt.s32.totalorder %s462, 1
      %s464 = scalar_select %p463, %s462, 1
      %s465 = smul.addr %s464, 4
      %s466 = scalar_lea.vmem %s2, %s465
      %s467 = smul.u32 2, %s26
      %s468 = smul.u32 2, %s26
      %p469 = scmp.lt.s32.totalorder %s468, 1
      %s470 = scalar_select %p469, %s468, 1
      %s471 = smul.addr %s470, 4
      %s472 = scalar_lea.vmem %s11, %s471
      %s473 = smul.u32 2, %s26
      %v474 = vld [vmem:[%s450] sm:$0xf]
      %v475 = vld [vmem:[%s450 + $0x4] sm:$0xf]
      %v476 = vld [vmem:[%s460] sm:$0xf]
      %v477 = vld [vmem:[%s460 + $0x4] sm:$0xf]
      %v478 = vld [vmem:[%s466] sm:$0xf]
      %v479 = vld [vmem:[%s466 + $0x4] sm:$0xf]
      %v482 = vunpack.c.l.b16 %v474
      %v483 = vunpack.c.l.b16 %v475
      %v484 = vpack.c.b16 %v483, %v482
      %v488 = vunpack.c.l.b16 %v476
      %v489 = vunpack.c.l.b16 %v477
      %v490 = vpack.c.b16 %v489, %v488
      %v494 = vunpack.c.l.b16 %v478
      %v495 = vunpack.c.l.b16 %v479
      %v496 = vpack.c.b16 %v495, %v494
      %v498 = vld [vmem:[%s3] sm:$0xf]
      %v499 = vld [vmem:[%s3 + $0x4] sm:$0xf]
      %v500 = vld [vmem:[%s3 + $0x8] sm:$0xf]
      %v501 = vld [vmem:[%s3 + $0xc] sm:$0xf]
      %v502 = vld [vmem:[%s3 + $0x10] sm:$0xf]
      %v503 = vld [vmem:[%s3 + $0x14] sm:$0xf]
      %v504 = vld [vmem:[%s3 + $0x18] sm:$0xf]
      %v505 = vld [vmem:[%s3 + $0x1c] sm:$0xf]
      %v506 = vld [vmem:[%s3 + $0x20] sm:$0xf]
      %v507 = vld [vmem:[%s3 + $0x24] sm:$0xf]
      %v508 = vld [vmem:[%s3 + $0x28] sm:$0xf]
      %v509 = vld [vmem:[%s3 + $0x2c] sm:$0xf]
      %v510 = vld [vmem:[%s3 + $0x30] sm:$0xf]
      %v511 = vld [vmem:[%s3 + $0x34] sm:$0xf]
      %v512 = vld [vmem:[%s3 + $0x38] sm:$0xf]
      %v513 = vld [vmem:[%s3 + $0x3c] sm:$0xf]
      %v514 = vld [vmem:[%s3 + $0x40] sm:$0xf]
      %v515 = vld [vmem:[%s3 + $0x44] sm:$0xf]
      %v516 = vld [vmem:[%s3 + $0x48] sm:$0xf]
      %v517 = vld [vmem:[%s3 + $0x4c] sm:$0xf]
      %v518 = vld [vmem:[%s3 + $0x50] sm:$0xf]
      %v519 = vld [vmem:[%s3 + $0x54] sm:$0xf]
      %v520 = vld [vmem:[%s3 + $0x58] sm:$0xf]
      %v521 = vld [vmem:[%s3 + $0x5c] sm:$0xf]
      %v522 = vld [vmem:[%s3 + $0x60] sm:$0xf]
      %v523 = vld [vmem:[%s3 + $0x64] sm:$0xf]
      %v524 = vld [vmem:[%s3 + $0x68] sm:$0xf]
      %v525 = vld [vmem:[%s3 + $0x6c] sm:$0xf]
      %v526 = vld [vmem:[%s3 + $0x70] sm:$0xf]
      %v527 = vld [vmem:[%s3 + $0x74] sm:$0xf]
      %v528 = vld [vmem:[%s3 + $0x78] sm:$0xf]
      %v529 = vld [vmem:[%s3 + $0x7c] sm:$0xf]
      %v530 = vld [vmem:[%s3 + $0x80] sm:$0xf]
      %v531 = vld [vmem:[%s3 + $0x84] sm:$0xf]
      %v532 = vld [vmem:[%s3 + $0x88] sm:$0xf]
      %v533 = vld [vmem:[%s3 + $0x8c] sm:$0xf]
      %v534 = vld [vmem:[%s3 + $0x90] sm:$0xf]
      %v535 = vld [vmem:[%s3 + $0x94] sm:$0xf]
      %v536 = vld [vmem:[%s3 + $0x98] sm:$0xf]
      %v537 = vld [vmem:[%s3 + $0x9c] sm:$0xf]
      %v538 = vld [vmem:[%s3 + $0xa0] sm:$0xf]
      %v539 = vld [vmem:[%s3 + $0xa4] sm:$0xf]
      %v540 = vld [vmem:[%s3 + $0xa8] sm:$0xf]
      %v541 = vld [vmem:[%s3 + $0xac] sm:$0xf]
      %v542 = vld [vmem:[%s3 + $0xb0] sm:$0xf]
      %v543 = vld [vmem:[%s3 + $0xb4] sm:$0xf]
      %v544 = vld [vmem:[%s3 + $0xb8] sm:$0xf]
      %v545 = vld [vmem:[%s3 + $0xbc] sm:$0xf]
      %v546 = vld [vmem:[%s4] sm:$0x1]
      %v548 = vperm.slane %v546, 0
      %v598 = vunpack.c.l.b16 %v498
      %v599 = vunpack.c.l.b16 %v499
      %v600 = vunpack.c.l.b16 %v500
      %v601 = vunpack.c.l.b16 %v501
      %v602 = vunpack.c.l.b16 %v502
      %v603 = vunpack.c.l.b16 %v503
      %v604 = vunpack.c.l.b16 %v504
      %v605 = vunpack.c.l.b16 %v505
      %v606 = vunpack.c.l.b16 %v506
      %v607 = vunpack.c.l.b16 %v507
      %v608 = vunpack.c.l.b16 %v508
      %v609 = vunpack.c.l.b16 %v509
      %v610 = vunpack.c.l.b16 %v510
      %v611 = vunpack.c.l.b16 %v511
      %v612 = vunpack.c.l.b16 %v512
      %v613 = vunpack.c.l.b16 %v513
      %v614 = vunpack.c.l.b16 %v514
      %v615 = vunpack.c.l.b16 %v515
      %v616 = vunpack.c.l.b16 %v516
      %v617 = vunpack.c.l.b16 %v517
      %v618 = vunpack.c.l.b16 %v518
      %v619 = vunpack.c.l.b16 %v519
      %v620 = vunpack.c.l.b16 %v520
      %v621 = vunpack.c.l.b16 %v521
      %v622 = vunpack.c.l.b16 %v522
      %v623 = vunpack.c.l.b16 %v523
      %v624 = vunpack.c.l.b16 %v524
      %v625 = vunpack.c.l.b16 %v525
      %v626 = vunpack.c.l.b16 %v526
      %v627 = vunpack.c.l.b16 %v527
      %v628 = vunpack.c.l.b16 %v528
      %v629 = vunpack.c.l.b16 %v529
      %v630 = vunpack.c.l.b16 %v530
      %v631 = vunpack.c.l.b16 %v531
      %v632 = vunpack.c.l.b16 %v532
      %v633 = vunpack.c.l.b16 %v533
      %v634 = vunpack.c.l.b16 %v534
      %v635 = vunpack.c.l.b16 %v535
      %v636 = vunpack.c.l.b16 %v536
      %v637 = vunpack.c.l.b16 %v537
      %v638 = vunpack.c.l.b16 %v538
      %v639 = vunpack.c.l.b16 %v539
      %v640 = vunpack.c.l.b16 %v540
      %v641 = vunpack.c.l.b16 %v541
      %v642 = vunpack.c.l.b16 %v542
      %v643 = vunpack.c.l.b16 %v543
      %v644 = vunpack.c.l.b16 %v544
      %v645 = vunpack.c.l.b16 %v545
      %v646 = vpack.c.b16 %v599, %v598
      %v647 = vpack.c.b16 %v601, %v600
      %v648 = vpack.c.b16 %v603, %v602
      %v649 = vpack.c.b16 %v605, %v604
      %v650 = vpack.c.b16 %v607, %v606
      %v651 = vpack.c.b16 %v609, %v608
      %v652 = vpack.c.b16 %v611, %v610
      %v653 = vpack.c.b16 %v613, %v612
      %v654 = vpack.c.b16 %v615, %v614
      %v655 = vpack.c.b16 %v617, %v616
      %v656 = vpack.c.b16 %v619, %v618
      %v657 = vpack.c.b16 %v621, %v620
      %v658 = vpack.c.b16 %v623, %v622
      %v659 = vpack.c.b16 %v625, %v624
      %v660 = vpack.c.b16 %v627, %v626
      %v661 = vpack.c.b16 %v629, %v628
      %v662 = vpack.c.b16 %v631, %v630
      %v663 = vpack.c.b16 %v633, %v632
      %v664 = vpack.c.b16 %v635, %v634
      %v665 = vpack.c.b16 %v637, %v636
      %v666 = vpack.c.b16 %v639, %v638
      %v667 = vpack.c.b16 %v641, %v640
      %v668 = vpack.c.b16 %v643, %v642
      %v669 = vpack.c.b16 %v645, %v644
      %694 = vmatpush.bf16.msra.mxu0 %v653
      %695 = vmatpush.bf16.msra.mxu0 %v652
      %696 = vmatpush.bf16.msra.mxu0 %v651
      %697 = vmatpush.bf16.msra.mxu0 %v650
      %698 = vmatpush.bf16.msra.mxu0 %v649
      %699 = vmatpush.bf16.msra.mxu0 %v648
      %700 = vmatpush.bf16.msra.mxu0 %v647
      %701 = vmatpush.bf16.msra.mxu0 %v646
      %702 = vmatmul.bf16.gmra.mxu0 %v484
      %v703 = vpop.f32.mrf.mxu0
      %v704 = vadd.f32 %v548, %v703
      %v705 = vpop.f32.mrf.mxu0
      %v706 = vadd.f32 %v548, %v705
      %707 = vdwg.mxu0
      %708 = vmatpush.bf16.msra.mxu0 %v661
      %709 = vmatpush.bf16.msra.mxu0 %v660
      %710 = vmatpush.bf16.msra.mxu0 %v659
      %711 = vmatpush.bf16.msra.mxu0 %v658
      %712 = vmatpush.bf16.msra.mxu0 %v657
      %713 = vmatpush.bf16.msra.mxu0 %v656
      %714 = vmatpush.bf16.msra.mxu0 %v655
      %715 = vmatpush.bf16.msra.mxu0 %v654
      %716 = vmatmul.bf16.gmra.mxu0 %v490
      %v717 = vpop.f32.mrf.mxu0
      %v718 = vadd.f32 %v704, %v717
      %v719 = vpop.f32.mrf.mxu0
      %v720 = vadd.f32 %v706, %v719
      %721 = vdwg.mxu0
      %722 = vmatpush.bf16.msra.mxu0 %v669
      %723 = vmatpush.bf16.msra.mxu0 %v668
      %724 = vmatpush.bf16.msra.mxu0 %v667
      %725 = vmatpush.bf16.msra.mxu0 %v666
      %726 = vmatpush.bf16.msra.mxu0 %v665
      %727 = vmatpush.bf16.msra.mxu0 %v664
      %728 = vmatpush.bf16.msra.mxu0 %v663
      %729 = vmatpush.bf16.msra.mxu0 %v662
      %730 = vmatmul.bf16.gmra.mxu0 %v496
      %v731 = vpop.f32.mrf.mxu0
      %v732 = vadd.f32 %v718, %v731
      %v733 = vpop.f32.mrf.mxu0
      %v734 = vadd.f32 %v720, %v733
      %735 = vdwg.mxu0
      %v736 = vmul.f32 %v732, %v732
      %v737 = vmul.f32 %v734, %v734
      %v738 = vmul.f32 %v732, %v736
      %v739 = vmul.f32 %v734, %v737
      %v740 = vmul.f32 %v738, 0.044715
      %v741 = vmul.f32 %v739, 0.044715
      %v742 = vadd.f32 %v732, %v740
      %v743 = vadd.f32 %v734, %v741
      %v744 = vmul.f32 %v742, 0.7978846
      %v745 = vmul.f32 %v743, 0.7978846
      %v746 = vtanh.pop %v744
      %v747 = vtanh.pop %v745
      %v748 = vadd.f32 %v746, 1.0
      %v749 = vadd.f32 %v747, 1.0
      %v750 = vmul.f32 %v748, 0.5
      %v751 = vmul.f32 %v749, 0.5
      %v752 = vmul.f32 %v732, %v750
      %v753 = vmul.f32 %v734, %v751
      %v754 = vpack.c.bf16 %v753, %v752
      %v755 = vld [vmem:[%s5] sm:$0xf]
      %v756 = vld [vmem:[%s5 + $0x4] sm:$0xf]
      %v757 = vld [vmem:[%s5 + $0x8] sm:$0xf]
      %v758 = vld [vmem:[%s5 + $0xc] sm:$0xf]
      %v759 = vld [vmem:[%s5 + $0x10] sm:$0xf]
      %v760 = vld [vmem:[%s5 + $0x14] sm:$0xf]
      %v761 = vld [vmem:[%s5 + $0x18] sm:$0xf]
      %v762 = vld [vmem:[%s5 + $0x1c] sm:$0xf]
      %v763 = vld [vmem:[%s5 + $0x20] sm:$0xf]
      %v764 = vld [vmem:[%s5 + $0x24] sm:$0xf]
      %v765 = vld [vmem:[%s5 + $0x28] sm:$0xf]
      %v766 = vld [vmem:[%s5 + $0x2c] sm:$0xf]
      %v767 = vld [vmem:[%s5 + $0x30] sm:$0xf]
      %v768 = vld [vmem:[%s5 + $0x34] sm:$0xf]
      %v769 = vld [vmem:[%s5 + $0x38] sm:$0xf]
      %v770 = vld [vmem:[%s5 + $0x3c] sm:$0xf]
      %v771 = vld [vmem:[%s6] sm:$0x1]
      %v773 = vperm.slane %v771, 0
      %v791 = vunpack.c.l.b16 %v755
      %v792 = vunpack.c.l.b16 %v756
      %v793 = vunpack.c.l.b16 %v757
      %v794 = vunpack.c.l.b16 %v758
      %v795 = vunpack.c.l.b16 %v759
      %v796 = vunpack.c.l.b16 %v760
      %v797 = vunpack.c.l.b16 %v761
      %v798 = vunpack.c.l.b16 %v762
      %v799 = vunpack.c.l.b16 %v763
      %v800 = vunpack.c.l.b16 %v764
      %v801 = vunpack.c.l.b16 %v765
      %v802 = vunpack.c.l.b16 %v766
      %v803 = vunpack.c.l.b16 %v767
      %v804 = vunpack.c.l.b16 %v768
      %v805 = vunpack.c.l.b16 %v769
      %v806 = vunpack.c.l.b16 %v770
      %v807 = vpack.c.b16 %v792, %v791
      %v808 = vpack.c.b16 %v794, %v793
      %v809 = vpack.c.b16 %v796, %v795
      %v810 = vpack.c.b16 %v798, %v797
      %v811 = vpack.c.b16 %v800, %v799
      %v812 = vpack.c.b16 %v802, %v801
      %v813 = vpack.c.b16 %v804, %v803
      %v814 = vpack.c.b16 %v806, %v805
      %823 = vmatpush.bf16.msra.mxu0 %v814
      %824 = vmatpush.bf16.msra.mxu0 %v813
      %825 = vmatpush.bf16.msra.mxu0 %v812
      %826 = vmatpush.bf16.msra.mxu0 %v811
      %827 = vmatpush.bf16.msra.mxu0 %v810
      %828 = vmatpush.bf16.msra.mxu0 %v809
      %829 = vmatpush.bf16.msra.mxu0 %v808
      %830 = vmatpush.bf16.msra.mxu0 %v807
      %831 = vmatmul.bf16.gmra.mxu0 %v754
      %v832 = vpop.f32.mrf.mxu0
      %v833 = vadd.f32 %v773, %v832
      %v834 = vpop.f32.mrf.mxu0
      %v835 = vadd.f32 %v773, %v834
      %836 = vdwg.mxu0
      %v837 = vmul.f32 %v833, %v833
      %v838 = vmul.f32 %v835, %v835
      %v839 = vmul.f32 %v833, %v837
      %v840 = vmul.f32 %v835, %v838
      %v841 = vmul.f32 %v839, 0.044715
      %v842 = vmul.f32 %v840, 0.044715
      %v843 = vadd.f32 %v833, %v841
      %v844 = vadd.f32 %v835, %v842
      %v845 = vmul.f32 %v843, 0.7978846
      %v846 = vmul.f32 %v844, 0.7978846
      %v847 = vtanh.pop %v845
      %v848 = vtanh.pop %v846
      %v849 = vadd.f32 %v847, 1.0
      %v850 = vadd.f32 %v848, 1.0
      %v851 = vmul.f32 %v849, 0.5
      %v852 = vmul.f32 %v850, 0.5
      %v853 = vmul.f32 %v833, %v851
      %v854 = vmul.f32 %v835, %v852
      %v855 = vpack.c.bf16 %v854, %v853
      %v856 = vld [vmem:[%s7] sm:$0xf]
      %v857 = vld [vmem:[%s7 + $0x4] sm:$0xf]
      %v858 = vld [vmem:[%s7 + $0x8] sm:$0xf]
      %v859 = vld [vmem:[%s7 + $0xc] sm:$0xf]
      %v860 = vld [vmem:[%s7 + $0x10] sm:$0xf]
      %v861 = vld [vmem:[%s7 + $0x14] sm:$0xf]
      %v862 = vld [vmem:[%s7 + $0x18] sm:$0xf]
      %v863 = vld [vmem:[%s7 + $0x1c] sm:$0xf]
      %v864 = vld [vmem:[%s7 + $0x20] sm:$0xf]
      %v865 = vld [vmem:[%s7 + $0x24] sm:$0xf]
      %v866 = vld [vmem:[%s7 + $0x28] sm:$0xf]
      %v867 = vld [vmem:[%s7 + $0x2c] sm:$0xf]
      %v868 = vld [vmem:[%s7 + $0x30] sm:$0xf]
      %v869 = vld [vmem:[%s7 + $0x34] sm:$0xf]
      %v870 = vld [vmem:[%s7 + $0x38] sm:$0xf]
      %v871 = vld [vmem:[%s7 + $0x3c] sm:$0xf]
      %v872 = vld [vmem:[%s8] sm:$0x1]
      %v874 = vperm.slane %v872, 0
      %v892 = vunpack.c.l.b16 %v856
      %v893 = vunpack.c.l.b16 %v857
      %v894 = vunpack.c.l.b16 %v858
      %v895 = vunpack.c.l.b16 %v859
      %v896 = vunpack.c.l.b16 %v860
      %v897 = vunpack.c.l.b16 %v861
      %v898 = vunpack.c.l.b16 %v862
      %v899 = vunpack.c.l.b16 %v863
      %v900 = vunpack.c.l.b16 %v864
      %v901 = vunpack.c.l.b16 %v865
      %v902 = vunpack.c.l.b16 %v866
      %v903 = vunpack.c.l.b16 %v867
      %v904 = vunpack.c.l.b16 %v868
      %v905 = vunpack.c.l.b16 %v869
      %v906 = vunpack.c.l.b16 %v870
      %v907 = vunpack.c.l.b16 %v871
      %v908 = vpack.c.b16 %v893, %v892
      %v909 = vpack.c.b16 %v895, %v894
      %v910 = vpack.c.b16 %v897, %v896
      %v911 = vpack.c.b16 %v899, %v898
      %v912 = vpack.c.b16 %v901, %v900
      %v913 = vpack.c.b16 %v903, %v902
      %v914 = vpack.c.b16 %v905, %v904
      %v915 = vpack.c.b16 %v907, %v906
      %924 = vmatpush.bf16.msra.mxu0 %v915
      %925 = vmatpush.bf16.msra.mxu0 %v914
      %926 = vmatpush.bf16.msra.mxu0 %v913
      %927 = vmatpush.bf16.msra.mxu0 %v912
      %928 = vmatpush.bf16.msra.mxu0 %v911
      %929 = vmatpush.bf16.msra.mxu0 %v910
      %930 = vmatpush.bf16.msra.mxu0 %v909
      %931 = vmatpush.bf16.msra.mxu0 %v908
      %932 = vmatmul.bf16.gmra.mxu0 %v855
      %v933 = vpop.f32.mrf.mxu0
      %v934 = vadd.f32 %v874, %v933
      %v935 = vpop.f32.mrf.mxu0
      %v936 = vadd.f32 %v874, %v935
      %937 = vdwg.mxu0
      %938 = vadd.xlane.f32.xlu0 %v934
      %v939 = vpop.xlane.xlu0 %938
      %940 = vadd.xlane.f32.xlu0 %v936
      %v941 = vpop.xlane.xlu0 %940
      %v942 = vmul.f32 %v939, 0.03125
      %v943 = vmul.f32 %v941, 0.03125
      %v944 = vmul.f32 %v934, %v934
      %v945 = vmul.f32 %v936, %v936
      %946 = vadd.xlane.f32.xlu0 %v944
      %v947 = vpop.xlane.xlu0 %946
      %948 = vadd.xlane.f32.xlu0 %v945
      %v949 = vpop.xlane.xlu0 %948
      %v950 = vmul.f32 %v947, 0.03125
      %v951 = vmul.f32 %v949, 0.03125
      %v952 = vmul.f32 %v942, %v942
      %v953 = vmul.f32 %v943, %v943
      %v954 = vsub.f32 %v950, %v952
      %v955 = vsub.f32 %v951, %v953
      %v956 = vsub.f32 %v934, %v942
      %v957 = vsub.f32 %v936, %v943
      %v958 = vadd.f32 %v954, 1e-05
      %v959 = vadd.f32 %v955, 1e-05
      %v960 = vrsqrt.pop %v958
      %v961 = vmul.f32 %v960, %v958
      %v962 = vmul.f32 %v961, %v960
      %v963 = vmul.f32 0.5, %v962
      %v964 = vsub.f32 1.5, %v963
      %v965 = vmul.f32 %v960, %v964
      %vm966 = vweird.f32 %v958
      %vm967 = vweird.f32 %v960
      %vm968 = vmor %vm966, %vm967
      %v969 = vsel %vm968, %v960, %v965
      %v970 = vrsqrt.pop %v959
      %v971 = vmul.f32 %v970, %v959
      %v972 = vmul.f32 %v971, %v970
      %v973 = vmul.f32 0.5, %v972
      %v974 = vsub.f32 1.5, %v973
      %v975 = vmul.f32 %v970, %v974
      %vm976 = vweird.f32 %v959
      %vm977 = vweird.f32 %v970
      %vm978 = vmor %vm976, %vm977
      %v979 = vsel %vm978, %v970, %v975
      %v980 = vmul.f32 %v956, %v969
      %v981 = vmul.f32 %v957, %v979
      %v982 = vld [vmem:[%s9] sm:$0x1]
      %v984 = vperm.slane %v982, 0
      %v986 = vmul.f32 %v980, %v984
      %v987 = vmul.f32 %v981, %v984
      %v988 = vld [vmem:[%s10] sm:$0x1]
      %v990 = vperm.slane %v988, 0
      %v992 = vadd.f32 %v986, %v990
      %v993 = vadd.f32 %v987, %v990
      %p994 = scmp.eq.s32.totalorder %s27, 0
      // Predicated region
      $region65: #{graphnet_forward.11} parent=63 // pred_check
        %p995 = pneg %p994
      $region66: #{graphnet_forward.11} parent=63 // pred_check_branch
        %997 = sbr.rel (%p995) target = $region68
      $region67: #{graphnet_forward.11} parent=63 // pred_region
        %998 = vst [vmem:[#allocation2] sm:$0xff] %v992
        %999 = vst [vmem:[#allocation2 + $0x8] sm:$0xff] %v993
      $region68: #{graphnet_forward.11} parent=63 // pred_fallthru
        _
      %p1000 = scmp.gt.s32.totalorder %s27, 0
      // Predicated region
      $region69: #{graphnet_forward.11} parent=63 // pred_check
        %p1001 = pneg %p1000
      $region70: #{graphnet_forward.11} parent=63 // pred_check_branch
        %1003 = sbr.rel (%p1001) target = $region72
      $region71: #{graphnet_forward.11} parent=63 // pred_region
        %v1004 = vld [vmem:[#allocation2] sm:$0xff]
        %v1005 = vld [vmem:[#allocation2 + $0x8] sm:$0xff]
        %v1006 = vadd.f32 %v1004, %v992
        %v1007 = vadd.f32 %v1005, %v993
        %1008 = vst [vmem:[#allocation2] sm:$0xff] %v1006
        %1009 = vst [vmem:[#allocation2 + $0x8] sm:$0xff] %v1007
      $region72: #{graphnet_forward.11} parent=63 // pred_fallthru
        _
      %p1010 = scmp.eq.s32.totalorder %s27, 3
      // Predicated region
      $region73: #{graphnet_forward.11} parent=63 // pred_check
        %p1011 = pneg %p1010
      $region74: #{graphnet_forward.11} parent=63 // pred_check_branch
        %1013 = sbr.rel (%p1011) target = $region76
      $region75: #{graphnet_forward.11} parent=63 // pred_region
        %v1014 = vld [vmem:[#allocation2] sm:$0xff]
        %v1015 = vld [vmem:[#allocation2 + $0x8] sm:$0xff]
        %v1016 = vmul.f32 %v1014, 0.25
        %v1017 = vmul.f32 %v1015, 0.25
        %v1018 = vld [vmem:[%s466] sm:$0xf]
        %v1019 = vld [vmem:[%s466 + $0x4] sm:$0xf]
        %v1020 = vunpack.c.l.bf16 %v1018
        %v1021 = vunpack.c.l.bf16 %v1019
        %v1022 = vadd.f32 %v1016, %v1020
        %v1023 = vadd.f32 %v1017, %v1021
        %v1024 = vpack.c.bf16 %v1022, %v1022
        %v1025 = vpack.c.bf16 %v1023, %v1023
        %1026 = vst [vmem:[%s472] sm:$0xf] %v1024
        %1027 = vst [vmem:[%s472 + $0x4] sm:$0xf] %v1025
      $region76: #{graphnet_forward.11} parent=63 // pred_fallthru
        _
      %s1028 = smul.u32 2, %s26
      %p1029 = scmp.lt.s32.totalorder %s1028, 1
      %s1030 = scalar_select %p1029, %s1028, 1
      %s1031 = smul.addr %s1030, 4
      %s1032 = scalar_lea.vmem %s11, %s1031
      // Predicated region
      $region77: #{graphnet_forward.11} parent=63 // pred_check
        %p1033 = pneg %p302
      $region78: #{graphnet_forward.11} parent=63 // pred_check_branch
        %1035 = sbr.rel (%p1033) target = $region80
      $region79: #{graphnet_forward.11} parent=63 // pred_region
        %s1036 = smul.u32 2, %s26
      $region80: #{graphnet_forward.11} parent=63 // pred_fallthru
        _
      // Predicated region
      $region81: #{graphnet_forward.11} parent=63 // pred_check
        %p1037 = pneg %p302
      $region82: #{graphnet_forward.11} parent=63 // pred_check_branch
        %1039 = sbr.rel (%p1037) target = $region84
      $region83: #{graphnet_forward.11} parent=63 // pred_region
        %s1040 = smul.u32 2, %s26
        %p1041 = scmp.lt.s32.totalorder %s1040, 1
        %s1042 = scalar_select %p1041, %s1040, 1
        %s1043 = smul.addr %s1042, 4
        %s1044 = scalar_lea.vmem %s11, %s1043
      $region84: #{graphnet_forward.11} parent=63 // pred_fallthru
        _
    $region64: #{graphnet_forward.11} parent=5 // pred_fallthru
      _
    %p1045 = scmp.le.s32.totalorder 2, %s17
    // Predicated region
    $region85: #{graphnet_forward.11} parent=5 // pred_check
      %p1046 = pneg %p1045
    $region86: #{graphnet_forward.11} parent=5 // pred_check_branch
      %1048 = sbr.rel (%p1046) target = $region88
    $region87: #{graphnet_forward.11} parent=5 // pred_region
      %s1049 = ssub.s32 %s17, 2
    $region88: #{graphnet_forward.11} parent=5 // pred_fallthru
      _
  $region6: #{graphnet_forward.11} parent=0 // loop_footer
    %s21 = sadd.s32 1, %s17
  $region7: #{graphnet_forward.11} parent=0 // loop_footer_branch
    %16 = sbr.rel target = $region3
  $region8: #{graphnet_forward.11} parent=0 // loop_exit
    _

// kernel: graphnet_forward.15
$region0: #{graphnet_forward.15}
  #allocation0 [shape = 'u32[]', space=smem, size = 0x4, offset = 0x4, fixed_abs, tag = 'smem constant byte address 0x4 - core index']
  #allocation1 [shape = 'u32[72,128]{1,0:T(1,128)}', space=vmem, size = 0x9000, scoped, tag = 'internal scratch']
  %s0 = inlined_call_operand.vmem [shape: bf16[32,128], index: 0, kind: input, shape index: {}]
  %s1 = inlined_call_operand.vmem [shape: bf16[128,128], index: 1, kind: input, shape index: {}]
  %s2 = inlined_call_operand.vmem [shape: f32[1,128], index: 2, kind: input, shape index: {}]
  %s3 = inlined_call_operand.vmem [shape: bf16[128,128], index: 3, kind: input, shape index: {}]
  %s4 = inlined_call_operand.vmem [shape: f32[1,128], index: 4, kind: input, shape index: {}]
  %s5 = inlined_call_operand.vmem [shape: bf16[128,128], index: 5, kind: input, shape index: {}]
  %s6 = inlined_call_operand.vmem [shape: f32[1,128], index: 6, kind: input, shape index: {}]
  %s7 = inlined_call_operand.vmem [shape: f32[32,128], index: 7, kind: output, shape index: {}]
  %s8 = sld [smem:[#allocation0]]
  $region61: #{graphnet_forward.15} parent=0
    _
  %s10 = ssub.s32 1, %s8
  %s11 = scalar_select 0, %s10, %s8
  loop: start=0, step=1, limit=4
  $region2: #{graphnet_forward.15} parent=0 // loop_pre_header
    _
  $region3: #{graphnet_forward.15} parent=0 // loop_header
    %s13 = sphi 0, %s17
    %p14 = scmp.ge.s32.totalorder %s13, 4
    %s23 = sphi 0, %s25
    %s26 = sphi 0, %s23
    %s27 = sphi 0, %s26
    %s43 = sphi 0, %s27
    %s47 = sphi 0, %s47
    %s49 = sphi 0, %s47
    %s50 = sphi 0, %s49
    %s64 = sphi 0, %s50
    %s68 = sphi 0, %s68
    %s70 = sphi 0, %s68
    %s71 = sphi 0, %s70
    %s85 = sphi 0, %s71
    %s89 = sphi 0, %s89
    %s91 = sphi 0, %s89
    %s92 = sphi 0, %s91
    %s106 = sphi 0, %s92
    %s110 = sphi 0, %s110
    %s112 = sphi 0, %s110
    %s113 = sphi 0, %s112
    %s127 = sphi 0, %s113
    %s131 = sphi 0, %s131
    %s133 = sphi 0, %s131
    %s134 = sphi 0, %s133
    %s148 = sphi 0, %s134
    %s152 = sphi 0, %s152
    %s154 = sphi 0, %s152
    %s155 = sphi 0, %s154
    %s169 = sphi 0, %s155
    %s175 = sphi 0, %s177
    %s178 = sphi 0, %s175
    %s179 = sphi 0, %s178
    %s195 = sphi 0, %s179
  $region4: #{graphnet_forward.15} parent=0 // loop_header_branch
    %16 = sbr.rel (%p14) target = $region8
  $region5: #{graphnet_forward.15} parent=0 // loop_body
    %s18 = ssub.s32 %s13, 1
    %s19 = ssub.s32 %s13, 2
    %s20 = sadd.s32 %s13, 1
    %s21 = ssub.s32 %s13, %s20
    %p22 = scmp.eq.s32.totalorder %s21, 0
    %s24 = sadd.s32 %s23, 1
    %s25 = scalar_select %p22, %s23, %s24
    %p28 = pneg %p22
    %p29 = scmp.eq.s32.totalorder %s13, 1
    %p30 = por %p28, %p29
    %p31 = scmp.ne.s32.totalorder %s23, %s26
    %p32 = scmp.eq.s32.totalorder %s13, 0
    %p33 = por %p31, %p32
    %p34 = scmp.ne.s32.totalorder %s23, %s26
    %p35 = scmp.eq.s32.totalorder %s18, 1
    %p36 = por %p34, %p35
    %p37 = scmp.ne.s32.totalorder %s26, %s27
    %p38 = scmp.eq.s32.totalorder %s18, 0
    %p39 = por %p37, %p38
    %p40 = scmp.ne.s32.totalorder %s26, %s27
    %p41 = scmp.eq.s32.totalorder %s19, 1
    %p42 = por %p40, %p41
    %p44 = scmp.ne.s32.totalorder %s27, %s43
    %p45 = scmp.eq.s32.totalorder %s19, 0
    %p46 = por %p44, %p45
    %s48 = sadd.s32 %s47, 1
    %p51 = scmp.eq.s32.totalorder %s13, 1
    %p52 = scmp.ne.s32.totalorder %s47, %s49
    %p53 = scmp.eq.s32.totalorder %s13, 0
    %p54 = por %p52, %p53
    %p55 = scmp.ne.s32.totalorder %s47, %s49
    %p56 = scmp.eq.s32.totalorder %s18, 1
    %p57 = por %p55, %p56
    %p58 = scmp.ne.s32.totalorder %s49, %s50
    %p59 = scmp.eq.s32.totalorder %s18, 0
    %p60 = por %p58, %p59
    %p61 = scmp.ne.s32.totalorder %s49, %s50
    %p62 = scmp.eq.s32.totalorder %s19, 1
    %p63 = por %p61, %p62
    %p65 = scmp.ne.s32.totalorder %s50, %s64
    %p66 = scmp.eq.s32.totalorder %s19, 0
    %p67 = por %p65, %p66
    %s69 = sadd.s32 %s68, 1
    %p72 = scmp.eq.s32.totalorder %s13, 1
    %p73 = scmp.ne.s32.totalorder %s68, %s70
    %p74 = scmp.eq.s32.totalorder %s13, 0
    %p75 = por %p73, %p74
    %p76 = scmp.ne.s32.totalorder %s68, %s70
    %p77 = scmp.eq.s32.totalorder %s18, 1
    %p78 = por %p76, %p77
    %p79 = scmp.ne.s32.totalorder %s70, %s71
    %p80 = scmp.eq.s32.totalorder %s18, 0
    %p81 = por %p79, %p80
    %p82 = scmp.ne.s32.totalorder %s70, %s71
    %p83 = scmp.eq.s32.totalorder %s19, 1
    %p84 = por %p82, %p83
    %p86 = scmp.ne.s32.totalorder %s71, %s85
    %p87 = scmp.eq.s32.totalorder %s19, 0
    %p88 = por %p86, %p87
    %s90 = sadd.s32 %s89, 1
    %p93 = scmp.eq.s32.totalorder %s13, 1
    %p94 = scmp.ne.s32.totalorder %s89, %s91
    %p95 = scmp.eq.s32.totalorder %s13, 0
    %p96 = por %p94, %p95
    %p97 = scmp.ne.s32.totalorder %s89, %s91
    %p98 = scmp.eq.s32.totalorder %s18, 1
    %p99 = por %p97, %p98
    %p100 = scmp.ne.s32.totalorder %s91, %s92
    %p101 = scmp.eq.s32.totalorder %s18, 0
    %p102 = por %p100, %p101
    %p103 = scmp.ne.s32.totalorder %s91, %s92
    %p104 = scmp.eq.s32.totalorder %s19, 1
    %p105 = por %p103, %p104
    %p107 = scmp.ne.s32.totalorder %s92, %s106
    %p108 = scmp.eq.s32.totalorder %s19, 0
    %p109 = por %p107, %p108
    %s111 = sadd.s32 %s110, 1
    %p114 = scmp.eq.s32.totalorder %s13, 1
    %p115 = scmp.ne.s32.totalorder %s110, %s112
    %p116 = scmp.eq.s32.totalorder %s13, 0
    %p117 = por %p115, %p116
    %p118 = scmp.ne.s32.totalorder %s110, %s112
    %p119 = scmp.eq.s32.totalorder %s18, 1
    %p120 = por %p118, %p119
    %p121 = scmp.ne.s32.totalorder %s112, %s113
    %p122 = scmp.eq.s32.totalorder %s18, 0
    %p123 = por %p121, %p122
    %p124 = scmp.ne.s32.totalorder %s112, %s113
    %p125 = scmp.eq.s32.totalorder %s19, 1
    %p126 = por %p124, %p125
    %p128 = scmp.ne.s32.totalorder %s113, %s127
    %p129 = scmp.eq.s32.totalorder %s19, 0
    %p130 = por %p128, %p129
    %s132 = sadd.s32 %s131, 1
    %p135 = scmp.eq.s32.totalorder %s13, 1
    %p136 = scmp.ne.s32.totalorder %s131, %s133
    %p137 = scmp.eq.s32.totalorder %s13, 0
    %p138 = por %p136, %p137
    %p139 = scmp.ne.s32.totalorder %s131, %s133
    %p140 = scmp.eq.s32.totalorder %s18, 1
    %p141 = por %p139, %p140
    %p142 = scmp.ne.s32.totalorder %s133, %s134
    %p143 = scmp.eq.s32.totalorder %s18, 0
    %p144 = por %p142, %p143
    %p145 = scmp.ne.s32.totalorder %s133, %s134
    %p146 = scmp.eq.s32.totalorder %s19, 1
    %p147 = por %p145, %p146
    %p149 = scmp.ne.s32.totalorder %s134, %s148
    %p150 = scmp.eq.s32.totalorder %s19, 0
    %p151 = por %p149, %p150
    %s153 = sadd.s32 %s152, 1
    %p156 = scmp.eq.s32.totalorder %s13, 1
    %p157 = scmp.ne.s32.totalorder %s152, %s154
    %p158 = scmp.eq.s32.totalorder %s13, 0
    %p159 = por %p157, %p158
    %p160 = scmp.ne.s32.totalorder %s152, %s154
    %p161 = scmp.eq.s32.totalorder %s18, 1
    %p162 = por %p160, %p161
    %p163 = scmp.ne.s32.totalorder %s154, %s155
    %p164 = scmp.eq.s32.totalorder %s18, 0
    %p165 = por %p163, %p164
    %p166 = scmp.ne.s32.totalorder %s154, %s155
    %p167 = scmp.eq.s32.totalorder %s19, 1
    %p168 = por %p166, %p167
    %p170 = scmp.ne.s32.totalorder %s155, %s169
    %p171 = scmp.eq.s32.totalorder %s19, 0
    %p172 = por %p170, %p171
    %s173 = ssub.s32 %s13, %s20
    %p174 = scmp.eq.s32.totalorder %s173, 0
    %s176 = sadd.s32 %s175, 1
    %s177 = scalar_select %p174, %s175, %s176
    %p180 = pneg %p174
    %p181 = scmp.eq.s32.totalorder %s13, 1
    %p182 = por %p180, %p181
    %p183 = scmp.ne.s32.totalorder %s175, %s178
    %p184 = scmp.eq.s32.totalorder %s13, 0
    %p185 = por %p183, %p184
    %p186 = scmp.ne.s32.totalorder %s175, %s178
    %p187 = scmp.eq.s32.totalorder %s18, 1
    %p188 = por %p186, %p187
    %p189 = scmp.ne.s32.totalorder %s178, %s179
    %p190 = scmp.eq.s32.totalorder %s18, 0
    %p191 = por %p189, %p190
    %p192 = scmp.ne.s32.totalorder %s178, %s179
    %p193 = scmp.eq.s32.totalorder %s19, 1
    %p194 = por %p192, %p193
    %p196 = scmp.ne.s32.totalorder %s179, %s195
    %p197 = scmp.eq.s32.totalorder %s19, 0
    %p198 = por %p196, %p197
    %p199 = scmp.le.s32.totalorder 1, %s13
    %p200 = scmp.lt.s32.totalorder %s13, 3
    %p201 = pnand %p199, %p200
    %p202 = pneg %p201
    // Predicated region
    $region9: #{graphnet_forward.15} parent=5 // pred_check
      _
    $region10: #{graphnet_forward.15} parent=5 // pred_check_branch
      %204 = sbr.rel (%p201) target = $region12
    $region11: #{graphnet_forward.15} parent=5 // pred_region
      %s205 = ssub.s32 %s13, 1
      // Predicated region
      $region13: #{graphnet_forward.15} parent=11 // pred_check
        %p206 = pneg %p60
      $region14: #{graphnet_forward.15} parent=11 // pred_check_branch
        %208 = sbr.rel (%p206) target = $region16
      $region15: #{graphnet_forward.15} parent=11 // pred_region
        _
      $region16: #{graphnet_forward.15} parent=11 // pred_fallthru
        _
      // Predicated region
      $region17: #{graphnet_forward.15} parent=11 // pred_check
        %p209 = pneg %p81
      $region18: #{graphnet_forward.15} parent=11 // pred_check_branch
        %211 = sbr.rel (%p209) target = $region20
      $region19: #{graphnet_forward.15} parent=11 // pred_region
        _
      $region20: #{graphnet_forward.15} parent=11 // pred_fallthru
        _
      // Predicated region
      $region21: #{graphnet_forward.15} parent=11 // pred_check
        %p212 = pneg %p102
      $region22: #{graphnet_forward.15} parent=11 // pred_check_branch
        %214 = sbr.rel (%p212) target = $region24
      $region23: #{graphnet_forward.15} parent=11 // pred_region
        _
      $region24: #{graphnet_forward.15} parent=11 // pred_fallthru
        _
      // Predicated region
      $region25: #{graphnet_forward.15} parent=11 // pred_check
        %p215 = pneg %p123
      $region26: #{graphnet_forward.15} parent=11 // pred_check_branch
        %217 = sbr.rel (%p215) target = $region28
      $region27: #{graphnet_forward.15} parent=11 // pred_region
        _
      $region28: #{graphnet_forward.15} parent=11 // pred_fallthru
        _
      // Predicated region
      $region29: #{graphnet_forward.15} parent=11 // pred_check
        %p218 = pneg %p144
      $region30: #{graphnet_forward.15} parent=11 // pred_check_branch
        %220 = sbr.rel (%p218) target = $region32
      $region31: #{graphnet_forward.15} parent=11 // pred_region
        _
      $region32: #{graphnet_forward.15} parent=11 // pred_fallthru
        _
      // Predicated region
      $region33: #{graphnet_forward.15} parent=11 // pred_check
        %p221 = pneg %p165
      $region34: #{graphnet_forward.15} parent=11 // pred_check_branch
        %223 = sbr.rel (%p221) target = $region36
      $region35: #{graphnet_forward.15} parent=11 // pred_region
        _
      $region36: #{graphnet_forward.15} parent=11 // pred_fallthru
        _
    $region12: #{graphnet_forward.15} parent=5 // pred_fallthru
      _
    %p224 = scmp.lt.s32.totalorder %s13, 2
    // Predicated region
    $region37: #{graphnet_forward.15} parent=5 // pred_check
      %p225 = pneg %p224
    $region38: #{graphnet_forward.15} parent=5 // pred_check_branch
      %227 = sbr.rel (%p225) target = $region40
    $region39: #{graphnet_forward.15} parent=5 // pred_region
      // Predicated region
      $region41: #{graphnet_forward.15} parent=39 // pred_check
        %p228 = pneg %p33
      $region42: #{graphnet_forward.15} parent=39 // pred_check_branch
        %230 = sbr.rel (%p228) target = $region44
      $region43: #{graphnet_forward.15} parent=39 // pred_region
        %s231 = smul.u32 2, %s13
        %p232 = scmp.lt.s32.totalorder %s231, 3
        %s233 = scalar_select %p232, %s231, 3
        %s234 = smul.addr %s233, 4
        %s235 = scalar_lea.vmem %s0, %s234
        %s236 = smul.u32 2, %s13
      $region44: #{graphnet_forward.15} parent=39 // pred_fallthru
        _
    $region40: #{graphnet_forward.15} parent=5 // pred_fallthru
      _
    %p237 = scmp.le.s32.totalorder 1, %s13
    %p238 = scmp.lt.s32.totalorder %s13, 3
    %p239 = pnand %p237, %p238
    %p240 = pneg %p239
    // Predicated region
    $region45: #{graphnet_forward.15} parent=5 // pred_check
      _
    $region46: #{graphnet_forward.15} parent=5 // pred_check_branch
      %242 = sbr.rel (%p239) target = $region48
    $region47: #{graphnet_forward.15} parent=5 // pred_region
      %s243 = ssub.s32 %s13, 1
      %s244 = smul.u32 2, %s18
      %p245 = scmp.lt.s32.totalorder %s244, 3
      %s246 = scalar_select %p245, %s244, 3
      %s247 = smul.addr %s246, 4
      %s248 = scalar_lea.vmem %s0, %s247
      %p249 = pneg %p39
      %p250 = pneg %p36
      %p251 = pneg %p60
      %p252 = pneg %p57
      %p253 = pneg %p81
      %p254 = pneg %p78
      %p255 = pneg %p102
      %p256 = pneg %p99
      %p257 = pneg %p123
      %p258 = pneg %p120
      %p259 = pneg %p144
      %p260 = pneg %p141
      %p261 = pneg %p165
      %p262 = pneg %p162
      %p263 = pneg %p191
      %p264 = pneg %p188
      %s265 = smul.u32 2, %s18
      %p266 = scmp.lt.s32.totalorder %s265, 3
      %s267 = scalar_select %p266, %s265, 3
      %s268 = smul.addr %s267, 8
      %s269 = scalar_lea.vmem %s7, %s268
      %s270 = smul.u32 2, %s18
      %p271 = scmp.lt.s32.totalorder %s270, 3
      %s272 = scalar_select %p271, %s270, 3
      %s273 = smul.addr %s272, 4
      %s274 = scalar_lea.vmem %s0, %s273
      %s275 = smul.u32 2, %s18
      %s276 = smul.u32 2, %s18
      %p277 = scmp.lt.s32.totalorder %s276, 3
      %s278 = scalar_select %p277, %s276, 3
      %s279 = smul.addr %s278, 8
      %s280 = scalar_lea.vmem %s7, %s279
      %s281 = smul.u32 2, %s18
      %v282 = vld [vmem:[%s274] sm:$0xf]
      %v283 = vld [vmem:[%s274 + $0x4] sm:$0xf]
      %v284 = vld [vmem:[%s1] sm:$0xf]
      %v285 = vld [vmem:[%s1 + $0x4] sm:$0xf]
      %v286 = vld [vmem:[%s1 + $0x8] sm:$0xf]
      %v287 = vld [vmem:[%s1 + $0xc] sm:$0xf]
      %v288 = vld [vmem:[%s1 + $0x10] sm:$0xf]
      %v289 = vld [vmem:[%s1 + $0x14] sm:$0xf]
      %v290 = vld [vmem:[%s1 + $0x18] sm:$0xf]
      %v291 = vld [vmem:[%s1 + $0x1c] sm:$0xf]
      %v292 = vld [vmem:[%s1 + $0x20] sm:$0xf]
      %v293 = vld [vmem:[%s1 + $0x24] sm:$0xf]
      %v294 = vld [vmem:[%s1 + $0x28] sm:$0xf]
      %v295 = vld [vmem:[%s1 + $0x2c] sm:$0xf]
      %v296 = vld [vmem:[%s1 + $0x30] sm:$0xf]
      %v297 = vld [vmem:[%s1 + $0x34] sm:$0xf]
      %v298 = vld [vmem:[%s1 + $0x38] sm:$0xf]
      %v299 = vld [vmem:[%s1 + $0x3c] sm:$0xf]
      %v300 = vld [vmem:[%s2] sm:$0x1]
      %v302 = vperm.slane %v300, 0
      %v306 = vunpack.c.l.b16 %v282
      %v307 = vunpack.c.l.b16 %v283
      %v308 = vpack.c.b16 %v307, %v306
      %v326 = vunpack.c.l.b16 %v284
      %v327 = vunpack.c.l.b16 %v285
      %v328 = vunpack.c.l.b16 %v286
      %v329 = vunpack.c.l.b16 %v287
      %v330 = vunpack.c.l.b16 %v288
      %v331 = vunpack.c.l.b16 %v289
      %v332 = vunpack.c.l.b16 %v290
      %v333 = vunpack.c.l.b16 %v291
      %v334 = vunpack.c.l.b16 %v292
      %v335 = vunpack.c.l.b16 %v293
      %v336 = vunpack.c.l.b16 %v294
      %v337 = vunpack.c.l.b16 %v295
      %v338 = vunpack.c.l.b16 %v296
      %v339 = vunpack.c.l.b16 %v297
      %v340 = vunpack.c.l.b16 %v298
      %v341 = vunpack.c.l.b16 %v299
      %v342 = vpack.c.b16 %v327, %v326
      %v343 = vpack.c.b16 %v329, %v328
      %v344 = vpack.c.b16 %v331, %v330
      %v345 = vpack.c.b16 %v333, %v332
      %v346 = vpack.c.b16 %v335, %v334
      %v347 = vpack.c.b16 %v337, %v336
      %v348 = vpack.c.b16 %v339, %v338
      %v349 = vpack.c.b16 %v341, %v340
      %358 = vmatpush.bf16.msra.mxu0 %v349
      %359 = vmatpush.bf16.msra.mxu0 %v348
      %360 = vmatpush.bf16.msra.mxu0 %v347
      %361 = vmatpush.bf16.msra.mxu0 %v346
      %362 = vmatpush.bf16.msra.mxu0 %v345
      %363 = vmatpush.bf16.msra.mxu0 %v344
      %364 = vmatpush.bf16.msra.mxu0 %v343
      %365 = vmatpush.bf16.msra.mxu0 %v342
      %366 = vmatmul.bf16.gmra.mxu0 %v308
      %v367 = vpop.f32.mrf.mxu0
      %v368 = vadd.f32 %v302, %v367
      %v369 = vpop.f32.mrf.mxu0
      %v370 = vadd.f32 %v302, %v369
      %371 = vdwg.mxu0
      %v372 = vmul.f32 %v368, %v368
      %v373 = vmul.f32 %v370, %v370
      %v374 = vmul.f32 %v368, %v372
      %v375 = vmul.f32 %v370, %v373
      %v376 = vmul.f32 %v374, 0.044715
      %v377 = vmul.f32 %v375, 0.044715
      %v378 = vadd.f32 %v368, %v376
      %v379 = vadd.f32 %v370, %v377
      %v380 = vmul.f32 %v378, 0.7978846
      %v381 = vmul.f32 %v379, 0.7978846
      %v382 = vtanh.pop %v380
      %v383 = vtanh.pop %v381
      %v384 = vadd.f32 %v382, 1.0
      %v385 = vadd.f32 %v383, 1.0
      %v386 = vmul.f32 %v384, 0.5
      %v387 = vmul.f32 %v385, 0.5
      %v388 = vmul.f32 %v368, %v386
      %v389 = vmul.f32 %v370, %v387
      %v390 = vpack.c.bf16 %v389, %v388
      %v391 = vld [vmem:[%s3] sm:$0xf]
      %v392 = vld [vmem:[%s3 + $0x4] sm:$0xf]
      %v393 = vld [vmem:[%s3 + $0x8] sm:$0xf]
      %v394 = vld [vmem:[%s3 + $0xc] sm:$0xf]
      %v395 = vld [vmem:[%s3 + $0x10] sm:$0xf]
      %v396 = vld [vmem:[%s3 + $0x14] sm:$0xf]
      %v397 = vld [vmem:[%s3 + $0x18] sm:$0xf]
      %v398 = vld [vmem:[%s3 + $0x1c] sm:$0xf]
      %v399 = vld [vmem:[%s3 + $0x20] sm:$0xf]
      %v400 = vld [vmem:[%s3 + $0x24] sm:$0xf]
      %v401 = vld [vmem:[%s3 + $0x28] sm:$0xf]
      %v402 = vld [vmem:[%s3 + $0x2c] sm:$0xf]
      %v403 = vld [vmem:[%s3 + $0x30] sm:$0xf]
      %v404 = vld [vmem:[%s3 + $0x34] sm:$0xf]
      %v405 = vld [vmem:[%s3 + $0x38] sm:$0xf]
      %v406 = vld [vmem:[%s3 + $0x3c] sm:$0xf]
      %v407 = vld [vmem:[%s4] sm:$0x1]
      %v409 = vperm.slane %v407, 0
      %v427 = vunpack.c.l.b16 %v391
      %v428 = vunpack.c.l.b16 %v392
      %v429 = vunpack.c.l.b16 %v393
      %v430 = vunpack.c.l.b16 %v394
      %v431 = vunpack.c.l.b16 %v395
      %v432 = vunpack.c.l.b16 %v396
      %v433 = vunpack.c.l.b16 %v397
      %v434 = vunpack.c.l.b16 %v398
      %v435 = vunpack.c.l.b16 %v399
      %v436 = vunpack.c.l.b16 %v400
      %v437 = vunpack.c.l.b16 %v401
      %v438 = vunpack.c.l.b16 %v402
      %v439 = vunpack.c.l.b16 %v403
      %v440 = vunpack.c.l.b16 %v404
      %v441 = vunpack.c.l.b16 %v405
      %v442 = vunpack.c.l.b16 %v406
      %v443 = vpack.c.b16 %v428, %v427
      %v444 = vpack.c.b16 %v430, %v429
      %v445 = vpack.c.b16 %v432, %v431
      %v446 = vpack.c.b16 %v434, %v433
      %v447 = vpack.c.b16 %v436, %v435
      %v448 = vpack.c.b16 %v438, %v437
      %v449 = vpack.c.b16 %v440, %v439
      %v450 = vpack.c.b16 %v442, %v441
      %459 = vmatpush.bf16.msra.mxu0 %v450
      %460 = vmatpush.bf16.msra.mxu0 %v449
      %461 = vmatpush.bf16.msra.mxu0 %v448
      %462 = vmatpush.bf16.msra.mxu0 %v447
      %463 = vmatpush.bf16.msra.mxu0 %v446
      %464 = vmatpush.bf16.msra.mxu0 %v445
      %465 = vmatpush.bf16.msra.mxu0 %v444
      %466 = vmatpush.bf16.msra.mxu0 %v443
      %467 = vmatmul.bf16.gmra.mxu0 %v390
      %v468 = vpop.f32.mrf.mxu0
      %v469 = vadd.f32 %v409, %v468
      %v470 = vpop.f32.mrf.mxu0
      %v471 = vadd.f32 %v409, %v470
      %472 = vdwg.mxu0
      %v473 = vmul.f32 %v469, %v469
      %v474 = vmul.f32 %v471, %v471
      %v475 = vmul.f32 %v469, %v473
      %v476 = vmul.f32 %v471, %v474
      %v477 = vmul.f32 %v475, 0.044715
      %v478 = vmul.f32 %v476, 0.044715
      %v479 = vadd.f32 %v469, %v477
      %v480 = vadd.f32 %v471, %v478
      %v481 = vmul.f32 %v479, 0.7978846
      %v482 = vmul.f32 %v480, 0.7978846
      %v483 = vtanh.pop %v481
      %v484 = vtanh.pop %v482
      %v485 = vadd.f32 %v483, 1.0
      %v486 = vadd.f32 %v484, 1.0
      %v487 = vmul.f32 %v485, 0.5
      %v488 = vmul.f32 %v486, 0.5
      %v489 = vmul.f32 %v469, %v487
      %v490 = vmul.f32 %v471, %v488
      %v491 = vpack.c.bf16 %v490, %v489
      %v492 = vld [vmem:[%s5] sm:$0xf]
      %v493 = vld [vmem:[%s5 + $0x4] sm:$0xf]
      %v494 = vld [vmem:[%s5 + $0x8] sm:$0xf]
      %v495 = vld [vmem:[%s5 + $0xc] sm:$0xf]
      %v496 = vld [vmem:[%s5 + $0x10] sm:$0xf]
      %v497 = vld [vmem:[%s5 + $0x14] sm:$0xf]
      %v498 = vld [vmem:[%s5 + $0x18] sm:$0xf]
      %v499 = vld [vmem:[%s5 + $0x1c] sm:$0xf]
      %v500 = vld [vmem:[%s5 + $0x20] sm:$0xf]
      %v501 = vld [vmem:[%s5 + $0x24] sm:$0xf]
      %v502 = vld [vmem:[%s5 + $0x28] sm:$0xf]
      %v503 = vld [vmem:[%s5 + $0x2c] sm:$0xf]
      %v504 = vld [vmem:[%s5 + $0x30] sm:$0xf]
      %v505 = vld [vmem:[%s5 + $0x34] sm:$0xf]
      %v506 = vld [vmem:[%s5 + $0x38] sm:$0xf]
      %v507 = vld [vmem:[%s5 + $0x3c] sm:$0xf]
      %v508 = vld [vmem:[%s6] sm:$0x1]
      %v510 = vperm.slane %v508, 0
      %v528 = vunpack.c.l.b16 %v492
      %v529 = vunpack.c.l.b16 %v493
      %v530 = vunpack.c.l.b16 %v494
      %v531 = vunpack.c.l.b16 %v495
      %v532 = vunpack.c.l.b16 %v496
      %v533 = vunpack.c.l.b16 %v497
      %v534 = vunpack.c.l.b16 %v498
      %v535 = vunpack.c.l.b16 %v499
      %v536 = vunpack.c.l.b16 %v500
      %v537 = vunpack.c.l.b16 %v501
      %v538 = vunpack.c.l.b16 %v502
      %v539 = vunpack.c.l.b16 %v503
      %v540 = vunpack.c.l.b16 %v504
      %v541 = vunpack.c.l.b16 %v505
      %v542 = vunpack.c.l.b16 %v506
      %v543 = vunpack.c.l.b16 %v507
      %v544 = vpack.c.b16 %v529, %v528
      %v545 = vpack.c.b16 %v531, %v530
      %v546 = vpack.c.b16 %v533, %v532
      %v547 = vpack.c.b16 %v535, %v534
      %v548 = vpack.c.b16 %v537, %v536
      %v549 = vpack.c.b16 %v539, %v538
      %v550 = vpack.c.b16 %v541, %v540
      %v551 = vpack.c.b16 %v543, %v542
      %560 = vmatpush.bf16.msra.mxu0 %v551
      %561 = vmatpush.bf16.msra.mxu0 %v550
      %562 = vmatpush.bf16.msra.mxu0 %v549
      %563 = vmatpush.bf16.msra.mxu0 %v548
      %564 = vmatpush.bf16.msra.mxu0 %v547
      %565 = vmatpush.bf16.msra.mxu0 %v546
      %566 = vmatpush.bf16.msra.mxu0 %v545
      %567 = vmatpush.bf16.msra.mxu0 %v544
      %568 = vmatmul.bf16.gmra.mxu0 %v491
      %v569 = vpop.f32.mrf.mxu0
      %v570 = vadd.f32 %v510, %v569
      %v571 = vpop.f32.mrf.mxu0
      %v572 = vadd.f32 %v510, %v571
      %573 = vdwg.mxu0
      %574 = vst [vmem:[%s280] sm:$0xff] %v570
      %575 = vst [vmem:[%s280 + $0x8] sm:$0xff] %v572
      %s576 = smul.u32 2, %s18
      %p577 = scmp.lt.s32.totalorder %s576, 3
      %s578 = scalar_select %p577, %s576, 3
      %s579 = smul.addr %s578, 8
      %s580 = scalar_lea.vmem %s7, %s579
      // Predicated region
      $region49: #{graphnet_forward.15} parent=47 // pred_check
        %p581 = pneg %p188
      $region50: #{graphnet_forward.15} parent=47 // pred_check_branch
        %583 = sbr.rel (%p581) target = $region52
      $region51: #{graphnet_forward.15} parent=47 // pred_region
        %s584 = smul.u32 2, %s18
      $region52: #{graphnet_forward.15} parent=47 // pred_fallthru
        _
    $region48: #{graphnet_forward.15} parent=5 // pred_fallthru
      _
    %p585 = scmp.le.s32.totalorder 2, %s13
    // Predicated region
    $region53: #{graphnet_forward.15} parent=5 // pred_check
      %p586 = pneg %p585
    $region54: #{graphnet_forward.15} parent=5 // pred_check_branch
      %588 = sbr.rel (%p586) target = $region56
    $region55: #{graphnet_forward.15} parent=5 // pred_region
      %s589 = ssub.s32 %s13, 2
      // Predicated region
      $region57: #{graphnet_forward.15} parent=55 // pred_check
        %p590 = pneg %p194
      $region58: #{graphnet_forward.15} parent=55 // pred_check_branch
        %592 = sbr.rel (%p590) target = $region60
      $region59: #{graphnet_forward.15} parent=55 // pred_region
        %s593 = smul.u32 2, %s19
        %p594 = scmp.lt.s32.totalorder %s593, 3
        %s595 = scalar_select %p594, %s593, 3
        %s596 = smul.addr %s595, 8
        %s597 = scalar_lea.vmem %s7, %s596
      $region60: #{graphnet_forward.15} parent=55 // pred_fallthru
        _
    $region56: #{graphnet_forward.15} parent=5 // pred_fallthru
      _
  $region6: #{graphnet_forward.15} parent=0 // loop_footer
    %s17 = sadd.s32 1, %s13
  $region7: #{graphnet_forward.15} parent=0 // loop_footer_branch
    %12 = sbr.rel target = $region3
  $region8: #{graphnet_forward.15} parent=0 // loop_exit
    _

// kernel: graphnet_forward.12
$region0: #{graphnet_forward.12}
  #allocation0 [shape = 'u32[]', space=smem, size = 0x4, offset = 0x4, fixed_abs, tag = 'smem constant byte address 0x4 - core index']
  #allocation1 [shape = 'u32[72,128]{1,0:T(1,128)}', space=vmem, size = 0x9000, scoped, tag = 'internal scratch']
  %s0 = inlined_call_operand.vmem [shape: bf16[32,128], index: 0, kind: input, shape index: {}]
  %s1 = inlined_call_operand.vmem [shape: bf16[32,128], index: 1, kind: input, shape index: {}]
  %s2 = inlined_call_operand.vmem [shape: bf16[256,128], index: 2, kind: input, shape index: {}]
  %s3 = inlined_call_operand.vmem [shape: f32[1,128], index: 3, kind: input, shape index: {}]
  %s4 = inlined_call_operand.vmem [shape: bf16[128,128], index: 4, kind: input, shape index: {}]
  %s5 = inlined_call_operand.vmem [shape: f32[1,128], index: 5, kind: input, shape index: {}]
  %s6 = inlined_call_operand.vmem [shape: bf16[128,128], index: 6, kind: input, shape index: {}]
  %s7 = inlined_call_operand.vmem [shape: f32[1,128], index: 7, kind: input, shape index: {}]
  %s8 = inlined_call_operand.vmem [shape: f32[1,128], index: 8, kind: input, shape index: {}]
  %s9 = inlined_call_operand.vmem [shape: f32[1,128], index: 9, kind: input, shape index: {}]
  %s10 = inlined_call_operand.vmem [shape: bf16[32,128], index: 10, kind: output, shape index: {}]
  %s11 = sld [smem:[#allocation0]]
  $region73: #{graphnet_forward.12} parent=0
    _
  %s13 = ssub.s32 1, %s11
  %s14 = scalar_select 0, %s13, %s11
  loop: start=0, step=1, limit=4
  $region2: #{graphnet_forward.12} parent=0 // loop_pre_header
    _
  $region3: #{graphnet_forward.12} parent=0 // loop_header
    %s16 = sphi 0, %s20
    %p17 = scmp.ge.s32.totalorder %s16, 4
    %s26 = sphi 0, %s28
    %s29 = sphi 0, %s26
    %s30 = sphi 0, %s29
    %s46 = sphi 0, %s30
    %s52 = sphi 0, %s54
    %s55 = sphi 0, %s52
    %s56 = sphi 0, %s55
    %s72 = sphi 0, %s56
    %s76 = sphi 0, %s76
    %s78 = sphi 0, %s76
    %s79 = sphi 0, %s78
    %s93 = sphi 0, %s79
    %s97 = sphi 0, %s97
    %s99 = sphi 0, %s97
    %s100 = sphi 0, %s99
    %s114 = sphi 0, %s100
    %s118 = sphi 0, %s118
    %s120 = sphi 0, %s118
    %s121 = sphi 0, %s120
    %s135 = sphi 0, %s121
    %s139 = sphi 0, %s139
    %s141 = sphi 0, %s139
    %s142 = sphi 0, %s141
    %s156 = sphi 0, %s142
    %s160 = sphi 0, %s160
    %s162 = sphi 0, %s160
    %s163 = sphi 0, %s162
    %s177 = sphi 0, %s163
    %s181 = sphi 0, %s181
    %s183 = sphi 0, %s181
    %s184 = sphi 0, %s183
    %s198 = sphi 0, %s184
    %s202 = sphi 0, %s202
    %s204 = sphi 0, %s202
    %s205 = sphi 0, %s204
    %s219 = sphi 0, %s205
    %s223 = sphi 0, %s223
    %s225 = sphi 0, %s223
    %s226 = sphi 0, %s225
    %s240 = sphi 0, %s226
    %s246 = sphi 0, %s248
    %s249 = sphi 0, %s246
    %s250 = sphi 0, %s249
    %s266 = sphi 0, %s250
  $region4: #{graphnet_forward.12} parent=0 // loop_header_branch
    %19 = sbr.rel (%p17) target = $region8
  $region5: #{graphnet_forward.12} parent=0 // loop_body
    %s21 = ssub.s32 %s16, 1
    %s22 = ssub.s32 %s16, 2
    %s23 = sadd.s32 %s16, 1
    %s24 = ssub.s32 %s16, %s23
    %p25 = scmp.eq.s32.totalorder %s24, 0
    %s27 = sadd.s32 %s26, 1
    %s28 = scalar_select %p25, %s26, %s27
    %p31 = pneg %p25
    %p32 = scmp.eq.s32.totalorder %s16, 1
    %p33 = por %p31, %p32
    %p34 = scmp.ne.s32.totalorder %s26, %s29
    %p35 = scmp.eq.s32.totalorder %s16, 0
    %p36 = por %p34, %p35
    %p37 = scmp.ne.s32.totalorder %s26, %s29
    %p38 = scmp.eq.s32.totalorder %s21, 1
    %p39 = por %p37, %p38
    %p40 = scmp.ne.s32.totalorder %s29, %s30
    %p41 = scmp.eq.s32.totalorder %s21, 0
    %p42 = por %p40, %p41
    %p43 = scmp.ne.s32.totalorder %s29, %s30
    %p44 = scmp.eq.s32.totalorder %s22, 1
    %p45 = por %p43, %p44
    %p47 = scmp.ne.s32.totalorder %s30, %s46
    %p48 = scmp.eq.s32.totalorder %s22, 0
    %p49 = por %p47, %p48
    %s50 = ssub.s32 %s16, %s23
    %p51 = scmp.eq.s32.totalorder %s50, 0
    %s53 = sadd.s32 %s52, 1
    %s54 = scalar_select %p51, %s52, %s53
    %p57 = pneg %p51
    %p58 = scmp.eq.s32.totalorder %s16, 1
    %p59 = por %p57, %p58
    %p60 = scmp.ne.s32.totalorder %s52, %s55
    %p61 = scmp.eq.s32.totalorder %s16, 0
    %p62 = por %p60, %p61
    %p63 = scmp.ne.s32.totalorder %s52, %s55
    %p64 = scmp.eq.s32.totalorder %s21, 1
    %p65 = por %p63, %p64
    %p66 = scmp.ne.s32.totalorder %s55, %s56
    %p67 = scmp.eq.s32.totalorder %s21, 0
    %p68 = por %p66, %p67
    %p69 = scmp.ne.s32.totalorder %s55, %s56
    %p70 = scmp.eq.s32.totalorder %s22, 1
    %p71 = por %p69, %p70
    %p73 = scmp.ne.s32.totalorder %s56, %s72
    %p74 = scmp.eq.s32.totalorder %s22, 0
    %p75 = por %p73, %p74
    %s77 = sadd.s32 %s76, 1
    %p80 = scmp.eq.s32.totalorder %s16, 1
    %p81 = scmp.ne.s32.totalorder %s76, %s78
    %p82 = scmp.eq.s32.totalorder %s16, 0
    %p83 = por %p81, %p82
    %p84 = scmp.ne.s32.totalorder %s76, %s78
    %p85 = scmp.eq.s32.totalorder %s21, 1
    %p86 = por %p84, %p85
    %p87 = scmp.ne.s32.totalorder %s78, %s79
    %p88 = scmp.eq.s32.totalorder %s21, 0
    %p89 = por %p87, %p88
    %p90 = scmp.ne.s32.totalorder %s78, %s79
    %p91 = scmp.eq.s32.totalorder %s22, 1
    %p92 = por %p90, %p91
    %p94 = scmp.ne.s32.totalorder %s79, %s93
    %p95 = scmp.eq.s32.totalorder %s22, 0
    %p96 = por %p94, %p95
    %s98 = sadd.s32 %s97, 1
    %p101 = scmp.eq.s32.totalorder %s16, 1
    %p102 = scmp.ne.s32.totalorder %s97, %s99
    %p103 = scmp.eq.s32.totalorder %s16, 0
    %p104 = por %p102, %p103
    %p105 = scmp.ne.s32.totalorder %s97, %s99
    %p106 = scmp.eq.s32.totalorder %s21, 1
    %p107 = por %p105, %p106
    %p108 = scmp.ne.s32.totalorder %s99, %s100
    %p109 = scmp.eq.s32.totalorder %s21, 0
    %p110 = por %p108, %p109
    %p111 = scmp.ne.s32.totalorder %s99, %s100
    %p112 = scmp.eq.s32.totalorder %s22, 1
    %p113 = por %p111, %p112
    %p115 = scmp.ne.s32.totalorder %s100, %s114
    %p116 = scmp.eq.s32.totalorder %s22, 0
    %p117 = por %p115, %p116
    %s119 = sadd.s32 %s118, 1
    %p122 = scmp.eq.s32.totalorder %s16, 1
    %p123 = scmp.ne.s32.totalorder %s118, %s120
    %p124 = scmp.eq.s32.totalorder %s16, 0
    %p125 = por %p123, %p124
    %p126 = scmp.ne.s32.totalorder %s118, %s120
    %p127 = scmp.eq.s32.totalorder %s21, 1
    %p128 = por %p126, %p127
    %p129 = scmp.ne.s32.totalorder %s120, %s121
    %p130 = scmp.eq.s32.totalorder %s21, 0
    %p131 = por %p129, %p130
    %p132 = scmp.ne.s32.totalorder %s120, %s121
    %p133 = scmp.eq.s32.totalorder %s22, 1
    %p134 = por %p132, %p133
    %p136 = scmp.ne.s32.totalorder %s121, %s135
    %p137 = scmp.eq.s32.totalorder %s22, 0
    %p138 = por %p136, %p137
    %s140 = sadd.s32 %s139, 1
    %p143 = scmp.eq.s32.totalorder %s16, 1
    %p144 = scmp.ne.s32.totalorder %s139, %s141
    %p145 = scmp.eq.s32.totalorder %s16, 0
    %p146 = por %p144, %p145
    %p147 = scmp.ne.s32.totalorder %s139, %s141
    %p148 = scmp.eq.s32.totalorder %s21, 1
    %p149 = por %p147, %p148
    %p150 = scmp.ne.s32.totalorder %s141, %s142
    %p151 = scmp.eq.s32.totalorder %s21, 0
    %p152 = por %p150, %p151
    %p153 = scmp.ne.s32.totalorder %s141, %s142
    %p154 = scmp.eq.s32.totalorder %s22, 1
    %p155 = por %p153, %p154
    %p157 = scmp.ne.s32.totalorder %s142, %s156
    %p158 = scmp.eq.s32.totalorder %s22, 0
    %p159 = por %p157, %p158
    %s161 = sadd.s32 %s160, 1
    %p164 = scmp.eq.s32.totalorder %s16, 1
    %p165 = scmp.ne.s32.totalorder %s160, %s162
    %p166 = scmp.eq.s32.totalorder %s16, 0
    %p167 = por %p165, %p166
    %p168 = scmp.ne.s32.totalorder %s160, %s162
    %p169 = scmp.eq.s32.totalorder %s21, 1
    %p170 = por %p168, %p169
    %p171 = scmp.ne.s32.totalorder %s162, %s163
    %p172 = scmp.eq.s32.totalorder %s21, 0
    %p173 = por %p171, %p172
    %p174 = scmp.ne.s32.totalorder %s162, %s163
    %p175 = scmp.eq.s32.totalorder %s22, 1
    %p176 = por %p174, %p175
    %p178 = scmp.ne.s32.totalorder %s163, %s177
    %p179 = scmp.eq.s32.totalorder %s22, 0
    %p180 = por %p178, %p179
    %s182 = sadd.s32 %s181, 1
    %p185 = scmp.eq.s32.totalorder %s16, 1
    %p186 = scmp.ne.s32.totalorder %s181, %s183
    %p187 = scmp.eq.s32.totalorder %s16, 0
    %p188 = por %p186, %p187
    %p189 = scmp.ne.s32.totalorder %s181, %s183
    %p190 = scmp.eq.s32.totalorder %s21, 1
    %p191 = por %p189, %p190
    %p192 = scmp.ne.s32.totalorder %s183, %s184
    %p193 = scmp.eq.s32.totalorder %s21, 0
    %p194 = por %p192, %p193
    %p195 = scmp.ne.s32.totalorder %s183, %s184
    %p196 = scmp.eq.s32.totalorder %s22, 1
    %p197 = por %p195, %p196
    %p199 = scmp.ne.s32.totalorder %s184, %s198
    %p200 = scmp.eq.s32.totalorder %s22, 0
    %p201 = por %p199, %p200
    %s203 = sadd.s32 %s202, 1
    %p206 = scmp.eq.s32.totalorder %s16, 1
    %p207 = scmp.ne.s32.totalorder %s202, %s204
    %p208 = scmp.eq.s32.totalorder %s16, 0
    %p209 = por %p207, %p208
    %p210 = scmp.ne.s32.totalorder %s202, %s204
    %p211 = scmp.eq.s32.totalorder %s21, 1
    %p212 = por %p210, %p211
    %p213 = scmp.ne.s32.totalorder %s204, %s205
    %p214 = scmp.eq.s32.totalorder %s21, 0
    %p215 = por %p213, %p214
    %p216 = scmp.ne.s32.totalorder %s204, %s205
    %p217 = scmp.eq.s32.totalorder %s22, 1
    %p218 = por %p216, %p217
    %p220 = scmp.ne.s32.totalorder %s205, %s219
    %p221 = scmp.eq.s32.totalorder %s22, 0
    %p222 = por %p220, %p221
    %s224 = sadd.s32 %s223, 1
    %p227 = scmp.eq.s32.totalorder %s16, 1
    %p228 = scmp.ne.s32.totalorder %s223, %s225
    %p229 = scmp.eq.s32.totalorder %s16, 0
    %p230 = por %p228, %p229
    %p231 = scmp.ne.s32.totalorder %s223, %s225
    %p232 = scmp.eq.s32.totalorder %s21, 1
    %p233 = por %p231, %p232
    %p234 = scmp.ne.s32.totalorder %s225, %s226
    %p235 = scmp.eq.s32.totalorder %s21, 0
    %p236 = por %p234, %p235
    %p237 = scmp.ne.s32.totalorder %s225, %s226
    %p238 = scmp.eq.s32.totalorder %s22, 1
    %p239 = por %p237, %p238
    %p241 = scmp.ne.s32.totalorder %s226, %s240
    %p242 = scmp.eq.s32.totalorder %s22, 0
    %p243 = por %p241, %p242
    %s244 = ssub.s32 %s16, %s23
    %p245 = scmp.eq.s32.totalorder %s244, 0
    %s247 = sadd.s32 %s246, 1
    %s248 = scalar_select %p245, %s246, %s247
    %p251 = pneg %p245
    %p252 = scmp.eq.s32.totalorder %s16, 1
    %p253 = por %p251, %p252
    %p254 = scmp.ne.s32.totalorder %s246, %s249
    %p255 = scmp.eq.s32.totalorder %s16, 0
    %p256 = por %p254, %p255
    %p257 = scmp.ne.s32.totalorder %s246, %s249
    %p258 = scmp.eq.s32.totalorder %s21, 1
    %p259 = por %p257, %p258
    %p260 = scmp.ne.s32.totalorder %s249, %s250
    %p261 = scmp.eq.s32.totalorder %s21, 0
    %p262 = por %p260, %p261
    %p263 = scmp.ne.s32.totalorder %s249, %s250
    %p264 = scmp.eq.s32.totalorder %s22, 1
    %p265 = por %p263, %p264
    %p267 = scmp.ne.s32.totalorder %s250, %s266
    %p268 = scmp.eq.s32.totalorder %s22, 0
    %p269 = por %p267, %p268
    %p270 = scmp.le.s32.totalorder 1, %s16
    %p271 = scmp.lt.s32.totalorder %s16, 3
    %p272 = pnand %p270, %p271
    %p273 = pneg %p272
    // Predicated region
    $region9: #{graphnet_forward.12} parent=5 // pred_check
      _
    $region10: #{graphnet_forward.12} parent=5 // pred_check_branch
      %275 = sbr.rel (%p272) target = $region12
    $region11: #{graphnet_forward.12} parent=5 // pred_region
      %s276 = ssub.s32 %s16, 1
      // Predicated region
      $region13: #{graphnet_forward.12} parent=11 // pred_check
        %p277 = pneg %p89
      $region14: #{graphnet_forward.12} parent=11 // pred_check_branch
        %279 = sbr.rel (%p277) target = $region16
      $region15: #{graphnet_forward.12} parent=11 // pred_region
        _
      $region16: #{graphnet_forward.12} parent=11 // pred_fallthru
        _
      // Predicated region
      $region17: #{graphnet_forward.12} parent=11 // pred_check
        %p280 = pneg %p110
      $region18: #{graphnet_forward.12} parent=11 // pred_check_branch
        %282 = sbr.rel (%p280) target = $region20
      $region19: #{graphnet_forward.12} parent=11 // pred_region
        _
      $region20: #{graphnet_forward.12} parent=11 // pred_fallthru
        _
      // Predicated region
      $region21: #{graphnet_forward.12} parent=11 // pred_check
        %p283 = pneg %p131
      $region22: #{graphnet_forward.12} parent=11 // pred_check_branch
        %285 = sbr.rel (%p283) target = $region24
      $region23: #{graphnet_forward.12} parent=11 // pred_region
        _
      $region24: #{graphnet_forward.12} parent=11 // pred_fallthru
        _
      // Predicated region
      $region25: #{graphnet_forward.12} parent=11 // pred_check
        %p286 = pneg %p152
      $region26: #{graphnet_forward.12} parent=11 // pred_check_branch
        %288 = sbr.rel (%p286) target = $region28
      $region27: #{graphnet_forward.12} parent=11 // pred_region
        _
      $region28: #{graphnet_forward.12} parent=11 // pred_fallthru
        _
      // Predicated region
      $region29: #{graphnet_forward.12} parent=11 // pred_check
        %p289 = pneg %p173
      $region30: #{graphnet_forward.12} parent=11 // pred_check_branch
        %291 = sbr.rel (%p289) target = $region32
      $region31: #{graphnet_forward.12} parent=11 // pred_region
        _
      $region32: #{graphnet_forward.12} parent=11 // pred_fallthru
        _
      // Predicated region
      $region33: #{graphnet_forward.12} parent=11 // pred_check
        %p292 = pneg %p194
      $region34: #{graphnet_forward.12} parent=11 // pred_check_branch
        %294 = sbr.rel (%p292) target = $region36
      $region35: #{graphnet_forward.12} parent=11 // pred_region
        _
      $region36: #{graphnet_forward.12} parent=11 // pred_fallthru
        _
      // Predicated region
      $region37: #{graphnet_forward.12} parent=11 // pred_check
        %p295 = pneg %p215
      $region38: #{graphnet_forward.12} parent=11 // pred_check_branch
        %297 = sbr.rel (%p295) target = $region40
      $region39: #{graphnet_forward.12} parent=11 // pred_region
        _
      $region40: #{graphnet_forward.12} parent=11 // pred_fallthru
        _
      // Predicated region
      $region41: #{graphnet_forward.12} parent=11 // pred_check
        %p298 = pneg %p236
      $region42: #{graphnet_forward.12} parent=11 // pred_check_branch
        %300 = sbr.rel (%p298) target = $region44
      $region43: #{graphnet_forward.12} parent=11 // pred_region
        _
      $region44: #{graphnet_forward.12} parent=11 // pred_fallthru
        _
    $region12: #{graphnet_forward.12} parent=5 // pred_fallthru
      _
    %p301 = scmp.lt.s32.totalorder %s16, 2
    // Predicated region
    $region45: #{graphnet_forward.12} parent=5 // pred_check
      %p302 = pneg %p301
    $region46: #{graphnet_forward.12} parent=5 // pred_check_branch
      %304 = sbr.rel (%p302) target = $region48
    $region47: #{graphnet_forward.12} parent=5 // pred_region
      // Predicated region
      $region49: #{graphnet_forward.12} parent=47 // pred_check
        %p305 = pneg %p36
      $region50: #{graphnet_forward.12} parent=47 // pred_check_branch
        %307 = sbr.rel (%p305) target = $region52
      $region51: #{graphnet_forward.12} parent=47 // pred_region
        %s308 = smul.u32 2, %s16
        %p309 = scmp.lt.s32.totalorder %s308, 3
        %s310 = scalar_select %p309, %s308, 3
        %s311 = smul.addr %s310, 4
        %s312 = scalar_lea.vmem %s0, %s311
        %s313 = smul.u32 2, %s16
      $region52: #{graphnet_forward.12} parent=47 // pred_fallthru
        _
      // Predicated region
      $region53: #{graphnet_forward.12} parent=47 // pred_check
        %p314 = pneg %p62
      $region54: #{graphnet_forward.12} parent=47 // pred_check_branch
        %316 = sbr.rel (%p314) target = $region56
      $region55: #{graphnet_forward.12} parent=47 // pred_region
        %s317 = smul.u32 2, %s16
        %p318 = scmp.lt.s32.totalorder %s317, 3
        %s319 = scalar_select %p318, %s317, 3
        %s320 = smul.addr %s319, 4
        %s321 = scalar_lea.vmem %s1, %s320
        %s322 = smul.u32 2, %s16
      $region56: #{graphnet_forward.12} parent=47 // pred_fallthru
        _
    $region48: #{graphnet_forward.12} parent=5 // pred_fallthru
      _
    %p323 = scmp.le.s32.totalorder 1, %s16
    %p324 = scmp.lt.s32.totalorder %s16, 3
    %p325 = pnand %p323, %p324
    %p326 = pneg %p325
    // Predicated region
    $region57: #{graphnet_forward.12} parent=5 // pred_check
      _
    $region58: #{graphnet_forward.12} parent=5 // pred_check_branch
      %328 = sbr.rel (%p325) target = $region60
    $region59: #{graphnet_forward.12} parent=5 // pred_region
      %s329 = ssub.s32 %s16, 1
      %s330 = smul.u32 2, %s21
      %p331 = scmp.lt.s32.totalorder %s330, 3
      %s332 = scalar_select %p331, %s330, 3
      %s333 = smul.addr %s332, 4
      %s334 = scalar_lea.vmem %s0, %s333
      %p335 = pneg %p42
      %p336 = pneg %p39
      %s337 = smul.u32 2, %s21
      %p338 = scmp.lt.s32.totalorder %s337, 3
      %s339 = scalar_select %p338, %s337, 3
      %s340 = smul.addr %s339, 4
      %s341 = scalar_lea.vmem %s1, %s340
      %p342 = pneg %p68
      %p343 = pneg %p65
      %p344 = pneg %p89
      %p345 = pneg %p86
      %p346 = pneg %p110
      %p347 = pneg %p107
      %p348 = pneg %p131
      %p349 = pneg %p128
      %p350 = pneg %p152
      %p351 = pneg %p149
      %p352 = pneg %p173
      %p353 = pneg %p170
      %p354 = pneg %p194
      %p355 = pneg %p191
      %p356 = pneg %p215
      %p357 = pneg %p212
      %p358 = pneg %p236
      %p359 = pneg %p233
      %p360 = pneg %p262
      %p361 = pneg %p259
      %s362 = smul.u32 2, %s21
      %p363 = scmp.lt.s32.totalorder %s362, 3
      %s364 = scalar_select %p363, %s362, 3
      %s365 = smul.addr %s364, 4
      %s366 = scalar_lea.vmem %s10, %s365
      %s367 = smul.u32 2, %s21
      %p368 = scmp.lt.s32.totalorder %s367, 3
      %s369 = scalar_select %p368, %s367, 3
      %s370 = smul.addr %s369, 4
      %s371 = scalar_lea.vmem %s0, %s370
      %s372 = smul.u32 2, %s21
      %s373 = smul.u32 2, %s21
      %p374 = scmp.lt.s32.totalorder %s373, 3
      %s375 = scalar_select %p374, %s373, 3
      %s376 = smul.addr %s375, 4
      %s377 = scalar_lea.vmem %s1, %s376
      %s378 = smul.u32 2, %s21
      %s379 = smul.u32 2, %s21
      %p380 = scmp.lt.s32.totalorder %s379, 3
      %s381 = scalar_select %p380, %s379, 3
      %s382 = smul.addr %s381, 4
      %s383 = scalar_lea.vmem %s10, %s382
      %s384 = smul.u32 2, %s21
      %v385 = vld [vmem:[%s371] sm:$0xf]
      %v386 = vld [vmem:[%s371 + $0x4] sm:$0xf]
      %v387 = vld [vmem:[%s377] sm:$0xf]
      %v388 = vld [vmem:[%s377 + $0x4] sm:$0xf]
      %v391 = vunpack.c.l.b16 %v385
      %v392 = vunpack.c.l.b16 %v386
      %v393 = vpack.c.b16 %v392, %v391
      %v397 = vunpack.c.l.b16 %v387
      %v398 = vunpack.c.l.b16 %v388
      %v399 = vpack.c.b16 %v398, %v397
      %v401 = vld [vmem:[%s2] sm:$0xf]
      %v402 = vld [vmem:[%s2 + $0x4] sm:$0xf]
      %v403 = vld [vmem:[%s2 + $0x8] sm:$0xf]
      %v404 = vld [vmem:[%s2 + $0xc] sm:$0xf]
      %v405 = vld [vmem:[%s2 + $0x10] sm:$0xf]
      %v406 = vld [vmem:[%s2 + $0x14] sm:$0xf]
      %v407 = vld [vmem:[%s2 + $0x18] sm:$0xf]
      %v408 = vld [vmem:[%s2 + $0x1c] sm:$0xf]
      %v409 = vld [vmem:[%s2 + $0x20] sm:$0xf]
      %v410 = vld [vmem:[%s2 + $0x24] sm:$0xf]
      %v411 = vld [vmem:[%s2 + $0x28] sm:$0xf]
      %v412 = vld [vmem:[%s2 + $0x2c] sm:$0xf]
      %v413 = vld [vmem:[%s2 + $0x30] sm:$0xf]
      %v414 = vld [vmem:[%s2 + $0x34] sm:$0xf]
      %v415 = vld [vmem:[%s2 + $0x38] sm:$0xf]
      %v416 = vld [vmem:[%s2 + $0x3c] sm:$0xf]
      %v417 = vld [vmem:[%s2 + $0x40] sm:$0xf]
      %v418 = vld [vmem:[%s2 + $0x44] sm:$0xf]
      %v419 = vld [vmem:[%s2 + $0x48] sm:$0xf]
      %v420 = vld [vmem:[%s2 + $0x4c] sm:$0xf]
      %v421 = vld [vmem:[%s2 + $0x50] sm:$0xf]
      %v422 = vld [vmem:[%s2 + $0x54] sm:$0xf]
      %v423 = vld [vmem:[%s2 + $0x58] sm:$0xf]
      %v424 = vld [vmem:[%s2 + $0x5c] sm:$0xf]
      %v425 = vld [vmem:[%s2 + $0x60] sm:$0xf]
      %v426 = vld [vmem:[%s2 + $0x64] sm:$0xf]
      %v427 = vld [vmem:[%s2 + $0x68] sm:$0xf]
      %v428 = vld [vmem:[%s2 + $0x6c] sm:$0xf]
      %v429 = vld [vmem:[%s2 + $0x70] sm:$0xf]
      %v430 = vld [vmem:[%s2 + $0x74] sm:$0xf]
      %v431 = vld [vmem:[%s2 + $0x78] sm:$0xf]
      %v432 = vld [vmem:[%s2 + $0x7c] sm:$0xf]
      %v433 = vld [vmem:[%s3] sm:$0x1]
      %v435 = vperm.slane %v433, 0
      %v469 = vunpack.c.l.b16 %v401
      %v470 = vunpack.c.l.b16 %v402
      %v471 = vunpack.c.l.b16 %v403
      %v472 = vunpack.c.l.b16 %v404
      %v473 = vunpack.c.l.b16 %v405
      %v474 = vunpack.c.l.b16 %v406
      %v475 = vunpack.c.l.b16 %v407
      %v476 = vunpack.c.l.b16 %v408
      %v477 = vunpack.c.l.b16 %v409
      %v478 = vunpack.c.l.b16 %v410
      %v479 = vunpack.c.l.b16 %v411
      %v480 = vunpack.c.l.b16 %v412
      %v481 = vunpack.c.l.b16 %v413
      %v482 = vunpack.c.l.b16 %v414
      %v483 = vunpack.c.l.b16 %v415
      %v484 = vunpack.c.l.b16 %v416
      %v485 = vunpack.c.l.b16 %v417
      %v486 = vunpack.c.l.b16 %v418
      %v487 = vunpack.c.l.b16 %v419
      %v488 = vunpack.c.l.b16 %v420
      %v489 = vunpack.c.l.b16 %v421
      %v490 = vunpack.c.l.b16 %v422
      %v491 = vunpack.c.l.b16 %v423
      %v492 = vunpack.c.l.b16 %v424
      %v493 = vunpack.c.l.b16 %v425
      %v494 = vunpack.c.l.b16 %v426
      %v495 = vunpack.c.l.b16 %v427
      %v496 = vunpack.c.l.b16 %v428
      %v497 = vunpack.c.l.b16 %v429
      %v498 = vunpack.c.l.b16 %v430
      %v499 = vunpack.c.l.b16 %v431
      %v500 = vunpack.c.l.b16 %v432
      %v501 = vpack.c.b16 %v470, %v469
      %v502 = vpack.c.b16 %v472, %v471
      %v503 = vpack.c.b16 %v474, %v473
      %v504 = vpack.c.b16 %v476, %v475
      %v505 = vpack.c.b16 %v478, %v477
      %v506 = vpack.c.b16 %v480, %v479
      %v507 = vpack.c.b16 %v482, %v481
      %v508 = vpack.c.b16 %v484, %v483
      %v509 = vpack.c.b16 %v486, %v485
      %v510 = vpack.c.b16 %v488, %v487
      %v511 = vpack.c.b16 %v490, %v489
      %v512 = vpack.c.b16 %v492, %v491
      %v513 = vpack.c.b16 %v494, %v493
      %v514 = vpack.c.b16 %v496, %v495
      %v515 = vpack.c.b16 %v498, %v497
      %v516 = vpack.c.b16 %v500, %v499
      %533 = vmatpush.bf16.msra.mxu0 %v508
      %534 = vmatpush.bf16.msra.mxu0 %v507
      %535 = vmatpush.bf16.msra.mxu0 %v506
      %536 = vmatpush.bf16.msra.mxu0 %v505
      %537 = vmatpush.bf16.msra.mxu0 %v504
      %538 = vmatpush.bf16.msra.mxu0 %v503
      %539 = vmatpush.bf16.msra.mxu0 %v502
      %540 = vmatpush.bf16.msra.mxu0 %v501
      %541 = vmatmul.bf16.gmra.mxu0 %v393
      %v542 = vpop.f32.mrf.mxu0
      %v543 = vadd.f32 %v435, %v542
      %v544 = vpop.f32.mrf.mxu0
      %v545 = vadd.f32 %v435, %v544
      %546 = vdwg.mxu0
      %547 = vmatpush.bf16.msra.mxu0 %v516
      %548 = vmatpush.bf16.msra.mxu0 %v515
      %549 = vmatpush.bf16.msra.mxu0 %v514
      %550 = vmatpush.bf16.msra.mxu0 %v513
      %551 = vmatpush.bf16.msra.mxu0 %v512
      %552 = vmatpush.bf16.msra.mxu0 %v511
      %553 = vmatpush.bf16.msra.mxu0 %v510
      %554 = vmatpush.bf16.msra.mxu0 %v509
      %555 = vmatmul.bf16.gmra.mxu0 %v399
      %v556 = vpop.f32.mrf.mxu0
      %v557 = vadd.f32 %v543, %v556
      %v558 = vpop.f32.mrf.mxu0
      %v559 = vadd.f32 %v545, %v558
      %560 = vdwg.mxu0
      %v561 = vmul.f32 %v557, %v557
      %v562 = vmul.f32 %v559, %v559
      %v563 = vmul.f32 %v557, %v561
      %v564 = vmul.f32 %v559, %v562
      %v565 = vmul.f32 %v563, 0.044715
      %v566 = vmul.f32 %v564, 0.044715
      %v567 = vadd.f32 %v557, %v565
      %v568 = vadd.f32 %v559, %v566
      %v569 = vmul.f32 %v567, 0.7978846
      %v570 = vmul.f32 %v568, 0.7978846
      %v571 = vtanh.pop %v569
      %v572 = vtanh.pop %v570
      %v573 = vadd.f32 %v571, 1.0
      %v574 = vadd.f32 %v572, 1.0
      %v575 = vmul.f32 %v573, 0.5
      %v576 = vmul.f32 %v574, 0.5
      %v577 = vmul.f32 %v557, %v575
      %v578 = vmul.f32 %v559, %v576
      %v579 = vpack.c.bf16 %v578, %v577
      %v580 = vld [vmem:[%s4] sm:$0xf]
      %v581 = vld [vmem:[%s4 + $0x4] sm:$0xf]
      %v582 = vld [vmem:[%s4 + $0x8] sm:$0xf]
      %v583 = vld [vmem:[%s4 + $0xc] sm:$0xf]
      %v584 = vld [vmem:[%s4 + $0x10] sm:$0xf]
      %v585 = vld [vmem:[%s4 + $0x14] sm:$0xf]
      %v586 = vld [vmem:[%s4 + $0x18] sm:$0xf]
      %v587 = vld [vmem:[%s4 + $0x1c] sm:$0xf]
      %v588 = vld [vmem:[%s4 + $0x20] sm:$0xf]
      %v589 = vld [vmem:[%s4 + $0x24] sm:$0xf]
      %v590 = vld [vmem:[%s4 + $0x28] sm:$0xf]
      %v591 = vld [vmem:[%s4 + $0x2c] sm:$0xf]
      %v592 = vld [vmem:[%s4 + $0x30] sm:$0xf]
      %v593 = vld [vmem:[%s4 + $0x34] sm:$0xf]
      %v594 = vld [vmem:[%s4 + $0x38] sm:$0xf]
      %v595 = vld [vmem:[%s4 + $0x3c] sm:$0xf]
      %v596 = vld [vmem:[%s5] sm:$0x1]
      %v598 = vperm.slane %v596, 0
      %v616 = vunpack.c.l.b16 %v580
      %v617 = vunpack.c.l.b16 %v581
      %v618 = vunpack.c.l.b16 %v582
      %v619 = vunpack.c.l.b16 %v583
      %v620 = vunpack.c.l.b16 %v584
      %v621 = vunpack.c.l.b16 %v585
      %v622 = vunpack.c.l.b16 %v586
      %v623 = vunpack.c.l.b16 %v587
      %v624 = vunpack.c.l.b16 %v588
      %v625 = vunpack.c.l.b16 %v589
      %v626 = vunpack.c.l.b16 %v590
      %v627 = vunpack.c.l.b16 %v591
      %v628 = vunpack.c.l.b16 %v592
      %v629 = vunpack.c.l.b16 %v593
      %v630 = vunpack.c.l.b16 %v594
      %v631 = vunpack.c.l.b16 %v595
      %v632 = vpack.c.b16 %v617, %v616
      %v633 = vpack.c.b16 %v619, %v618
      %v634 = vpack.c.b16 %v621, %v620
      %v635 = vpack.c.b16 %v623, %v622
      %v636 = vpack.c.b16 %v625, %v624
      %v637 = vpack.c.b16 %v627, %v626
      %v638 = vpack.c.b16 %v629, %v628
      %v639 = vpack.c.b16 %v631, %v630
      %648 = vmatpush.bf16.msra.mxu0 %v639
      %649 = vmatpush.bf16.msra.mxu0 %v638
      %650 = vmatpush.bf16.msra.mxu0 %v637
      %651 = vmatpush.bf16.msra.mxu0 %v636
      %652 = vmatpush.bf16.msra.mxu0 %v635
      %653 = vmatpush.bf16.msra.mxu0 %v634
      %654 = vmatpush.bf16.msra.mxu0 %v633
      %655 = vmatpush.bf16.msra.mxu0 %v632
      %656 = vmatmul.bf16.gmra.mxu0 %v579
      %v657 = vpop.f32.mrf.mxu0
      %v658 = vadd.f32 %v598, %v657
      %v659 = vpop.f32.mrf.mxu0
      %v660 = vadd.f32 %v598, %v659
      %661 = vdwg.mxu0
      %v662 = vmul.f32 %v658, %v658
      %v663 = vmul.f32 %v660, %v660
      %v664 = vmul.f32 %v658, %v662
      %v665 = vmul.f32 %v660, %v663
      %v666 = vmul.f32 %v664, 0.044715
      %v667 = vmul.f32 %v665, 0.044715
      %v668 = vadd.f32 %v658, %v666
      %v669 = vadd.f32 %v660, %v667
      %v670 = vmul.f32 %v668, 0.7978846
      %v671 = vmul.f32 %v669, 0.7978846
      %v672 = vtanh.pop %v670
      %v673 = vtanh.pop %v671
      %v674 = vadd.f32 %v672, 1.0
      %v675 = vadd.f32 %v673, 1.0
      %v676 = vmul.f32 %v674, 0.5
      %v677 = vmul.f32 %v675, 0.5
      %v678 = vmul.f32 %v658, %v676
      %v679 = vmul.f32 %v660, %v677
      %v680 = vpack.c.bf16 %v679, %v678
      %v681 = vld [vmem:[%s6] sm:$0xf]
      %v682 = vld [vmem:[%s6 + $0x4] sm:$0xf]
      %v683 = vld [vmem:[%s6 + $0x8] sm:$0xf]
      %v684 = vld [vmem:[%s6 + $0xc] sm:$0xf]
      %v685 = vld [vmem:[%s6 + $0x10] sm:$0xf]
      %v686 = vld [vmem:[%s6 + $0x14] sm:$0xf]
      %v687 = vld [vmem:[%s6 + $0x18] sm:$0xf]
      %v688 = vld [vmem:[%s6 + $0x1c] sm:$0xf]
      %v689 = vld [vmem:[%s6 + $0x20] sm:$0xf]
      %v690 = vld [vmem:[%s6 + $0x24] sm:$0xf]
      %v691 = vld [vmem:[%s6 + $0x28] sm:$0xf]
      %v692 = vld [vmem:[%s6 + $0x2c] sm:$0xf]
      %v693 = vld [vmem:[%s6 + $0x30] sm:$0xf]
      %v694 = vld [vmem:[%s6 + $0x34] sm:$0xf]
      %v695 = vld [vmem:[%s6 + $0x38] sm:$0xf]
      %v696 = vld [vmem:[%s6 + $0x3c] sm:$0xf]
      %v697 = vld [vmem:[%s7] sm:$0x1]
      %v699 = vperm.slane %v697, 0
      %v717 = vunpack.c.l.b16 %v681
      %v718 = vunpack.c.l.b16 %v682
      %v719 = vunpack.c.l.b16 %v683
      %v720 = vunpack.c.l.b16 %v684
      %v721 = vunpack.c.l.b16 %v685
      %v722 = vunpack.c.l.b16 %v686
      %v723 = vunpack.c.l.b16 %v687
      %v724 = vunpack.c.l.b16 %v688
      %v725 = vunpack.c.l.b16 %v689
      %v726 = vunpack.c.l.b16 %v690
      %v727 = vunpack.c.l.b16 %v691
      %v728 = vunpack.c.l.b16 %v692
      %v729 = vunpack.c.l.b16 %v693
      %v730 = vunpack.c.l.b16 %v694
      %v731 = vunpack.c.l.b16 %v695
      %v732 = vunpack.c.l.b16 %v696
      %v733 = vpack.c.b16 %v718, %v717
      %v734 = vpack.c.b16 %v720, %v719
      %v735 = vpack.c.b16 %v722, %v721
      %v736 = vpack.c.b16 %v724, %v723
      %v737 = vpack.c.b16 %v726, %v725
      %v738 = vpack.c.b16 %v728, %v727
      %v739 = vpack.c.b16 %v730, %v729
      %v740 = vpack.c.b16 %v732, %v731
      %749 = vmatpush.bf16.msra.mxu0 %v740
      %750 = vmatpush.bf16.msra.mxu0 %v739
      %751 = vmatpush.bf16.msra.mxu0 %v738
      %752 = vmatpush.bf16.msra.mxu0 %v737
      %753 = vmatpush.bf16.msra.mxu0 %v736
      %754 = vmatpush.bf16.msra.mxu0 %v735
      %755 = vmatpush.bf16.msra.mxu0 %v734
      %756 = vmatpush.bf16.msra.mxu0 %v733
      %757 = vmatmul.bf16.gmra.mxu0 %v680
      %v758 = vpop.f32.mrf.mxu0
      %v759 = vadd.f32 %v699, %v758
      %v760 = vpop.f32.mrf.mxu0
      %v761 = vadd.f32 %v699, %v760
      %762 = vdwg.mxu0
      %763 = vadd.xlane.f32.xlu0 %v759
      %v764 = vpop.xlane.xlu0 %763
      %765 = vadd.xlane.f32.xlu0 %v761
      %v766 = vpop.xlane.xlu0 %765
      %v767 = vmul.f32 %v764, 0.03125
      %v768 = vmul.f32 %v766, 0.03125
      %v769 = vmul.f32 %v759, %v759
      %v770 = vmul.f32 %v761, %v761
      %771 = vadd.xlane.f32.xlu0 %v769
      %v772 = vpop.xlane.xlu0 %771
      %773 = vadd.xlane.f32.xlu0 %v770
      %v774 = vpop.xlane.xlu0 %773
      %v775 = vmul.f32 %v772, 0.03125
      %v776 = vmul.f32 %v774, 0.03125
      %v777 = vmul.f32 %v767, %v767
      %v778 = vmul.f32 %v768, %v768
      %v779 = vsub.f32 %v775, %v777
      %v780 = vsub.f32 %v776, %v778
      %v781 = vsub.f32 %v759, %v767
      %v782 = vsub.f32 %v761, %v768
      %v783 = vadd.f32 %v779, 1e-05
      %v784 = vadd.f32 %v780, 1e-05
      %v785 = vrsqrt.pop %v783
      %v786 = vmul.f32 %v785, %v783
      %v787 = vmul.f32 %v786, %v785
      %v788 = vmul.f32 0.5, %v787
      %v789 = vsub.f32 1.5, %v788
      %v790 = vmul.f32 %v785, %v789
      %vm791 = vweird.f32 %v783
      %vm792 = vweird.f32 %v785
      %vm793 = vmor %vm791, %vm792
      %v794 = vsel %vm793, %v785, %v790
      %v795 = vrsqrt.pop %v784
      %v796 = vmul.f32 %v795, %v784
      %v797 = vmul.f32 %v796, %v795
      %v798 = vmul.f32 0.5, %v797
      %v799 = vsub.f32 1.5, %v798
      %v800 = vmul.f32 %v795, %v799
      %vm801 = vweird.f32 %v784
      %vm802 = vweird.f32 %v795
      %vm803 = vmor %vm801, %vm802
      %v804 = vsel %vm803, %v795, %v800
      %v805 = vmul.f32 %v781, %v794
      %v806 = vmul.f32 %v782, %v804
      %v807 = vld [vmem:[%s8] sm:$0x1]
      %v809 = vperm.slane %v807, 0
      %v811 = vmul.f32 %v805, %v809
      %v812 = vmul.f32 %v806, %v809
      %v813 = vld [vmem:[%s9] sm:$0x1]
      %v815 = vperm.slane %v813, 0
      %v817 = vadd.f32 %v811, %v815
      %v818 = vadd.f32 %v812, %v815
      %v819 = vunpack.c.l.bf16 %v387
      %v820 = vunpack.c.l.bf16 %v388
      %v821 = vadd.f32 %v817, %v819
      %v822 = vadd.f32 %v818, %v820
      %v823 = vpack.c.bf16 %v821, %v821
      %v824 = vpack.c.bf16 %v822, %v822
      %825 = vst [vmem:[%s383] sm:$0xf] %v823
      %826 = vst [vmem:[%s383 + $0x4] sm:$0xf] %v824
      %s827 = smul.u32 2, %s21
      %p828 = scmp.lt.s32.totalorder %s827, 3
      %s829 = scalar_select %p828, %s827, 3
      %s830 = smul.addr %s829, 4
      %s831 = scalar_lea.vmem %s10, %s830
      // Predicated region
      $region61: #{graphnet_forward.12} parent=59 // pred_check
        %p832 = pneg %p259
      $region62: #{graphnet_forward.12} parent=59 // pred_check_branch
        %834 = sbr.rel (%p832) target = $region64
      $region63: #{graphnet_forward.12} parent=59 // pred_region
        %s835 = smul.u32 2, %s21
      $region64: #{graphnet_forward.12} parent=59 // pred_fallthru
        _
    $region60: #{graphnet_forward.12} parent=5 // pred_fallthru
      _
    %p836 = scmp.le.s32.totalorder 2, %s16
    // Predicated region
    $region65: #{graphnet_forward.12} parent=5 // pred_check
      %p837 = pneg %p836
    $region66: #{graphnet_forward.12} parent=5 // pred_check_branch
      %839 = sbr.rel (%p837) target = $region68
    $region67: #{graphnet_forward.12} parent=5 // pred_region
      %s840 = ssub.s32 %s16, 2
      // Predicated region
      $region69: #{graphnet_forward.12} parent=67 // pred_check
        %p841 = pneg %p265
      $region70: #{graphnet_forward.12} parent=67 // pred_check_branch
        %843 = sbr.rel (%p841) target = $region72
      $region71: #{graphnet_forward.12} parent=67 // pred_region
        %s844 = smul.u32 2, %s22
        %p845 = scmp.lt.s32.totalorder %s844, 3
        %s846 = scalar_select %p845, %s844, 3
        %s847 = smul.addr %s846, 4
        %s848 = scalar_lea.vmem %s10, %s847
      $region72: #{graphnet_forward.12} parent=67 // pred_fallthru
        _
    $region68: #{graphnet_forward.12} parent=5 // pred_fallthru
      _
  $region6: #{graphnet_forward.12} parent=0 // loop_footer
    %s20 = sadd.s32 1, %s16
  $region7: #{graphnet_forward.12} parent=0 // loop_footer_branch
    %15 = sbr.rel target = $region3
  $region8: #{graphnet_forward.12} parent=0 // loop_exit
    _

</llo_original>
